<compile_context>
chip_gen: v7x
topology: tpu7x:2x2x1
jax: 0.10.0
libtpu: 0.0.40
codegen_flags: <defaults>
</compile_context>

<pallas_src>
import functools

import jax
import jax.numpy as jnp
from jax.experimental import pallas as pl
from jax.experimental.pallas import tpu as pltpu

LANE = 128
TILE_B = 256


def _round_up(n, m):
    return ((n + m - 1) // m) * m


def mlp_refine_kernel(x_ref, w1_ref, b1_ref, w2_ref, b2_ref, w3_ref, b3_ref,
                      o_ref):
    x = x_ref[...]                                   # (TILE_B, 128) f32

    # Layer 1: Linear + ReLU  (Dropout(0.1) is identity in eval mode)
    h1 = jnp.dot(x.astype(jnp.bfloat16), w1_ref[...],
                 preferred_element_type=jnp.float32)
    h1 = jnp.maximum(h1 + b1_ref[...], 0.0)          # f32 elementwise

    # Layer 2: Linear + ReLU
    h2 = jnp.dot(h1.astype(jnp.bfloat16), w2_ref[...],
                 preferred_element_type=jnp.float32)
    h2 = jnp.maximum(h2 + b2_ref[...], 0.0)

    # Layer 3: Linear
    out = jnp.dot(h2.astype(jnp.bfloat16), w3_ref[...],
                  preferred_element_type=jnp.float32)

    # Bias + residual: out + b3 + 0.1 * x   (padded lanes of x are zero)
    o_ref[...] = out + b3_ref[...] + 0.1 * x

    # TODO(synk): training-mode Dropout(p=0.1) not implemented (inference
    # semantics assumed, matching model.eval()).


@functools.partial(jax.jit, static_argnames=("tile_b",))
def standard_mlp_refinement(x, params, tile_b=TILE_B):
    """x: (B, D_in) float32;  params: dict of w1,b1,w2,b2,w3,b3 (f32)."""
    B, D_in = x.shape
    D_hid = params["w1"].shape[1]
    D_out = params["w3"].shape[1]

    d_in_p = _round_up(D_in, LANE)     # 38  -> 128
    d_hid_p = _round_up(D_hid, LANE)   # 500 -> 512
    d_out_p = _round_up(D_out, LANE)   # 38  -> 128

    n_tiles = pl.cdiv(B, tile_b)
    b_p = n_tiles * tile_b

    # Lane-dense, batch-padded input (zeros contribute nothing through the MLP).
    x_p = jnp.pad(x, ((0, b_p - B), (0, d_in_p - D_in)))

    # Weights padded + pre-cast to bf16 (f32 accumulation in the kernel);
    # biases stay f32.
    w1 = jnp.pad(params["w1"], ((0, d_in_p - D_in), (0, d_hid_p - D_hid))
                 ).astype(jnp.bfloat16)
    b1 = jnp.pad(params["b1"], ((0, 0), (0, d_hid_p - D_hid)))
    w2 = jnp.pad(params["w2"], ((0, d_hid_p - D_hid), (0, d_hid_p - D_hid))
                 ).astype(jnp.bfloat16)
    b2 = jnp.pad(params["b2"], ((0, 0), (0, d_hid_p - D_hid)))
    w3 = jnp.pad(params["w3"], ((0, d_hid_p - D_hid), (0, d_out_p - D_out))
                 ).astype(jnp.bfloat16)
    b3 = jnp.pad(params["b3"], ((0, 0), (0, d_out_p - D_out)))

    flops = 2 * b_p * (d_in_p * d_hid_p + d_hid_p * d_hid_p + d_hid_p * d_out_p)
    bytes_accessed = (x_p.size * 4 + b_p * d_out_p * 4
                      + (w1.size + w2.size + w3.size) * 2
                      + (b1.size + b2.size + b3.size) * 4)

    out_p = pl.pallas_call(
        mlp_refine_kernel,
        out_shape=jax.ShapeDtypeStruct((b_p, d_out_p), jnp.float32),
        grid=(n_tiles,),
        in_specs=[
            pl.BlockSpec((tile_b, d_in_p), lambda i: (i, 0)),      # x tile
            pl.BlockSpec((d_in_p, d_hid_p), lambda i: (0, 0)),     # w1 (resident)
            pl.BlockSpec((1, d_hid_p), lambda i: (0, 0)),          # b1
            pl.BlockSpec((d_hid_p, d_hid_p), lambda i: (0, 0)),    # w2 (resident)
            pl.BlockSpec((1, d_hid_p), lambda i: (0, 0)),          # b2
            pl.BlockSpec((d_hid_p, d_out_p), lambda i: (0, 0)),    # w3 (resident)
            pl.BlockSpec((1, d_out_p), lambda i: (0, 0)),          # b3
        ],
        out_specs=pl.BlockSpec((tile_b, d_out_p), lambda i: (i, 0)),
        compiler_params=pltpu.CompilerParams(
            dimension_semantics=("parallel",),
            vmem_limit_bytes=64 * 1024 * 1024,
        ),
        cost_estimate=pl.CostEstimate(
            flops=flops, transcendentals=0, bytes_accessed=bytes_accessed),
    )(x_p, w1, b1, w2, b2, w3, b3)

    return out_p[:B, :D_out]


def init_params(key, input_dim=38, hidden_dim=500, output_dim=38):
    """Deterministic init mimicking torch.nn.Linear default (U(+-1/sqrt(fan_in)))."""
    ks = jax.random.split(key, 6)

    def linear(kw, kb, fan_in, fan_out):
        bound = 1.0 / jnp.sqrt(fan_in)
        w = jax.random.uniform(kw, (fan_in, fan_out), jnp.float32, -bound, bound)
        b = jax.random.uniform(kb, (1, fan_out), jnp.float32, -bound, bound)
        return w, b

    w1, b1 = linear(ks[0], ks[1], input_dim, hidden_dim)
    w2, b2 = linear(ks[2], ks[3], hidden_dim, hidden_dim)
    w3, b3 = linear(ks[4], ks[5], hidden_dim, output_dim)
    return {"w1": w1, "b1": b1, "w2": w2, "b2": b2, "w3": w3, "b3": b3}


def _reference(x, params):
    h1 = jnp.maximum(x @ params["w1"] + params["b1"], 0.0)
    h2 = jnp.maximum(h1 @ params["w2"] + params["b2"], 0.0)
    return h2 @ params["w3"] + params["b3"] + 0.1 * x


if __name__ == "__main__":
    key = jax.random.PRNGKey(0)
    k_x, k_x2, k_p = jax.random.split(key, 3)

    D_IN, D_HID, D_OUT = 38, 500, 38
    params = init_params(k_p, D_IN, D_HID, D_OUT)

    # Small-batch case (single grid step, batch padded to TILE_B).
    x = jax.random.normal(k_x, (8, D_IN), dtype=jnp.float32)
    out = jax.block_until_ready(standard_mlp_refinement(x, params))
    ref = _reference(x, params)
    assert out.shape == (8, D_OUT)
    assert jnp.allclose(out, ref, atol=5e-2, rtol=5e-2), (
        float(jnp.max(jnp.abs(out - ref))))

    # Multi-tile case (exercises the batch grid + padding slice-back).
    x2 = jax.random.normal(k_x2, (300, D_IN), dtype=jnp.float32)
    out2 = jax.block_until_ready(standard_mlp_refinement(x2, params))
    ref2 = _reference(x2, params)
    assert out2.shape == (300, D_OUT)
    assert jnp.allclose(out2, ref2, atol=5e-2, rtol=5e-2), (
        float(jnp.max(jnp.abs(out2 - ref2))))

    print("KERNEL_OK")
</pallas_src>

<mosaic_0001>
module attributes {stable_mosaic.version = 11 : i64} {
  func.func @mlp_refine_kernel(%arg0: i32, %arg1: memref<256x128xf32, #tpu.memory_space<vmem>>, %arg2: memref<128x512xbf16, #tpu.memory_space<vmem>>, %arg3: memref<1x512xf32, #tpu.memory_space<vmem>>, %arg4: memref<512x512xbf16, #tpu.memory_space<vmem>>, %arg5: memref<1x512xf32, #tpu.memory_space<vmem>>, %arg6: memref<512x128xbf16, #tpu.memory_space<vmem>>, %arg7: memref<1x128xf32, #tpu.memory_space<vmem>>, %arg8: memref<256x128xf32, #tpu.memory_space<vmem>>) attributes {dimension_semantics = [#tpu.dimension_semantics<parallel>], iteration_bounds = array<i64: 1>, scalar_prefetch = 0 : i64, scratch_operands = 0 : i64, tpu.core_type = #tpu.core_type<tc>, window_params = [{transform_indices = @transform_0, window_bounds = array<i64: 256, 128>}, {pipeline_mode = #tpu.pipeline_mode<synchronous>, transform_indices = @transform_1, window_bounds = array<i64: 128, 512>}, {pipeline_mode = #tpu.pipeline_mode<synchronous>, transform_indices = @transform_2, window_bounds = array<i64: 1, 512>}, {pipeline_mode = #tpu.pipeline_mode<synchronous>, transform_indices = @transform_3, window_bounds = array<i64: 512, 512>}, {pipeline_mode = #tpu.pipeline_mode<synchronous>, transform_indices = @transform_4, window_bounds = array<i64: 1, 512>}, {pipeline_mode = #tpu.pipeline_mode<synchronous>, transform_indices = @transform_5, window_bounds = array<i64: 512, 128>}, {pipeline_mode = #tpu.pipeline_mode<synchronous>, transform_indices = @transform_6, window_bounds = array<i64: 1, 128>}, {transform_indices = @transform_7, window_bounds = array<i64: 256, 128>}]} {
    %c0 = arith.constant 0 : index
    %c0_0 = arith.constant 0 : index
    %0 = vector.load %arg1[%c0, %c0_0] : memref<256x128xf32, #tpu.memory_space<vmem>>, vector<256x128xf32>
    %1 = arith.truncf %0 : vector<256x128xf32> to vector<256x128xbf16>
    %c0_1 = arith.constant 0 : index
    %c0_2 = arith.constant 0 : index
    %2 = vector.load %arg2[%c0_1, %c0_2] : memref<128x512xbf16, #tpu.memory_space<vmem>>, vector<128x512xbf16>
    %cst = arith.constant dense<0.000000e+00> : vector<256x512xf32>
    %3 = tpu.matmul %1, %2, %cst {dimension_numbers = #tpu.dot_dimension_numbers<[1], [0], [0], [1], [0, 0, 1, 1], [], []>} : vector<256x128xbf16>, vector<128x512xbf16>, vector<256x512xf32> -> vector<256x512xf32>
    %c0_3 = arith.constant 0 : index
    %c0_4 = arith.constant 0 : index
    %4 = vector.load %arg3[%c0_3, %c0_4] : memref<1x512xf32, #tpu.memory_space<vmem>>, vector<1x512xf32>
    %5 = vector.broadcast %4 : vector<1x512xf32> to vector<256x512xf32>
    %6 = arith.addf %3, %5 : vector<256x512xf32>
    %cst_5 = arith.constant 0.000000e+00 : f32
    %7 = vector.broadcast %cst_5 : f32 to vector<256x512xf32>
    %8 = arith.maximumf %6, %7 : vector<256x512xf32>
    %9 = arith.truncf %8 : vector<256x512xf32> to vector<256x512xbf16>
    %c0_6 = arith.constant 0 : index
    %c0_7 = arith.constant 0 : index
    %10 = vector.load %arg4[%c0_6, %c0_7] : memref<512x512xbf16, #tpu.memory_space<vmem>>, vector<512x512xbf16>
    %cst_8 = arith.constant dense<0.000000e+00> : vector<256x512xf32>
    %11 = tpu.matmul %9, %10, %cst_8 {dimension_numbers = #tpu.dot_dimension_numbers<[1], [0], [0], [1], [0, 0, 1, 1], [], []>} : vector<256x512xbf16>, vector<512x512xbf16>, vector<256x512xf32> -> vector<256x512xf32>
    %c0_9 = arith.constant 0 : index
    %c0_10 = arith.constant 0 : index
    %12 = vector.load %arg5[%c0_9, %c0_10] : memref<1x512xf32, #tpu.memory_space<vmem>>, vector<1x512xf32>
    %13 = vector.broadcast %12 : vector<1x512xf32> to vector<256x512xf32>
    %14 = arith.addf %11, %13 : vector<256x512xf32>
    %cst_11 = arith.constant 0.000000e+00 : f32
    %15 = vector.broadcast %cst_11 : f32 to vector<256x512xf32>
    %16 = arith.maximumf %14, %15 : vector<256x512xf32>
    %17 = arith.truncf %16 : vector<256x512xf32> to vector<256x512xbf16>
    %c0_12 = arith.constant 0 : index
    %c0_13 = arith.constant 0 : index
    %18 = vector.load %arg6[%c0_12, %c0_13] : memref<512x128xbf16, #tpu.memory_space<vmem>>, vector<512x128xbf16>
    %cst_14 = arith.constant dense<0.000000e+00> : vector<256x128xf32>
    %19 = tpu.matmul %17, %18, %cst_14 {dimension_numbers = #tpu.dot_dimension_numbers<[1], [0], [0], [1], [0, 0, 1, 1], [], []>} : vector<256x512xbf16>, vector<512x128xbf16>, vector<256x128xf32> -> vector<256x128xf32>
    %c0_15 = arith.constant 0 : index
    %c0_16 = arith.constant 0 : index
    %20 = vector.load %arg7[%c0_15, %c0_16] : memref<1x128xf32, #tpu.memory_space<vmem>>, vector<1x128xf32>
    %21 = vector.broadcast %20 : vector<1x128xf32> to vector<256x128xf32>
    %22 = arith.addf %19, %21 : vector<256x128xf32>
    %cst_17 = arith.constant 1.000000e-01 : f32
    %23 = vector.broadcast %cst_17 : f32 to vector<256x128xf32>
    %24 = arith.mulf %23, %0 : vector<256x128xf32>
    %25 = arith.addf %22, %24 : vector<256x128xf32>
    %c0_18 = arith.constant 0 : index
    %c0_19 = arith.constant 0 : index
    %26 = vector.load %arg8[%c0_18, %c0_19] : memref<256x128xf32, #tpu.memory_space<vmem>>, vector<256x128xf32>
    tpu.vector_store %arg8[%c0_18, %c0_19], %25 {strides = array<i32>} : memref<256x128xf32, #tpu.memory_space<vmem>>, vector<256x128xf32>,
    return
  }
  func.func @transform_0(%arg0: i32) -> (i32, i32) {
    %c0_i32 = arith.constant 0 : i32
    %c0_i32_0 = arith.constant 0 : i32
    return %arg0, %c0_i32 : i32, i32
  }
  func.func @transform_1(%arg0: i32) -> (i32, i32) {
    %c0_i32 = arith.constant 0 : i32
    %c0_i32_0 = arith.constant 0 : i32
    %c0_i32_1 = arith.constant 0 : i32
    return %c0_i32, %c0_i32_0 : i32, i32
  }
  func.func @transform_2(%arg0: i32) -> (i32, i32) {
    %c0_i32 = arith.constant 0 : i32
    %c0_i32_0 = arith.constant 0 : i32
    %c0_i32_1 = arith.constant 0 : i32
    return %c0_i32, %c0_i32_0 : i32, i32
  }
  func.func @transform_3(%arg0: i32) -> (i32, i32) {
    %c0_i32 = arith.constant 0 : i32
    %c0_i32_0 = arith.constant 0 : i32
    %c0_i32_1 = arith.constant 0 : i32
    return %c0_i32, %c0_i32_0 : i32, i32
  }
  func.func @transform_4(%arg0: i32) -> (i32, i32) {
    %c0_i32 = arith.constant 0 : i32
    %c0_i32_0 = arith.constant 0 : i32
    %c0_i32_1 = arith.constant 0 : i32
    return %c0_i32, %c0_i32_0 : i32, i32
  }
  func.func @transform_5(%arg0: i32) -> (i32, i32) {
    %c0_i32 = arith.constant 0 : i32
    %c0_i32_0 = arith.constant 0 : i32
    %c0_i32_1 = arith.constant 0 : i32
    return %c0_i32, %c0_i32_0 : i32, i32
  }
  func.func @transform_6(%arg0: i32) -> (i32, i32) {
    %c0_i32 = arith.constant 0 : i32
    %c0_i32_0 = arith.constant 0 : i32
    %c0_i32_1 = arith.constant 0 : i32
    return %c0_i32, %c0_i32_0 : i32, i32
  }
  func.func @transform_7(%arg0: i32) -> (i32, i32) {
    %c0_i32 = arith.constant 0 : i32
    %c0_i32_0 = arith.constant 0 : i32
    return %arg0, %c0_i32 : i32, i32
  }
}

</mosaic_0001>

<llo_original>
// kernel: standard_mlp_refinement.1
$region0: #{standard_mlp_refinement.1}
  #allocation0 [shape = 'u32[]', space=smem, size = 0x4, offset = 0x4, fixed_abs, tag = 'smem constant byte address 0x4 - core index']
  #allocation1 [shape = 'u32[144,128]{1,0:T(1,128)}', space=vmem, size = 0x12000, scoped, tag = 'internal scratch']
  %s0 = inlined_call_operand.hbm [shape: f32[256,128], index: 0, kind: input, shape index: {}]
  %s1 = inlined_call_operand.hbm [shape: bf16[128,512], index: 1, kind: input, shape index: {}]
  %s2 = inlined_call_operand.hbm [shape: f32[1,512], index: 2, kind: input, shape index: {}]
  %s3 = inlined_call_operand.hbm [shape: bf16[512,512], index: 3, kind: input, shape index: {}]
  %s4 = inlined_call_operand.hbm [shape: f32[1,512], index: 4, kind: input, shape index: {}]
  %s5 = inlined_call_operand.hbm [shape: bf16[512,128], index: 5, kind: input, shape index: {}]
  %s6 = inlined_call_operand.hbm [shape: f32[1,128], index: 6, kind: input, shape index: {}]
  %s7 = inlined_call_operand.hbm [shape: f32[256,128], index: 7, kind: output, shape index: {}]
  %s8 = sld [smem:[#allocation0]]
  $region66: #{standard_mlp_refinement.1} parent=0
    _
  %s10 = ssub.s32 1, %s8
  %s11 = scalar_select 0, %s10, %s8
  $region1: #{standard_mlp_refinement.1} parent=0
    #allocation2 [shape = 'u8[131072]{0}', space=vmem, size = 0x20000, scoped, tag = 'input window, operand 0, single buffered']
    #allocation3 [shape = 's32[1]{0}', space=sflag, size = 0x4, scoped, tag = 'scoped memory for standard_mlp_refinement.1']
    #allocation4 [shape = 's32[1]{0}', space=sflag, size = 0x4, scoped, tag = 'scoped memory for standard_mlp_refinement.1']
    #allocation5 [shape = 'u8[131072]{0}', space=vmem, size = 0x20000, scoped, tag = 'input window, operand 1, single buffered']
    #allocation6 [shape = 's32[1]{0}', space=sflag, size = 0x4, scoped, tag = 'scoped memory for standard_mlp_refinement.1']
    #allocation7 [shape = 'u8[2048]{0}', space=vmem, size = 0x800, scoped, tag = 'input window, operand 2, single buffered']
    #allocation8 [shape = 'u8[524288]{0}', space=vmem, size = 0x80000, scoped, tag = 'input window, operand 3, single buffered']
    #allocation9 [shape = 's32[1]{0}', space=sflag, size = 0x4, scoped, tag = 'scoped memory for standard_mlp_refinement.1']
    #allocation10 [shape = 'u8[2048]{0}', space=vmem, size = 0x800, scoped, tag = 'input window, operand 4, single buffered']
    #allocation11 [shape = 'u8[131072]{0}', space=vmem, size = 0x20000, scoped, tag = 'input window, operand 5, single buffered']
    #allocation12 [shape = 's32[1]{0}', space=sflag, size = 0x4, scoped, tag = 'scoped memory for standard_mlp_refinement.1']
    #allocation13 [shape = 'u8[512]{0}', space=vmem, size = 0x400, scoped, tag = 'input window, operand 6, single buffered']
    #allocation14 [shape = 'u8[131072]{0}', space=vmem, size = 0x20000, scoped, tag = 'output window, operand 0, single buffered']
    %12 = vsyncpa [#allocation3], 0
    %13 = vsyncpa [#allocation6], 0
    %14 = vsyncpa [#allocation9], 0
    %15 = vsyncpa [#allocation12], 0
    %16 = vsyncpa [#allocation4], 0
    // Predicated region
    $region2: #{standard_mlp_refinement.1} parent=1 // pred_check
      _
    $region3: #{standard_mlp_refinement.1} parent=1 // pred_check_branch
      %18 = sbr.rel (0) target = $region5
    $region4: #{standard_mlp_refinement.1} parent=1 // pred_region
      %s20 = ssub.s32 4096, 4096
      %21 = vsyncadd [#allocation3], %s20
      %s22 = sshll.u32 [#allocation2], 4
      %s23 = int_to_ptr.vmem [resolvable:$true] %s22
      %28 = dma.hbm_to_vmem [thread:$0]  %s0, 4096, %s23, [#allocation3], 128, 128, 8
    $region5: #{standard_mlp_refinement.1} parent=1 // pred_fallthru
      _
    // Predicated region
    $region6: #{standard_mlp_refinement.1} parent=1 // pred_check
      _
    $region7: #{standard_mlp_refinement.1} parent=1 // pred_check_branch
      %30 = sbr.rel (0) target = $region9
    $region8: #{standard_mlp_refinement.1} parent=1 // pred_region
      %s32 = ssub.s32 4096, 4096
      %33 = vsyncadd [#allocation6], %s32
      %s34 = sshll.u32 [#allocation5], 4
      %s35 = int_to_ptr.vmem [resolvable:$true] %s34
      %40 = dma.hbm_to_vmem [thread:$0]  %s1, 4096, %s35, [#allocation6], 256, 256, 16
    $region9: #{standard_mlp_refinement.1} parent=1 // pred_fallthru
      _
    // Predicated region
    $region10: #{standard_mlp_refinement.1} parent=1 // pred_check
      _
    $region11: #{standard_mlp_refinement.1} parent=1 // pred_check_branch
      %42 = sbr.rel (0) target = $region13
    $region12: #{standard_mlp_refinement.1} parent=1 // pred_region
      %s44 = ssub.s32 64, 64
      %45 = vsyncadd [#allocation6], %s44
      %s47 = sshll.u32 [#allocation7], 4
      %s48 = int_to_ptr.vmem [resolvable:$true] %s47
      %50 = dma.hbm_to_vmem [thread:$0]  %s2, 64, %s48, [#allocation6]
    $region13: #{standard_mlp_refinement.1} parent=1 // pred_fallthru
      _
    // Predicated region
    $region14: #{standard_mlp_refinement.1} parent=1 // pred_check
      _
    $region15: #{standard_mlp_refinement.1} parent=1 // pred_check_branch
      %52 = sbr.rel (0) target = $region17
    $region16: #{standard_mlp_refinement.1} parent=1 // pred_region
      %s54 = ssub.s32 16384, 16384
      %55 = vsyncadd [#allocation9], %s54
      %s56 = sshll.u32 [#allocation8], 4
      %s57 = int_to_ptr.vmem [resolvable:$true] %s56
      %62 = dma.hbm_to_vmem [thread:$0]  %s3, 16384, %s57, [#allocation9], 256, 256, 16
    $region17: #{standard_mlp_refinement.1} parent=1 // pred_fallthru
      _
    // Predicated region
    $region18: #{standard_mlp_refinement.1} parent=1 // pred_check
      _
    $region19: #{standard_mlp_refinement.1} parent=1 // pred_check_branch
      %64 = sbr.rel (0) target = $region21
    $region20: #{standard_mlp_refinement.1} parent=1 // pred_region
      %s66 = ssub.s32 64, 64
      %67 = vsyncadd [#allocation9], %s66
      %s69 = sshll.u32 [#allocation10], 4
      %s70 = int_to_ptr.vmem [resolvable:$true] %s69
      %72 = dma.hbm_to_vmem [thread:$0]  %s4, 64, %s70, [#allocation9]
    $region21: #{standard_mlp_refinement.1} parent=1 // pred_fallthru
      _
    // Predicated region
    $region22: #{standard_mlp_refinement.1} parent=1 // pred_check
      _
    $region23: #{standard_mlp_refinement.1} parent=1 // pred_check_branch
      %74 = sbr.rel (0) target = $region25
    $region24: #{standard_mlp_refinement.1} parent=1 // pred_region
      %s76 = ssub.s32 4096, 4096
      %77 = vsyncadd [#allocation12], %s76
      %s78 = sshll.u32 [#allocation11], 4
      %s79 = int_to_ptr.vmem [resolvable:$true] %s78
      %84 = dma.hbm_to_vmem [thread:$0]  %s5, 4096, %s79, [#allocation12], 64, 64, 4
    $region25: #{standard_mlp_refinement.1} parent=1 // pred_fallthru
      _
    // Predicated region
    $region26: #{standard_mlp_refinement.1} parent=1 // pred_check
      _
    $region27: #{standard_mlp_refinement.1} parent=1 // pred_check_branch
      %86 = sbr.rel (0) target = $region29
    $region28: #{standard_mlp_refinement.1} parent=1 // pred_region
      %s88 = ssub.s32 16, 16
      %89 = vsyncadd [#allocation12], %s88
      %s91 = sshll.u32 [#allocation13], 4
      %s92 = int_to_ptr.vmem [resolvable:$true] %s91
      %94 = dma.hbm_to_vmem [thread:$0]  %s6, 16, %s92, [#allocation12]
    $region29: #{standard_mlp_refinement.1} parent=1 // pred_fallthru
      _
    // Predicated region
    $region30: #{standard_mlp_refinement.1} parent=1 // pred_check
      _
    $region31: #{standard_mlp_refinement.1} parent=1 // pred_check_branch
      %96 = sbr.rel (0) target = $region33
    $region32: #{standard_mlp_refinement.1} parent=1 // pred_region
      %97 = dma.done [#allocation3], 4096
    $region33: #{standard_mlp_refinement.1} parent=1 // pred_fallthru
      _
    // Predicated region
    $region34: #{standard_mlp_refinement.1} parent=1 // pred_check
      _
    $region35: #{standard_mlp_refinement.1} parent=1 // pred_check_branch
      %99 = sbr.rel (0) target = $region37
    $region36: #{standard_mlp_refinement.1} parent=1 // pred_region
      %100 = dma.done [#allocation6], 4096
    $region37: #{standard_mlp_refinement.1} parent=1 // pred_fallthru
      _
    // Predicated region
    $region38: #{standard_mlp_refinement.1} parent=1 // pred_check
      _
    $region39: #{standard_mlp_refinement.1} parent=1 // pred_check_branch
      %102 = sbr.rel (0) target = $region41
    $region40: #{standard_mlp_refinement.1} parent=1 // pred_region
      %103 = dma.done [#allocation6], 64
    $region41: #{standard_mlp_refinement.1} parent=1 // pred_fallthru
      _
    // Predicated region
    $region42: #{standard_mlp_refinement.1} parent=1 // pred_check
      _
    $region43: #{standard_mlp_refinement.1} parent=1 // pred_check_branch
      %105 = sbr.rel (0) target = $region45
    $region44: #{standard_mlp_refinement.1} parent=1 // pred_region
      %106 = dma.done [#allocation9], 16384
    $region45: #{standard_mlp_refinement.1} parent=1 // pred_fallthru
      _
    // Predicated region
    $region46: #{standard_mlp_refinement.1} parent=1 // pred_check
      _
    $region47: #{standard_mlp_refinement.1} parent=1 // pred_check_branch
      %108 = sbr.rel (0) target = $region49
    $region48: #{standard_mlp_refinement.1} parent=1 // pred_region
      %109 = dma.done [#allocation9], 64
    $region49: #{standard_mlp_refinement.1} parent=1 // pred_fallthru
      _
    // Predicated region
    $region50: #{standard_mlp_refinement.1} parent=1 // pred_check
      _
    $region51: #{standard_mlp_refinement.1} parent=1 // pred_check_branch
      %111 = sbr.rel (0) target = $region53
    $region52: #{standard_mlp_refinement.1} parent=1 // pred_region
      %112 = dma.done [#allocation12], 4096
    $region53: #{standard_mlp_refinement.1} parent=1 // pred_fallthru
      _
    // Predicated region
    $region54: #{standard_mlp_refinement.1} parent=1 // pred_check
      _
    $region55: #{standard_mlp_refinement.1} parent=1 // pred_check_branch
      %114 = sbr.rel (0) target = $region57
    $region56: #{standard_mlp_refinement.1} parent=1 // pred_region
      %115 = dma.done [#allocation12], 16
    $region57: #{standard_mlp_refinement.1} parent=1 // pred_fallthru
      _
    %v117 = vld [vmem:[#allocation2] sm:$0xff]
    %v118 = vld [vmem:[#allocation2 + $0x8] sm:$0xff]
    %v119 = vld [vmem:[#allocation2 + $0x10] sm:$0xff]
    %v120 = vld [vmem:[#allocation2 + $0x18] sm:$0xff]
    %v121 = vld [vmem:[#allocation2 + $0x20] sm:$0xff]
    %v122 = vld [vmem:[#allocation2 + $0x28] sm:$0xff]
    %v123 = vld [vmem:[#allocation2 + $0x30] sm:$0xff]
    %v124 = vld [vmem:[#allocation2 + $0x38] sm:$0xff]
    %v125 = vld [vmem:[#allocation2 + $0x40] sm:$0xff]
    %v126 = vld [vmem:[#allocation2 + $0x48] sm:$0xff]
    %v127 = vld [vmem:[#allocation2 + $0x50] sm:$0xff]
    %v128 = vld [vmem:[#allocation2 + $0x58] sm:$0xff]
    %v129 = vld [vmem:[#allocation2 + $0x60] sm:$0xff]
    %v130 = vld [vmem:[#allocation2 + $0x68] sm:$0xff]
    %v131 = vld [vmem:[#allocation2 + $0x70] sm:$0xff]
    %v132 = vld [vmem:[#allocation2 + $0x78] sm:$0xff]
    %v133 = vld [vmem:[#allocation2 + $0x80] sm:$0xff]
    %v134 = vld [vmem:[#allocation2 + $0x88] sm:$0xff]
    %v135 = vld [vmem:[#allocation2 + $0x90] sm:$0xff]
    %v136 = vld [vmem:[#allocation2 + $0x98] sm:$0xff]
    %v137 = vld [vmem:[#allocation2 + $0xa0] sm:$0xff]
    %v138 = vld [vmem:[#allocation2 + $0xa8] sm:$0xff]
    %v139 = vld [vmem:[#allocation2 + $0xb0] sm:$0xff]
    %v140 = vld [vmem:[#allocation2 + $0xb8] sm:$0xff]
    %v141 = vld [vmem:[#allocation2 + $0xc0] sm:$0xff]
    %v142 = vld [vmem:[#allocation2 + $0xc8] sm:$0xff]
    %v143 = vld [vmem:[#allocation2 + $0xd0] sm:$0xff]
    %v144 = vld [vmem:[#allocation2 + $0xd8] sm:$0xff]
    %v145 = vld [vmem:[#allocation2 + $0xe0] sm:$0xff]
    %v146 = vld [vmem:[#allocation2 + $0xe8] sm:$0xff]
    %v147 = vld [vmem:[#allocation2 + $0xf0] sm:$0xff]
    %v148 = vld [vmem:[#allocation2 + $0xf8] sm:$0xff]
    %v149 = vpack.c.bf16 %v118, %v117
    %v150 = vpack.c.bf16 %v120, %v119
    %v151 = vpack.c.bf16 %v122, %v121
    %v152 = vpack.c.bf16 %v124, %v123
    %v153 = vpack.c.bf16 %v126, %v125
    %v154 = vpack.c.bf16 %v128, %v127
    %v155 = vpack.c.bf16 %v130, %v129
    %v156 = vpack.c.bf16 %v132, %v131
    %v157 = vpack.c.bf16 %v134, %v133
    %v158 = vpack.c.bf16 %v136, %v135
    %v159 = vpack.c.bf16 %v138, %v137
    %v160 = vpack.c.bf16 %v140, %v139
    %v161 = vpack.c.bf16 %v142, %v141
    %v162 = vpack.c.bf16 %v144, %v143
    %v163 = vpack.c.bf16 %v146, %v145
    %v164 = vpack.c.bf16 %v148, %v147
    %v165 = vld [vmem:[#allocation5] sm:$0xff]
    %v166 = vld [vmem:[#allocation5 + $0x8] sm:$0xff]
    %v167 = vld [vmem:[#allocation5 + $0x10] sm:$0xff]
    %v168 = vld [vmem:[#allocation5 + $0x18] sm:$0xff]
    %v169 = vld [vmem:[#allocation5 + $0x20] sm:$0xff]
    %v170 = vld [vmem:[#allocation5 + $0x28] sm:$0xff]
    %v171 = vld [vmem:[#allocation5 + $0x30] sm:$0xff]
    %v172 = vld [vmem:[#allocation5 + $0x38] sm:$0xff]
    %v173 = vld [vmem:[#allocation5 + $0x40] sm:$0xff]
    %v174 = vld [vmem:[#allocation5 + $0x48] sm:$0xff]
    %v175 = vld [vmem:[#allocation5 + $0x50] sm:$0xff]
    %v176 = vld [vmem:[#allocation5 + $0x58] sm:$0xff]
    %v177 = vld [vmem:[#allocation5 + $0x60] sm:$0xff]
    %v178 = vld [vmem:[#allocation5 + $0x68] sm:$0xff]
    %v179 = vld [vmem:[#allocation5 + $0x70] sm:$0xff]
    %v180 = vld [vmem:[#allocation5 + $0x78] sm:$0xff]
    %v181 = vld [vmem:[#allocation5 + $0x80] sm:$0xff]
    %v182 = vld [vmem:[#allocation5 + $0x88] sm:$0xff]
    %v183 = vld [vmem:[#allocation5 + $0x90] sm:$0xff]
    %v184 = vld [vmem:[#allocation5 + $0x98] sm:$0xff]
    %v185 = vld [vmem:[#allocation5 + $0xa0] sm:$0xff]
    %v186 = vld [vmem:[#allocation5 + $0xa8] sm:$0xff]
    %v187 = vld [vmem:[#allocation5 + $0xb0] sm:$0xff]
    %v188 = vld [vmem:[#allocation5 + $0xb8] sm:$0xff]
    %v189 = vld [vmem:[#allocation5 + $0xc0] sm:$0xff]
    %v190 = vld [vmem:[#allocation5 + $0xc8] sm:$0xff]
    %v191 = vld [vmem:[#allocation5 + $0xd0] sm:$0xff]
    %v192 = vld [vmem:[#allocation5 + $0xd8] sm:$0xff]
    %v193 = vld [vmem:[#allocation5 + $0xe0] sm:$0xff]
    %v194 = vld [vmem:[#allocation5 + $0xe8] sm:$0xff]
    %v195 = vld [vmem:[#allocation5 + $0xf0] sm:$0xff]
    %v196 = vld [vmem:[#allocation5 + $0xf8] sm:$0xff]
    %v197 = vld [vmem:[#allocation7] sm:$0xf]
    %v199 = vlaneseq
    %v200 = vshrl.u32 %v199, 7
    %v201 = vsub.s32 0, %v200
    %v202 = vrot.slane %v197, %v201
    %v203 = vlaneseq
    %v204 = vshrl.u32 %v203, 7
    %v205 = vsub.s32 1, %v204
    %v206 = vrot.slane %v197, %v205
    %v207 = vlaneseq
    %v208 = vshrl.u32 %v207, 7
    %v209 = vsub.s32 2, %v208
    %v210 = vrot.slane %v197, %v209
    %v211 = vlaneseq
    %v212 = vshrl.u32 %v211, 7
    %v213 = vsub.s32 3, %v212
    %v214 = vrot.slane %v197, %v213
    %v251 = vunpack.c.l.b16 %v165
    %v252 = vunpack.c.h.b16 %v165
    %v253 = vunpack.c.l.b16 %v166
    %v254 = vunpack.c.h.b16 %v166
    %v255 = vunpack.c.l.b16 %v167
    %v256 = vunpack.c.h.b16 %v167
    %v257 = vunpack.c.l.b16 %v168
    %v258 = vunpack.c.h.b16 %v168
    %v259 = vunpack.c.l.b16 %v169
    %v260 = vunpack.c.h.b16 %v169
    %v261 = vunpack.c.l.b16 %v170
    %v262 = vunpack.c.h.b16 %v170
    %v263 = vunpack.c.l.b16 %v171
    %v264 = vunpack.c.h.b16 %v171
    %v265 = vunpack.c.l.b16 %v172
    %v266 = vunpack.c.h.b16 %v172
    %v267 = vunpack.c.l.b16 %v173
    %v268 = vunpack.c.h.b16 %v173
    %v269 = vunpack.c.l.b16 %v174
    %v270 = vunpack.c.h.b16 %v174
    %v271 = vunpack.c.l.b16 %v175
    %v272 = vunpack.c.h.b16 %v175
    %v273 = vunpack.c.l.b16 %v176
    %v274 = vunpack.c.h.b16 %v176
    %v275 = vunpack.c.l.b16 %v177
    %v276 = vunpack.c.h.b16 %v177
    %v277 = vunpack.c.l.b16 %v178
    %v278 = vunpack.c.h.b16 %v178
    %v279 = vunpack.c.l.b16 %v179
    %v280 = vunpack.c.h.b16 %v179
    %v281 = vunpack.c.l.b16 %v180
    %v282 = vunpack.c.h.b16 %v180
    %v283 = vunpack.c.l.b16 %v181
    %v284 = vunpack.c.h.b16 %v181
    %v285 = vunpack.c.l.b16 %v182
    %v286 = vunpack.c.h.b16 %v182
    %v287 = vunpack.c.l.b16 %v183
    %v288 = vunpack.c.h.b16 %v183
    %v289 = vunpack.c.l.b16 %v184
    %v290 = vunpack.c.h.b16 %v184
    %v291 = vunpack.c.l.b16 %v185
    %v292 = vunpack.c.h.b16 %v185
    %v293 = vunpack.c.l.b16 %v186
    %v294 = vunpack.c.h.b16 %v186
    %v295 = vunpack.c.l.b16 %v187
    %v296 = vunpack.c.h.b16 %v187
    %v297 = vunpack.c.l.b16 %v188
    %v298 = vunpack.c.h.b16 %v188
    %v299 = vunpack.c.l.b16 %v189
    %v300 = vunpack.c.h.b16 %v189
    %v301 = vunpack.c.l.b16 %v190
    %v302 = vunpack.c.h.b16 %v190
    %v303 = vunpack.c.l.b16 %v191
    %v304 = vunpack.c.h.b16 %v191
    %v305 = vunpack.c.l.b16 %v192
    %v306 = vunpack.c.h.b16 %v192
    %v307 = vunpack.c.l.b16 %v193
    %v308 = vunpack.c.h.b16 %v193
    %v309 = vunpack.c.l.b16 %v194
    %v310 = vunpack.c.h.b16 %v194
    %v311 = vunpack.c.l.b16 %v195
    %v312 = vunpack.c.h.b16 %v195
    %v313 = vunpack.c.l.b16 %v196
    %v314 = vunpack.c.h.b16 %v196
    %v315 = vpack.c.b16 %v255, %v251
    %v316 = vpack.c.b16 %v256, %v252
    %v317 = vpack.c.b16 %v257, %v253
    %v318 = vpack.c.b16 %v258, %v254
    %v319 = vpack.c.b16 %v263, %v259
    %v320 = vpack.c.b16 %v264, %v260
    %v321 = vpack.c.b16 %v265, %v261
    %v322 = vpack.c.b16 %v266, %v262
    %v323 = vpack.c.b16 %v271, %v267
    %v324 = vpack.c.b16 %v272, %v268
    %v325 = vpack.c.b16 %v273, %v269
    %v326 = vpack.c.b16 %v274, %v270
    %v327 = vpack.c.b16 %v279, %v275
    %v328 = vpack.c.b16 %v280, %v276
    %v329 = vpack.c.b16 %v281, %v277
    %v330 = vpack.c.b16 %v282, %v278
    %v331 = vpack.c.b16 %v287, %v283
    %v332 = vpack.c.b16 %v288, %v284
    %v333 = vpack.c.b16 %v289, %v285
    %v334 = vpack.c.b16 %v290, %v286
    %v335 = vpack.c.b16 %v295, %v291
    %v336 = vpack.c.b16 %v296, %v292
    %v337 = vpack.c.b16 %v297, %v293
    %v338 = vpack.c.b16 %v298, %v294
    %v339 = vpack.c.b16 %v303, %v299
    %v340 = vpack.c.b16 %v304, %v300
    %v341 = vpack.c.b16 %v305, %v301
    %v342 = vpack.c.b16 %v306, %v302
    %v343 = vpack.c.b16 %v311, %v307
    %v344 = vpack.c.b16 %v312, %v308
    %v345 = vpack.c.b16 %v313, %v309
    %v346 = vpack.c.b16 %v314, %v310
    %379 = vmatprep.subr.bf16.mxu0 %v316
    %380 = vmatpush1.bf16.msra.mxu0 %v315
    %381 = vmatprep.subr.bf16.mxu0 %v320
    %382 = vmatpush1.bf16.msra.mxu0 %v319
    %383 = vmatprep.subr.bf16.mxu0 %v324
    %384 = vmatpush1.bf16.msra.mxu0 %v323
    %385 = vmatprep.subr.bf16.mxu0 %v328
    %386 = vmatpush1.bf16.msra.mxu0 %v327
    %387 = vmatprep.subr.bf16.mxu0 %v332
    %388 = vmatpush1.bf16.msra.mxu0 %v331
    %389 = vmatprep.subr.bf16.mxu0 %v336
    %390 = vmatpush1.bf16.msra.mxu0 %v335
    %391 = vmatprep.subr.bf16.mxu0 %v340
    %392 = vmatpush1.bf16.msra.mxu0 %v339
    %393 = vmatprep.subr.bf16.mxu0 %v344
    %394 = vmatpush1.bf16.msra.mxu0 %v343
    %395 = vmatprep.subr.bf16.mxu0 0
    %396 = vmatpush1.bf16.msra.mxu0 0
    %397 = vmatprep.subr.bf16.mxu0 0
    %398 = vmatpush1.bf16.msra.mxu0 0
    %399 = vmatprep.subr.bf16.mxu0 0
    %400 = vmatpush1.bf16.msra.mxu0 0
    %401 = vmatprep.subr.bf16.mxu0 0
    %402 = vmatpush1.bf16.msra.mxu0 0
    %403 = vmatprep.subr.bf16.mxu0 0
    %404 = vmatpush1.bf16.msra.mxu0 0
    %405 = vmatprep.subr.bf16.mxu0 0
    %406 = vmatpush1.bf16.msra.mxu0 0
    %407 = vmatprep.subr.bf16.mxu0 0
    %408 = vmatpush1.bf16.msra.mxu0 0
    %409 = vmatprep.subr.bf16.mxu0 0
    %410 = vmatpush1.bf16.msra.mxu0 0
    %411 = vmatprep.mubr.bf16.mxu0 0
    %412 = vmatmul.mubr.bf16.gmra.mrb[0].mxu0 %v149
    %v413 = vpop.f32.mrb[0].mxu0
    %v414 = vadd.f32 %v202, %v413
    %v415 = vpop.f32.mrb[0].mxu0
    %v416 = vadd.f32 %v206, %v415
    %v417 = vpop.f32.mrb[0].mxu0
    %v418 = vadd.f32 %v202, %v417
    %v419 = vpop.f32.mrb[0].mxu0
    %v420 = vadd.f32 %v206, %v419
    %421 = vmatprep.mubr.bf16.mxu0 0
    %422 = vmatmul.mubr.bf16.gmra.mrb[0].mxu0 %v150
    %v423 = vpop.f32.mrb[0].mxu0
    %v424 = vadd.f32 %v202, %v423
    %v425 = vpop.f32.mrb[0].mxu0
    %v426 = vadd.f32 %v206, %v425
    %v427 = vpop.f32.mrb[0].mxu0
    %v428 = vadd.f32 %v202, %v427
    %v429 = vpop.f32.mrb[0].mxu0
    %v430 = vadd.f32 %v206, %v429
    %431 = vmatprep.mubr.bf16.mxu0 0
    %432 = vmatmul.mubr.bf16.gmra.mrb[0].mxu0 %v151
    %v433 = vpop.f32.mrb[0].mxu0
    %v434 = vadd.f32 %v202, %v433
    %v435 = vpop.f32.mrb[0].mxu0
    %v436 = vadd.f32 %v206, %v435
    %v437 = vpop.f32.mrb[0].mxu0
    %v438 = vadd.f32 %v202, %v437
    %v439 = vpop.f32.mrb[0].mxu0
    %v440 = vadd.f32 %v206, %v439
    %441 = vmatprep.mubr.bf16.mxu0 0
    %442 = vmatmul.mubr.bf16.gmra.mrb[0].mxu0 %v152
    %v443 = vpop.f32.mrb[0].mxu0
    %v444 = vadd.f32 %v202, %v443
    %v445 = vpop.f32.mrb[0].mxu0
    %v446 = vadd.f32 %v206, %v445
    %v447 = vpop.f32.mrb[0].mxu0
    %v448 = vadd.f32 %v202, %v447
    %v449 = vpop.f32.mrb[0].mxu0
    %v450 = vadd.f32 %v206, %v449
    %451 = vmatprep.mubr.bf16.mxu0 0
    %452 = vmatmul.mubr.bf16.gmra.mrb[0].mxu0 %v153
    %v453 = vpop.f32.mrb[0].mxu0
    %v454 = vadd.f32 %v202, %v453
    %v455 = vpop.f32.mrb[0].mxu0
    %v456 = vadd.f32 %v206, %v455
    %v457 = vpop.f32.mrb[0].mxu0
    %v458 = vadd.f32 %v202, %v457
    %v459 = vpop.f32.mrb[0].mxu0
    %v460 = vadd.f32 %v206, %v459
    %461 = vmatprep.mubr.bf16.mxu0 0
    %462 = vmatmul.mubr.bf16.gmra.mrb[0].mxu0 %v154
    %v463 = vpop.f32.mrb[0].mxu0
    %v464 = vadd.f32 %v202, %v463
    %v465 = vpop.f32.mrb[0].mxu0
    %v466 = vadd.f32 %v206, %v465
    %v467 = vpop.f32.mrb[0].mxu0
    %v468 = vadd.f32 %v202, %v467
    %v469 = vpop.f32.mrb[0].mxu0
    %v470 = vadd.f32 %v206, %v469
    %471 = vmatprep.mubr.bf16.mxu0 0
    %472 = vmatmul.mubr.bf16.gmra.mrb[0].mxu0 %v155
    %v473 = vpop.f32.mrb[0].mxu0
    %v474 = vadd.f32 %v202, %v473
    %v475 = vpop.f32.mrb[0].mxu0
    %v476 = vadd.f32 %v206, %v475
    %v477 = vpop.f32.mrb[0].mxu0
    %v478 = vadd.f32 %v202, %v477
    %v479 = vpop.f32.mrb[0].mxu0
    %v480 = vadd.f32 %v206, %v479
    %481 = vmatprep.mubr.bf16.mxu0 0
    %482 = vmatmul.mubr.bf16.gmra.mrb[0].mxu0 %v156
    %v483 = vpop.f32.mrb[0].mxu0
    %v484 = vadd.f32 %v202, %v483
    %v485 = vpop.f32.mrb[0].mxu0
    %v486 = vadd.f32 %v206, %v485
    %v487 = vpop.f32.mrb[0].mxu0
    %v488 = vadd.f32 %v202, %v487
    %v489 = vpop.f32.mrb[0].mxu0
    %v490 = vadd.f32 %v206, %v489
    %491 = vmatprep.mubr.bf16.mxu0 0
    %492 = vmatmul.mubr.bf16.gmra.mrb[0].mxu0 %v157
    %v493 = vpop.f32.mrb[0].mxu0
    %v494 = vadd.f32 %v202, %v493
    %v495 = vpop.f32.mrb[0].mxu0
    %v496 = vadd.f32 %v206, %v495
    %v497 = vpop.f32.mrb[0].mxu0
    %v498 = vadd.f32 %v202, %v497
    %v499 = vpop.f32.mrb[0].mxu0
    %v500 = vadd.f32 %v206, %v499
    %501 = vmatprep.mubr.bf16.mxu0 0
    %502 = vmatmul.mubr.bf16.gmra.mrb[0].mxu0 %v158
    %v503 = vpop.f32.mrb[0].mxu0
    %v504 = vadd.f32 %v202, %v503
    %v505 = vpop.f32.mrb[0].mxu0
    %v506 = vadd.f32 %v206, %v505
    %v507 = vpop.f32.mrb[0].mxu0
    %v508 = vadd.f32 %v202, %v507
    %v509 = vpop.f32.mrb[0].mxu0
    %v510 = vadd.f32 %v206, %v509
    %511 = vmatprep.mubr.bf16.mxu0 0
    %512 = vmatmul.mubr.bf16.gmra.mrb[0].mxu0 %v159
    %v513 = vpop.f32.mrb[0].mxu0
    %v514 = vadd.f32 %v202, %v513
    %v515 = vpop.f32.mrb[0].mxu0
    %v516 = vadd.f32 %v206, %v515
    %v517 = vpop.f32.mrb[0].mxu0
    %v518 = vadd.f32 %v202, %v517
    %v519 = vpop.f32.mrb[0].mxu0
    %v520 = vadd.f32 %v206, %v519
    %521 = vmatprep.mubr.bf16.mxu0 0
    %522 = vmatmul.mubr.bf16.gmra.mrb[0].mxu0 %v160
    %v523 = vpop.f32.mrb[0].mxu0
    %v524 = vadd.f32 %v202, %v523
    %v525 = vpop.f32.mrb[0].mxu0
    %v526 = vadd.f32 %v206, %v525
    %v527 = vpop.f32.mrb[0].mxu0
    %v528 = vadd.f32 %v202, %v527
    %v529 = vpop.f32.mrb[0].mxu0
    %v530 = vadd.f32 %v206, %v529
    %531 = vmatprep.mubr.bf16.mxu0 0
    %532 = vmatmul.mubr.bf16.gmra.mrb[0].mxu0 %v161
    %v533 = vpop.f32.mrb[0].mxu0
    %v534 = vadd.f32 %v202, %v533
    %v535 = vpop.f32.mrb[0].mxu0
    %v536 = vadd.f32 %v206, %v535
    %v537 = vpop.f32.mrb[0].mxu0
    %v538 = vadd.f32 %v202, %v537
    %v539 = vpop.f32.mrb[0].mxu0
    %v540 = vadd.f32 %v206, %v539
    %541 = vmatprep.mubr.bf16.mxu0 0
    %542 = vmatmul.mubr.bf16.gmra.mrb[0].mxu0 %v162
    %v543 = vpop.f32.mrb[0].mxu0
    %v544 = vadd.f32 %v202, %v543
    %v545 = vpop.f32.mrb[0].mxu0
    %v546 = vadd.f32 %v206, %v545
    %v547 = vpop.f32.mrb[0].mxu0
    %v548 = vadd.f32 %v202, %v547
    %v549 = vpop.f32.mrb[0].mxu0
    %v550 = vadd.f32 %v206, %v549
    %551 = vmatprep.mubr.bf16.mxu0 0
    %552 = vmatmul.mubr.bf16.gmra.mrb[0].mxu0 %v163
    %v553 = vpop.f32.mrb[0].mxu0
    %v554 = vadd.f32 %v202, %v553
    %v555 = vpop.f32.mrb[0].mxu0
    %v556 = vadd.f32 %v206, %v555
    %v557 = vpop.f32.mrb[0].mxu0
    %v558 = vadd.f32 %v202, %v557
    %v559 = vpop.f32.mrb[0].mxu0
    %v560 = vadd.f32 %v206, %v559
    %561 = vmatprep.mubr.bf16.mxu0 0
    %562 = vmatmul.mubr.bf16.gmra.mrb[0].mxu0 %v164
    %v563 = vpop.f32.mrb[0].mxu0
    %v564 = vadd.f32 %v202, %v563
    %v565 = vpop.f32.mrb[0].mxu0
    %v566 = vadd.f32 %v206, %v565
    %v567 = vpop.f32.mrb[0].mxu0
    %v568 = vadd.f32 %v202, %v567
    %v569 = vpop.f32.mrb[0].mxu0
    %v570 = vadd.f32 %v206, %v569
    %571 = vdwg.mxu0
    %572 = vmatprep.subr.bf16.mxu0 %v318
    %573 = vmatpush1.bf16.msra.mxu0 %v317
    %574 = vmatprep.subr.bf16.mxu0 %v322
    %575 = vmatpush1.bf16.msra.mxu0 %v321
    %576 = vmatprep.subr.bf16.mxu0 %v326
    %577 = vmatpush1.bf16.msra.mxu0 %v325
    %578 = vmatprep.subr.bf16.mxu0 %v330
    %579 = vmatpush1.bf16.msra.mxu0 %v329
    %580 = vmatprep.subr.bf16.mxu0 %v334
    %581 = vmatpush1.bf16.msra.mxu0 %v333
    %582 = vmatprep.subr.bf16.mxu0 %v338
    %583 = vmatpush1.bf16.msra.mxu0 %v337
    %584 = vmatprep.subr.bf16.mxu0 %v342
    %585 = vmatpush1.bf16.msra.mxu0 %v341
    %586 = vmatprep.subr.bf16.mxu0 %v346
    %587 = vmatpush1.bf16.msra.mxu0 %v345
    %588 = vmatprep.subr.bf16.mxu0 0
    %589 = vmatpush1.bf16.msra.mxu0 0
    %590 = vmatprep.subr.bf16.mxu0 0
    %591 = vmatpush1.bf16.msra.mxu0 0
    %592 = vmatprep.subr.bf16.mxu0 0
    %593 = vmatpush1.bf16.msra.mxu0 0
    %594 = vmatprep.subr.bf16.mxu0 0
    %595 = vmatpush1.bf16.msra.mxu0 0
    %596 = vmatprep.subr.bf16.mxu0 0
    %597 = vmatpush1.bf16.msra.mxu0 0
    %598 = vmatprep.subr.bf16.mxu0 0
    %599 = vmatpush1.bf16.msra.mxu0 0
    %600 = vmatprep.subr.bf16.mxu0 0
    %601 = vmatpush1.bf16.msra.mxu0 0
    %602 = vmatprep.subr.bf16.mxu0 0
    %603 = vmatpush1.bf16.msra.mxu0 0
    %604 = vmatprep.mubr.bf16.mxu0 0
    %605 = vmatmul.mubr.bf16.gmra.mrb[0].mxu0 %v149
    %v606 = vpop.f32.mrb[0].mxu0
    %v607 = vadd.f32 %v210, %v606
    %v608 = vpop.f32.mrb[0].mxu0
    %v609 = vadd.f32 %v214, %v608
    %v610 = vpop.f32.mrb[0].mxu0
    %v611 = vadd.f32 %v210, %v610
    %v612 = vpop.f32.mrb[0].mxu0
    %v613 = vadd.f32 %v214, %v612
    %614 = vmatprep.mubr.bf16.mxu0 0
    %615 = vmatmul.mubr.bf16.gmra.mrb[0].mxu0 %v150
    %v616 = vpop.f32.mrb[0].mxu0
    %v617 = vadd.f32 %v210, %v616
    %v618 = vpop.f32.mrb[0].mxu0
    %v619 = vadd.f32 %v214, %v618
    %v620 = vpop.f32.mrb[0].mxu0
    %v621 = vadd.f32 %v210, %v620
    %v622 = vpop.f32.mrb[0].mxu0
    %v623 = vadd.f32 %v214, %v622
    %624 = vmatprep.mubr.bf16.mxu0 0
    %625 = vmatmul.mubr.bf16.gmra.mrb[0].mxu0 %v151
    %v626 = vpop.f32.mrb[0].mxu0
    %v627 = vadd.f32 %v210, %v626
    %v628 = vpop.f32.mrb[0].mxu0
    %v629 = vadd.f32 %v214, %v628
    %v630 = vpop.f32.mrb[0].mxu0
    %v631 = vadd.f32 %v210, %v630
    %v632 = vpop.f32.mrb[0].mxu0
    %v633 = vadd.f32 %v214, %v632
    %634 = vmatprep.mubr.bf16.mxu0 0
    %635 = vmatmul.mubr.bf16.gmra.mrb[0].mxu0 %v152
    %v636 = vpop.f32.mrb[0].mxu0
    %v637 = vadd.f32 %v210, %v636
    %v638 = vpop.f32.mrb[0].mxu0
    %v639 = vadd.f32 %v214, %v638
    %v640 = vpop.f32.mrb[0].mxu0
    %v641 = vadd.f32 %v210, %v640
    %v642 = vpop.f32.mrb[0].mxu0
    %v643 = vadd.f32 %v214, %v642
    %644 = vmatprep.mubr.bf16.mxu0 0
    %645 = vmatmul.mubr.bf16.gmra.mrb[0].mxu0 %v153
    %v646 = vpop.f32.mrb[0].mxu0
    %v647 = vadd.f32 %v210, %v646
    %v648 = vpop.f32.mrb[0].mxu0
    %v649 = vadd.f32 %v214, %v648
    %v650 = vpop.f32.mrb[0].mxu0
    %v651 = vadd.f32 %v210, %v650
    %v652 = vpop.f32.mrb[0].mxu0
    %v653 = vadd.f32 %v214, %v652
    %654 = vmatprep.mubr.bf16.mxu0 0
    %655 = vmatmul.mubr.bf16.gmra.mrb[0].mxu0 %v154
    %v656 = vpop.f32.mrb[0].mxu0
    %v657 = vadd.f32 %v210, %v656
    %v658 = vpop.f32.mrb[0].mxu0
    %v659 = vadd.f32 %v214, %v658
    %v660 = vpop.f32.mrb[0].mxu0
    %v661 = vadd.f32 %v210, %v660
    %v662 = vpop.f32.mrb[0].mxu0
    %v663 = vadd.f32 %v214, %v662
    %664 = vmatprep.mubr.bf16.mxu0 0
    %665 = vmatmul.mubr.bf16.gmra.mrb[0].mxu0 %v155
    %v666 = vpop.f32.mrb[0].mxu0
    %v667 = vadd.f32 %v210, %v666
    %v668 = vpop.f32.mrb[0].mxu0
    %v669 = vadd.f32 %v214, %v668
    %v670 = vpop.f32.mrb[0].mxu0
    %v671 = vadd.f32 %v210, %v670
    %v672 = vpop.f32.mrb[0].mxu0
    %v673 = vadd.f32 %v214, %v672
    %674 = vmatprep.mubr.bf16.mxu0 0
    %675 = vmatmul.mubr.bf16.gmra.mrb[0].mxu0 %v156
    %v676 = vpop.f32.mrb[0].mxu0
    %v677 = vadd.f32 %v210, %v676
    %v678 = vpop.f32.mrb[0].mxu0
    %v679 = vadd.f32 %v214, %v678
    %v680 = vpop.f32.mrb[0].mxu0
    %v681 = vadd.f32 %v210, %v680
    %v682 = vpop.f32.mrb[0].mxu0
    %v683 = vadd.f32 %v214, %v682
    %684 = vmatprep.mubr.bf16.mxu0 0
    %685 = vmatmul.mubr.bf16.gmra.mrb[0].mxu0 %v157
    %v686 = vpop.f32.mrb[0].mxu0
    %v687 = vadd.f32 %v210, %v686
    %v688 = vpop.f32.mrb[0].mxu0
    %v689 = vadd.f32 %v214, %v688
    %v690 = vpop.f32.mrb[0].mxu0
    %v691 = vadd.f32 %v210, %v690
    %v692 = vpop.f32.mrb[0].mxu0
    %v693 = vadd.f32 %v214, %v692
    %694 = vmatprep.mubr.bf16.mxu0 0
    %695 = vmatmul.mubr.bf16.gmra.mrb[0].mxu0 %v158
    %v696 = vpop.f32.mrb[0].mxu0
    %v697 = vadd.f32 %v210, %v696
    %v698 = vpop.f32.mrb[0].mxu0
    %v699 = vadd.f32 %v214, %v698
    %v700 = vpop.f32.mrb[0].mxu0
    %v701 = vadd.f32 %v210, %v700
    %v702 = vpop.f32.mrb[0].mxu0
    %v703 = vadd.f32 %v214, %v702
    %704 = vmatprep.mubr.bf16.mxu0 0
    %705 = vmatmul.mubr.bf16.gmra.mrb[0].mxu0 %v159
    %v706 = vpop.f32.mrb[0].mxu0
    %v707 = vadd.f32 %v210, %v706
    %v708 = vpop.f32.mrb[0].mxu0
    %v709 = vadd.f32 %v214, %v708
    %v710 = vpop.f32.mrb[0].mxu0
    %v711 = vadd.f32 %v210, %v710
    %v712 = vpop.f32.mrb[0].mxu0
    %v713 = vadd.f32 %v214, %v712
    %714 = vmatprep.mubr.bf16.mxu0 0
    %715 = vmatmul.mubr.bf16.gmra.mrb[0].mxu0 %v160
    %v716 = vpop.f32.mrb[0].mxu0
    %v717 = vadd.f32 %v210, %v716
    %v718 = vpop.f32.mrb[0].mxu0
    %v719 = vadd.f32 %v214, %v718
    %v720 = vpop.f32.mrb[0].mxu0
    %v721 = vadd.f32 %v210, %v720
    %v722 = vpop.f32.mrb[0].mxu0
    %v723 = vadd.f32 %v214, %v722
    %724 = vmatprep.mubr.bf16.mxu0 0
    %725 = vmatmul.mubr.bf16.gmra.mrb[0].mxu0 %v161
    %v726 = vpop.f32.mrb[0].mxu0
    %v727 = vadd.f32 %v210, %v726
    %v728 = vpop.f32.mrb[0].mxu0
    %v729 = vadd.f32 %v214, %v728
    %v730 = vpop.f32.mrb[0].mxu0
    %v731 = vadd.f32 %v210, %v730
    %v732 = vpop.f32.mrb[0].mxu0
    %v733 = vadd.f32 %v214, %v732
    %734 = vmatprep.mubr.bf16.mxu0 0
    %735 = vmatmul.mubr.bf16.gmra.mrb[0].mxu0 %v162
    %v736 = vpop.f32.mrb[0].mxu0
    %v737 = vadd.f32 %v210, %v736
    %v738 = vpop.f32.mrb[0].mxu0
    %v739 = vadd.f32 %v214, %v738
    %v740 = vpop.f32.mrb[0].mxu0
    %v741 = vadd.f32 %v210, %v740
    %v742 = vpop.f32.mrb[0].mxu0
    %v743 = vadd.f32 %v214, %v742
    %744 = vmatprep.mubr.bf16.mxu0 0
    %745 = vmatmul.mubr.bf16.gmra.mrb[0].mxu0 %v163
    %v746 = vpop.f32.mrb[0].mxu0
    %v747 = vadd.f32 %v210, %v746
    %v748 = vpop.f32.mrb[0].mxu0
    %v749 = vadd.f32 %v214, %v748
    %v750 = vpop.f32.mrb[0].mxu0
    %v751 = vadd.f32 %v210, %v750
    %v752 = vpop.f32.mrb[0].mxu0
    %v753 = vadd.f32 %v214, %v752
    %754 = vmatprep.mubr.bf16.mxu0 0
    %755 = vmatmul.mubr.bf16.gmra.mrb[0].mxu0 %v164
    %v756 = vpop.f32.mrb[0].mxu0
    %v757 = vadd.f32 %v210, %v756
    %v758 = vpop.f32.mrb[0].mxu0
    %v759 = vadd.f32 %v214, %v758
    %v760 = vpop.f32.mrb[0].mxu0
    %v761 = vadd.f32 %v210, %v760
    %v762 = vpop.f32.mrb[0].mxu0
    %v763 = vadd.f32 %v214, %v762
    %764 = vdwg.mxu0
    %v765 = vmax.f32 %v414, 0.0
    %v766 = vmax.f32 %v416, 0.0
    %v767 = vmax.f32 %v607, 0.0
    %v768 = vmax.f32 %v609, 0.0
    %v769 = vmax.f32 %v418, 0.0
    %v770 = vmax.f32 %v420, 0.0
    %v771 = vmax.f32 %v611, 0.0
    %v772 = vmax.f32 %v613, 0.0
    %v773 = vmax.f32 %v424, 0.0
    %v774 = vmax.f32 %v426, 0.0
    %v775 = vmax.f32 %v617, 0.0
    %v776 = vmax.f32 %v619, 0.0
    %v777 = vmax.f32 %v428, 0.0
    %v778 = vmax.f32 %v430, 0.0
    %v779 = vmax.f32 %v621, 0.0
    %v780 = vmax.f32 %v623, 0.0
    %v781 = vmax.f32 %v434, 0.0
    %v782 = vmax.f32 %v436, 0.0
    %v783 = vmax.f32 %v627, 0.0
    %v784 = vmax.f32 %v629, 0.0
    %v785 = vmax.f32 %v438, 0.0
    %v786 = vmax.f32 %v440, 0.0
    %v787 = vmax.f32 %v631, 0.0
    %v788 = vmax.f32 %v633, 0.0
    %v789 = vmax.f32 %v444, 0.0
    %v790 = vmax.f32 %v446, 0.0
    %v791 = vmax.f32 %v637, 0.0
    %v792 = vmax.f32 %v639, 0.0
    %v793 = vmax.f32 %v448, 0.0
    %v794 = vmax.f32 %v450, 0.0
    %v795 = vmax.f32 %v641, 0.0
    %v796 = vmax.f32 %v643, 0.0
    %v797 = vmax.f32 %v454, 0.0
    %v798 = vmax.f32 %v456, 0.0
    %v799 = vmax.f32 %v647, 0.0
    %v800 = vmax.f32 %v649, 0.0
    %v801 = vmax.f32 %v458, 0.0
    %v802 = vmax.f32 %v460, 0.0
    %v803 = vmax.f32 %v651, 0.0
    %v804 = vmax.f32 %v653, 0.0
    %v805 = vmax.f32 %v464, 0.0
    %v806 = vmax.f32 %v466, 0.0
    %v807 = vmax.f32 %v657, 0.0
    %v808 = vmax.f32 %v659, 0.0
    %v809 = vmax.f32 %v468, 0.0
    %v810 = vmax.f32 %v470, 0.0
    %v811 = vmax.f32 %v661, 0.0
    %v812 = vmax.f32 %v663, 0.0
    %v813 = vmax.f32 %v474, 0.0
    %v814 = vmax.f32 %v476, 0.0
    %v815 = vmax.f32 %v667, 0.0
    %v816 = vmax.f32 %v669, 0.0
    %v817 = vmax.f32 %v478, 0.0
    %v818 = vmax.f32 %v480, 0.0
    %v819 = vmax.f32 %v671, 0.0
    %v820 = vmax.f32 %v673, 0.0
    %v821 = vmax.f32 %v484, 0.0
    %v822 = vmax.f32 %v486, 0.0
    %v823 = vmax.f32 %v677, 0.0
    %v824 = vmax.f32 %v679, 0.0
    %v825 = vmax.f32 %v488, 0.0
    %v826 = vmax.f32 %v490, 0.0
    %v827 = vmax.f32 %v681, 0.0
    %v828 = vmax.f32 %v683, 0.0
    %v829 = vmax.f32 %v494, 0.0
    %v830 = vmax.f32 %v496, 0.0
    %v831 = vmax.f32 %v687, 0.0
    %v832 = vmax.f32 %v689, 0.0
    %v833 = vmax.f32 %v498, 0.0
    %v834 = vmax.f32 %v500, 0.0
    %v835 = vmax.f32 %v691, 0.0
    %v836 = vmax.f32 %v693, 0.0
    %v837 = vmax.f32 %v504, 0.0
    %v838 = vmax.f32 %v506, 0.0
    %v839 = vmax.f32 %v697, 0.0
    %v840 = vmax.f32 %v699, 0.0
    %v841 = vmax.f32 %v508, 0.0
    %v842 = vmax.f32 %v510, 0.0
    %v843 = vmax.f32 %v701, 0.0
    %v844 = vmax.f32 %v703, 0.0
    %v845 = vmax.f32 %v514, 0.0
    %v846 = vmax.f32 %v516, 0.0
    %v847 = vmax.f32 %v707, 0.0
    %v848 = vmax.f32 %v709, 0.0
    %v849 = vmax.f32 %v518, 0.0
    %v850 = vmax.f32 %v520, 0.0
    %v851 = vmax.f32 %v711, 0.0
    %v852 = vmax.f32 %v713, 0.0
    %v853 = vmax.f32 %v524, 0.0
    %v854 = vmax.f32 %v526, 0.0
    %v855 = vmax.f32 %v717, 0.0
    %v856 = vmax.f32 %v719, 0.0
    %v857 = vmax.f32 %v528, 0.0
    %v858 = vmax.f32 %v530, 0.0
    %v859 = vmax.f32 %v721, 0.0
    %v860 = vmax.f32 %v723, 0.0
    %v861 = vmax.f32 %v534, 0.0
    %v862 = vmax.f32 %v536, 0.0
    %v863 = vmax.f32 %v727, 0.0
    %v864 = vmax.f32 %v729, 0.0
    %v865 = vmax.f32 %v538, 0.0
    %v866 = vmax.f32 %v540, 0.0
    %v867 = vmax.f32 %v731, 0.0
    %v868 = vmax.f32 %v733, 0.0
    %v869 = vmax.f32 %v544, 0.0
    %v870 = vmax.f32 %v546, 0.0
    %v871 = vmax.f32 %v737, 0.0
    %v872 = vmax.f32 %v739, 0.0
    %v873 = vmax.f32 %v548, 0.0
    %v874 = vmax.f32 %v550, 0.0
    %v875 = vmax.f32 %v741, 0.0
    %v876 = vmax.f32 %v743, 0.0
    %v877 = vmax.f32 %v554, 0.0
    %v878 = vmax.f32 %v556, 0.0
    %v879 = vmax.f32 %v747, 0.0
    %v880 = vmax.f32 %v749, 0.0
    %v881 = vmax.f32 %v558, 0.0
    %v882 = vmax.f32 %v560, 0.0
    %v883 = vmax.f32 %v751, 0.0
    %v884 = vmax.f32 %v753, 0.0
    %v885 = vmax.f32 %v564, 0.0
    %v886 = vmax.f32 %v566, 0.0
    %v887 = vmax.f32 %v757, 0.0
    %v888 = vmax.f32 %v759, 0.0
    %v889 = vmax.f32 %v568, 0.0
    %v890 = vmax.f32 %v570, 0.0
    %v891 = vmax.f32 %v761, 0.0
    %v892 = vmax.f32 %v763, 0.0
    %v893 = vpack.c.bf16 %v769, %v765
    %v894 = vpack.c.bf16 %v770, %v766
    %v895 = vpack.c.bf16 %v771, %v767
    %v896 = vpack.c.bf16 %v772, %v768
    %v897 = vpack.c.bf16 %v777, %v773
    %v898 = vpack.c.bf16 %v778, %v774
    %v899 = vpack.c.bf16 %v779, %v775
    %v900 = vpack.c.bf16 %v780, %v776
    %v901 = vpack.c.bf16 %v785, %v781
    %v902 = vpack.c.bf16 %v786, %v782
    %v903 = vpack.c.bf16 %v787, %v783
    %v904 = vpack.c.bf16 %v788, %v784
    %v905 = vpack.c.bf16 %v793, %v789
    %v906 = vpack.c.bf16 %v794, %v790
    %v907 = vpack.c.bf16 %v795, %v791
    %v908 = vpack.c.bf16 %v796, %v792
    %v909 = vpack.c.bf16 %v801, %v797
    %v910 = vpack.c.bf16 %v802, %v798
    %v911 = vpack.c.bf16 %v803, %v799
    %v912 = vpack.c.bf16 %v804, %v800
    %v913 = vpack.c.bf16 %v809, %v805
    %v914 = vpack.c.bf16 %v810, %v806
    %v915 = vpack.c.bf16 %v811, %v807
    %v916 = vpack.c.bf16 %v812, %v808
    %v917 = vpack.c.bf16 %v817, %v813
    %v918 = vpack.c.bf16 %v818, %v814
    %v919 = vpack.c.bf16 %v819, %v815
    %v920 = vpack.c.bf16 %v820, %v816
    %v921 = vpack.c.bf16 %v825, %v821
    %v922 = vpack.c.bf16 %v826, %v822
    %v923 = vpack.c.bf16 %v827, %v823
    %v924 = vpack.c.bf16 %v828, %v824
    %v925 = vpack.c.bf16 %v833, %v829
    %v926 = vpack.c.bf16 %v834, %v830
    %v927 = vpack.c.bf16 %v835, %v831
    %v928 = vpack.c.bf16 %v836, %v832
    %v929 = vpack.c.bf16 %v841, %v837
    %v930 = vpack.c.bf16 %v842, %v838
    %v931 = vpack.c.bf16 %v843, %v839
    %v932 = vpack.c.bf16 %v844, %v840
    %v933 = vpack.c.bf16 %v849, %v845
    %v934 = vpack.c.bf16 %v850, %v846
    %v935 = vpack.c.bf16 %v851, %v847
    %v936 = vpack.c.bf16 %v852, %v848
    %v937 = vpack.c.bf16 %v857, %v853
    %v938 = vpack.c.bf16 %v858, %v854
    %v939 = vpack.c.bf16 %v859, %v855
    %v940 = vpack.c.bf16 %v860, %v856
    %v941 = vpack.c.bf16 %v865, %v861
    %v942 = vpack.c.bf16 %v866, %v862
    %v943 = vpack.c.bf16 %v867, %v863
    %v944 = vpack.c.bf16 %v868, %v864
    %v945 = vpack.c.bf16 %v873, %v869
    %v946 = vpack.c.bf16 %v874, %v870
    %v947 = vpack.c.bf16 %v875, %v871
    %v948 = vpack.c.bf16 %v876, %v872
    %v949 = vpack.c.bf16 %v881, %v877
    %v950 = vpack.c.bf16 %v882, %v878
    %v951 = vpack.c.bf16 %v883, %v879
    %v952 = vpack.c.bf16 %v884, %v880
    %v953 = vpack.c.bf16 %v889, %v885
    %v954 = vpack.c.bf16 %v890, %v886
    %v955 = vpack.c.bf16 %v891, %v887
    %v956 = vpack.c.bf16 %v892, %v888
    %v957 = vld [vmem:[#allocation8] sm:$0xff]
    %v958 = vld [vmem:[#allocation8 + $0x8] sm:$0xff]
    %v959 = vld [vmem:[#allocation8 + $0x10] sm:$0xff]
    %v960 = vld [vmem:[#allocation8 + $0x18] sm:$0xff]
    %v961 = vld [vmem:[#allocation8 + $0x20] sm:$0xff]
    %v962 = vld [vmem:[#allocation8 + $0x28] sm:$0xff]
    %v963 = vld [vmem:[#allocation8 + $0x30] sm:$0xff]
    %v964 = vld [vmem:[#allocation8 + $0x38] sm:$0xff]
    %v965 = vld [vmem:[#allocation8 + $0x40] sm:$0xff]
    %v966 = vld [vmem:[#allocation8 + $0x48] sm:$0xff]
    %v967 = vld [vmem:[#allocation8 + $0x50] sm:$0xff]
    %v968 = vld [vmem:[#allocation8 + $0x58] sm:$0xff]
    %v969 = vld [vmem:[#allocation8 + $0x60] sm:$0xff]
    %v970 = vld [vmem:[#allocation8 + $0x68] sm:$0xff]
    %v971 = vld [vmem:[#allocation8 + $0x70] sm:$0xff]
    %v972 = vld [vmem:[#allocation8 + $0x78] sm:$0xff]
    %v973 = vld [vmem:[#allocation8 + $0x80] sm:$0xff]
    %v974 = vld [vmem:[#allocation8 + $0x88] sm:$0xff]
    %v975 = vld [vmem:[#allocation8 + $0x90] sm:$0xff]
    %v976 = vld [vmem:[#allocation8 + $0x98] sm:$0xff]
    %v977 = vld [vmem:[#allocation8 + $0xa0] sm:$0xff]
    %v978 = vld [vmem:[#allocation8 + $0xa8] sm:$0xff]
    %v979 = vld [vmem:[#allocation8 + $0xb0] sm:$0xff]
    %v980 = vld [vmem:[#allocation8 + $0xb8] sm:$0xff]
    %v981 = vld [vmem:[#allocation8 + $0xc0] sm:$0xff]
    %v982 = vld [vmem:[#allocation8 + $0xc8] sm:$0xff]
    %v983 = vld [vmem:[#allocation8 + $0xd0] sm:$0xff]
    %v984 = vld [vmem:[#allocation8 + $0xd8] sm:$0xff]
    %v985 = vld [vmem:[#allocation8 + $0xe0] sm:$0xff]
    %v986 = vld [vmem:[#allocation8 + $0xe8] sm:$0xff]
    %v987 = vld [vmem:[#allocation8 + $0xf0] sm:$0xff]
    %v988 = vld [vmem:[#allocation8 + $0xf8] sm:$0xff]
    %v989 = vld [vmem:[#allocation8 + $0x100] sm:$0xff]
    %v990 = vld [vmem:[#allocation8 + $0x108] sm:$0xff]
    %v991 = vld [vmem:[#allocation8 + $0x110] sm:$0xff]
    %v992 = vld [vmem:[#allocation8 + $0x118] sm:$0xff]
    %v993 = vld [vmem:[#allocation8 + $0x120] sm:$0xff]
    %v994 = vld [vmem:[#allocation8 + $0x128] sm:$0xff]
    %v995 = vld [vmem:[#allocation8 + $0x130] sm:$0xff]
    %v996 = vld [vmem:[#allocation8 + $0x138] sm:$0xff]
    %v997 = vld [vmem:[#allocation8 + $0x140] sm:$0xff]
    %v998 = vld [vmem:[#allocation8 + $0x148] sm:$0xff]
    %v999 = vld [vmem:[#allocation8 + $0x150] sm:$0xff]
    %v1000 = vld [vmem:[#allocation8 + $0x158] sm:$0xff]
    %v1001 = vld [vmem:[#allocation8 + $0x160] sm:$0xff]
    %v1002 = vld [vmem:[#allocation8 + $0x168] sm:$0xff]
    %v1003 = vld [vmem:[#allocation8 + $0x170] sm:$0xff]
    %v1004 = vld [vmem:[#allocation8 + $0x178] sm:$0xff]
    %v1005 = vld [vmem:[#allocation8 + $0x180] sm:$0xff]
    %v1006 = vld [vmem:[#allocation8 + $0x188] sm:$0xff]
    %v1007 = vld [vmem:[#allocation8 + $0x190] sm:$0xff]
    %v1008 = vld [vmem:[#allocation8 + $0x198] sm:$0xff]
    %v1009 = vld [vmem:[#allocation8 + $0x1a0] sm:$0xff]
    %v1010 = vld [vmem:[#allocation8 + $0x1a8] sm:$0xff]
    %v1011 = vld [vmem:[#allocation8 + $0x1b0] sm:$0xff]
    %v1012 = vld [vmem:[#allocation8 + $0x1b8] sm:$0xff]
    %v1013 = vld [vmem:[#allocation8 + $0x1c0] sm:$0xff]
    %v1014 = vld [vmem:[#allocation8 + $0x1c8] sm:$0xff]
    %v1015 = vld [vmem:[#allocation8 + $0x1d0] sm:$0xff]
    %v1016 = vld [vmem:[#allocation8 + $0x1d8] sm:$0xff]
    %v1017 = vld [vmem:[#allocation8 + $0x1e0] sm:$0xff]
    %v1018 = vld [vmem:[#allocation8 + $0x1e8] sm:$0xff]
    %v1019 = vld [vmem:[#allocation8 + $0x1f0] sm:$0xff]
    %v1020 = vld [vmem:[#allocation8 + $0x1f8] sm:$0xff]
    %v1021 = vld [vmem:[#allocation8 + $0x200] sm:$0xff]
    %v1022 = vld [vmem:[#allocation8 + $0x208] sm:$0xff]
    %v1023 = vld [vmem:[#allocation8 + $0x210] sm:$0xff]
    %v1024 = vld [vmem:[#allocation8 + $0x218] sm:$0xff]
    %v1025 = vld [vmem:[#allocation8 + $0x220] sm:$0xff]
    %v1026 = vld [vmem:[#allocation8 + $0x228] sm:$0xff]
    %v1027 = vld [vmem:[#allocation8 + $0x230] sm:$0xff]
    %v1028 = vld [vmem:[#allocation8 + $0x238] sm:$0xff]
    %v1029 = vld [vmem:[#allocation8 + $0x240] sm:$0xff]
    %v1030 = vld [vmem:[#allocation8 + $0x248] sm:$0xff]
    %v1031 = vld [vmem:[#allocation8 + $0x250] sm:$0xff]
    %v1032 = vld [vmem:[#allocation8 + $0x258] sm:$0xff]
    %v1033 = vld [vmem:[#allocation8 + $0x260] sm:$0xff]
    %v1034 = vld [vmem:[#allocation8 + $0x268] sm:$0xff]
    %v1035 = vld [vmem:[#allocation8 + $0x270] sm:$0xff]
    %v1036 = vld [vmem:[#allocation8 + $0x278] sm:$0xff]
    %v1037 = vld [vmem:[#allocation8 + $0x280] sm:$0xff]
    %v1038 = vld [vmem:[#allocation8 + $0x288] sm:$0xff]
    %v1039 = vld [vmem:[#allocation8 + $0x290] sm:$0xff]
    %v1040 = vld [vmem:[#allocation8 + $0x298] sm:$0xff]
    %v1041 = vld [vmem:[#allocation8 + $0x2a0] sm:$0xff]
    %v1042 = vld [vmem:[#allocation8 + $0x2a8] sm:$0xff]
    %v1043 = vld [vmem:[#allocation8 + $0x2b0] sm:$0xff]
    %v1044 = vld [vmem:[#allocation8 + $0x2b8] sm:$0xff]
    %v1045 = vld [vmem:[#allocation8 + $0x2c0] sm:$0xff]
    %v1046 = vld [vmem:[#allocation8 + $0x2c8] sm:$0xff]
    %v1047 = vld [vmem:[#allocation8 + $0x2d0] sm:$0xff]
    %v1048 = vld [vmem:[#allocation8 + $0x2d8] sm:$0xff]
    %v1049 = vld [vmem:[#allocation8 + $0x2e0] sm:$0xff]
    %v1050 = vld [vmem:[#allocation8 + $0x2e8] sm:$0xff]
    %v1051 = vld [vmem:[#allocation8 + $0x2f0] sm:$0xff]
    %v1052 = vld [vmem:[#allocation8 + $0x2f8] sm:$0xff]
    %v1053 = vld [vmem:[#allocation8 + $0x300] sm:$0xff]
    %v1054 = vld [vmem:[#allocation8 + $0x308] sm:$0xff]
    %v1055 = vld [vmem:[#allocation8 + $0x310] sm:$0xff]
    %v1056 = vld [vmem:[#allocation8 + $0x318] sm:$0xff]
    %v1057 = vld [vmem:[#allocation8 + $0x320] sm:$0xff]
    %v1058 = vld [vmem:[#allocation8 + $0x328] sm:$0xff]
    %v1059 = vld [vmem:[#allocation8 + $0x330] sm:$0xff]
    %v1060 = vld [vmem:[#allocation8 + $0x338] sm:$0xff]
    %v1061 = vld [vmem:[#allocation8 + $0x340] sm:$0xff]
    %v1062 = vld [vmem:[#allocation8 + $0x348] sm:$0xff]
    %v1063 = vld [vmem:[#allocation8 + $0x350] sm:$0xff]
    %v1064 = vld [vmem:[#allocation8 + $0x358] sm:$0xff]
    %v1065 = vld [vmem:[#allocation8 + $0x360] sm:$0xff]
    %v1066 = vld [vmem:[#allocation8 + $0x368] sm:$0xff]
    %v1067 = vld [vmem:[#allocation8 + $0x370] sm:$0xff]
    %v1068 = vld [vmem:[#allocation8 + $0x378] sm:$0xff]
    %v1069 = vld [vmem:[#allocation8 + $0x380] sm:$0xff]
    %v1070 = vld [vmem:[#allocation8 + $0x388] sm:$0xff]
    %v1071 = vld [vmem:[#allocation8 + $0x390] sm:$0xff]
    %v1072 = vld [vmem:[#allocation8 + $0x398] sm:$0xff]
    %v1073 = vld [vmem:[#allocation8 + $0x3a0] sm:$0xff]
    %v1074 = vld [vmem:[#allocation8 + $0x3a8] sm:$0xff]
    %v1075 = vld [vmem:[#allocation8 + $0x3b0] sm:$0xff]
    %v1076 = vld [vmem:[#allocation8 + $0x3b8] sm:$0xff]
    %v1077 = vld [vmem:[#allocation8 + $0x3c0] sm:$0xff]
    %v1078 = vld [vmem:[#allocation8 + $0x3c8] sm:$0xff]
    %v1079 = vld [vmem:[#allocation8 + $0x3d0] sm:$0xff]
    %v1080 = vld [vmem:[#allocation8 + $0x3d8] sm:$0xff]
    %v1081 = vld [vmem:[#allocation8 + $0x3e0] sm:$0xff]
    %v1082 = vld [vmem:[#allocation8 + $0x3e8] sm:$0xff]
    %v1083 = vld [vmem:[#allocation8 + $0x3f0] sm:$0xff]
    %v1084 = vld [vmem:[#allocation8 + $0x3f8] sm:$0xff]
    %v1085 = vld [vmem:[#allocation10] sm:$0xf]
    %v1087 = vlaneseq
    %v1088 = vshrl.u32 %v1087, 7
    %v1089 = vsub.s32 0, %v1088
    %v1090 = vrot.slane %v1085, %v1089
    %v1091 = vlaneseq
    %v1092 = vshrl.u32 %v1091, 7
    %v1093 = vsub.s32 1, %v1092
    %v1094 = vrot.slane %v1085, %v1093
    %v1095 = vlaneseq
    %v1096 = vshrl.u32 %v1095, 7
    %v1097 = vsub.s32 2, %v1096
    %v1098 = vrot.slane %v1085, %v1097
    %v1099 = vlaneseq
    %v1100 = vshrl.u32 %v1099, 7
    %v1101 = vsub.s32 3, %v1100
    %v1102 = vrot.slane %v1085, %v1101
    %v1235 = vunpack.c.l.b16 %v957
    %v1236 = vunpack.c.h.b16 %v957
    %v1237 = vunpack.c.l.b16 %v958
    %v1238 = vunpack.c.h.b16 %v958
    %v1239 = vunpack.c.l.b16 %v959
    %v1240 = vunpack.c.h.b16 %v959
    %v1241 = vunpack.c.l.b16 %v960
    %v1242 = vunpack.c.h.b16 %v960
    %v1243 = vunpack.c.l.b16 %v961
    %v1244 = vunpack.c.h.b16 %v961
    %v1245 = vunpack.c.l.b16 %v962
    %v1246 = vunpack.c.h.b16 %v962
    %v1247 = vunpack.c.l.b16 %v963
    %v1248 = vunpack.c.h.b16 %v963
    %v1249 = vunpack.c.l.b16 %v964
    %v1250 = vunpack.c.h.b16 %v964
    %v1251 = vunpack.c.l.b16 %v965
    %v1252 = vunpack.c.h.b16 %v965
    %v1253 = vunpack.c.l.b16 %v966
    %v1254 = vunpack.c.h.b16 %v966
    %v1255 = vunpack.c.l.b16 %v967
    %v1256 = vunpack.c.h.b16 %v967
    %v1257 = vunpack.c.l.b16 %v968
    %v1258 = vunpack.c.h.b16 %v968
    %v1259 = vunpack.c.l.b16 %v969
    %v1260 = vunpack.c.h.b16 %v969
    %v1261 = vunpack.c.l.b16 %v970
    %v1262 = vunpack.c.h.b16 %v970
    %v1263 = vunpack.c.l.b16 %v971
    %v1264 = vunpack.c.h.b16 %v971
    %v1265 = vunpack.c.l.b16 %v972
    %v1266 = vunpack.c.h.b16 %v972
    %v1267 = vunpack.c.l.b16 %v973
    %v1268 = vunpack.c.h.b16 %v973
    %v1269 = vunpack.c.l.b16 %v974
    %v1270 = vunpack.c.h.b16 %v974
    %v1271 = vunpack.c.l.b16 %v975
    %v1272 = vunpack.c.h.b16 %v975
    %v1273 = vunpack.c.l.b16 %v976
    %v1274 = vunpack.c.h.b16 %v976
    %v1275 = vunpack.c.l.b16 %v977
    %v1276 = vunpack.c.h.b16 %v977
    %v1277 = vunpack.c.l.b16 %v978
    %v1278 = vunpack.c.h.b16 %v978
    %v1279 = vunpack.c.l.b16 %v979
    %v1280 = vunpack.c.h.b16 %v979
    %v1281 = vunpack.c.l.b16 %v980
    %v1282 = vunpack.c.h.b16 %v980
    %v1283 = vunpack.c.l.b16 %v981
    %v1284 = vunpack.c.h.b16 %v981
    %v1285 = vunpack.c.l.b16 %v982
    %v1286 = vunpack.c.h.b16 %v982
    %v1287 = vunpack.c.l.b16 %v983
    %v1288 = vunpack.c.h.b16 %v983
    %v1289 = vunpack.c.l.b16 %v984
    %v1290 = vunpack.c.h.b16 %v984
    %v1291 = vunpack.c.l.b16 %v985
    %v1292 = vunpack.c.h.b16 %v985
    %v1293 = vunpack.c.l.b16 %v986
    %v1294 = vunpack.c.h.b16 %v986
    %v1295 = vunpack.c.l.b16 %v987
    %v1296 = vunpack.c.h.b16 %v987
    %v1297 = vunpack.c.l.b16 %v988
    %v1298 = vunpack.c.h.b16 %v988
    %v1299 = vunpack.c.l.b16 %v989
    %v1300 = vunpack.c.h.b16 %v989
    %v1301 = vunpack.c.l.b16 %v990
    %v1302 = vunpack.c.h.b16 %v990
    %v1303 = vunpack.c.l.b16 %v991
    %v1304 = vunpack.c.h.b16 %v991
    %v1305 = vunpack.c.l.b16 %v992
    %v1306 = vunpack.c.h.b16 %v992
    %v1307 = vunpack.c.l.b16 %v993
    %v1308 = vunpack.c.h.b16 %v993
    %v1309 = vunpack.c.l.b16 %v994
    %v1310 = vunpack.c.h.b16 %v994
    %v1311 = vunpack.c.l.b16 %v995
    %v1312 = vunpack.c.h.b16 %v995
    %v1313 = vunpack.c.l.b16 %v996
    %v1314 = vunpack.c.h.b16 %v996
    %v1315 = vunpack.c.l.b16 %v997
    %v1316 = vunpack.c.h.b16 %v997
    %v1317 = vunpack.c.l.b16 %v998
    %v1318 = vunpack.c.h.b16 %v998
    %v1319 = vunpack.c.l.b16 %v999
    %v1320 = vunpack.c.h.b16 %v999
    %v1321 = vunpack.c.l.b16 %v1000
    %v1322 = vunpack.c.h.b16 %v1000
    %v1323 = vunpack.c.l.b16 %v1001
    %v1324 = vunpack.c.h.b16 %v1001
    %v1325 = vunpack.c.l.b16 %v1002
    %v1326 = vunpack.c.h.b16 %v1002
    %v1327 = vunpack.c.l.b16 %v1003
    %v1328 = vunpack.c.h.b16 %v1003
    %v1329 = vunpack.c.l.b16 %v1004
    %v1330 = vunpack.c.h.b16 %v1004
    %v1331 = vunpack.c.l.b16 %v1005
    %v1332 = vunpack.c.h.b16 %v1005
    %v1333 = vunpack.c.l.b16 %v1006
    %v1334 = vunpack.c.h.b16 %v1006
    %v1335 = vunpack.c.l.b16 %v1007
    %v1336 = vunpack.c.h.b16 %v1007
    %v1337 = vunpack.c.l.b16 %v1008
    %v1338 = vunpack.c.h.b16 %v1008
    %v1339 = vunpack.c.l.b16 %v1009
    %v1340 = vunpack.c.h.b16 %v1009
    %v1341 = vunpack.c.l.b16 %v1010
    %v1342 = vunpack.c.h.b16 %v1010
    %v1343 = vunpack.c.l.b16 %v1011
    %v1344 = vunpack.c.h.b16 %v1011
    %v1345 = vunpack.c.l.b16 %v1012
    %v1346 = vunpack.c.h.b16 %v1012
    %v1347 = vunpack.c.l.b16 %v1013
    %v1348 = vunpack.c.h.b16 %v1013
    %v1349 = vunpack.c.l.b16 %v1014
    %v1350 = vunpack.c.h.b16 %v1014
    %v1351 = vunpack.c.l.b16 %v1015
    %v1352 = vunpack.c.h.b16 %v1015
    %v1353 = vunpack.c.l.b16 %v1016
    %v1354 = vunpack.c.h.b16 %v1016
    %v1355 = vunpack.c.l.b16 %v1017
    %v1356 = vunpack.c.h.b16 %v1017
    %v1357 = vunpack.c.l.b16 %v1018
    %v1358 = vunpack.c.h.b16 %v1018
    %v1359 = vunpack.c.l.b16 %v1019
    %v1360 = vunpack.c.h.b16 %v1019
    %v1361 = vunpack.c.l.b16 %v1020
    %v1362 = vunpack.c.h.b16 %v1020
    %v1363 = vunpack.c.l.b16 %v1021
    %v1364 = vunpack.c.h.b16 %v1021
    %v1365 = vunpack.c.l.b16 %v1022
    %v1366 = vunpack.c.h.b16 %v1022
    %v1367 = vunpack.c.l.b16 %v1023
    %v1368 = vunpack.c.h.b16 %v1023
    %v1369 = vunpack.c.l.b16 %v1024
    %v1370 = vunpack.c.h.b16 %v1024
    %v1371 = vunpack.c.l.b16 %v1025
    %v1372 = vunpack.c.h.b16 %v1025
    %v1373 = vunpack.c.l.b16 %v1026
    %v1374 = vunpack.c.h.b16 %v1026
    %v1375 = vunpack.c.l.b16 %v1027
    %v1376 = vunpack.c.h.b16 %v1027
    %v1377 = vunpack.c.l.b16 %v1028
    %v1378 = vunpack.c.h.b16 %v1028
    %v1379 = vunpack.c.l.b16 %v1029
    %v1380 = vunpack.c.h.b16 %v1029
    %v1381 = vunpack.c.l.b16 %v1030
    %v1382 = vunpack.c.h.b16 %v1030
    %v1383 = vunpack.c.l.b16 %v1031
    %v1384 = vunpack.c.h.b16 %v1031
    %v1385 = vunpack.c.l.b16 %v1032
    %v1386 = vunpack.c.h.b16 %v1032
    %v1387 = vunpack.c.l.b16 %v1033
    %v1388 = vunpack.c.h.b16 %v1033
    %v1389 = vunpack.c.l.b16 %v1034
    %v1390 = vunpack.c.h.b16 %v1034
    %v1391 = vunpack.c.l.b16 %v1035
    %v1392 = vunpack.c.h.b16 %v1035
    %v1393 = vunpack.c.l.b16 %v1036
    %v1394 = vunpack.c.h.b16 %v1036
    %v1395 = vunpack.c.l.b16 %v1037
    %v1396 = vunpack.c.h.b16 %v1037
    %v1397 = vunpack.c.l.b16 %v1038
    %v1398 = vunpack.c.h.b16 %v1038
    %v1399 = vunpack.c.l.b16 %v1039
    %v1400 = vunpack.c.h.b16 %v1039
    %v1401 = vunpack.c.l.b16 %v1040
    %v1402 = vunpack.c.h.b16 %v1040
    %v1403 = vunpack.c.l.b16 %v1041
    %v1404 = vunpack.c.h.b16 %v1041
    %v1405 = vunpack.c.l.b16 %v1042
    %v1406 = vunpack.c.h.b16 %v1042
    %v1407 = vunpack.c.l.b16 %v1043
    %v1408 = vunpack.c.h.b16 %v1043
    %v1409 = vunpack.c.l.b16 %v1044
    %v1410 = vunpack.c.h.b16 %v1044
    %v1411 = vunpack.c.l.b16 %v1045
    %v1412 = vunpack.c.h.b16 %v1045
    %v1413 = vunpack.c.l.b16 %v1046
    %v1414 = vunpack.c.h.b16 %v1046
    %v1415 = vunpack.c.l.b16 %v1047
    %v1416 = vunpack.c.h.b16 %v1047
    %v1417 = vunpack.c.l.b16 %v1048
    %v1418 = vunpack.c.h.b16 %v1048
    %v1419 = vunpack.c.l.b16 %v1049
    %v1420 = vunpack.c.h.b16 %v1049
    %v1421 = vunpack.c.l.b16 %v1050
    %v1422 = vunpack.c.h.b16 %v1050
    %v1423 = vunpack.c.l.b16 %v1051
    %v1424 = vunpack.c.h.b16 %v1051
    %v1425 = vunpack.c.l.b16 %v1052
    %v1426 = vunpack.c.h.b16 %v1052
    %v1427 = vunpack.c.l.b16 %v1053
    %v1428 = vunpack.c.h.b16 %v1053
    %v1429 = vunpack.c.l.b16 %v1054
    %v1430 = vunpack.c.h.b16 %v1054
    %v1431 = vunpack.c.l.b16 %v1055
    %v1432 = vunpack.c.h.b16 %v1055
    %v1433 = vunpack.c.l.b16 %v1056
    %v1434 = vunpack.c.h.b16 %v1056
    %v1435 = vunpack.c.l.b16 %v1057
    %v1436 = vunpack.c.h.b16 %v1057
    %v1437 = vunpack.c.l.b16 %v1058
    %v1438 = vunpack.c.h.b16 %v1058
    %v1439 = vunpack.c.l.b16 %v1059
    %v1440 = vunpack.c.h.b16 %v1059
    %v1441 = vunpack.c.l.b16 %v1060
    %v1442 = vunpack.c.h.b16 %v1060
    %v1443 = vunpack.c.l.b16 %v1061
    %v1444 = vunpack.c.h.b16 %v1061
    %v1445 = vunpack.c.l.b16 %v1062
    %v1446 = vunpack.c.h.b16 %v1062
    %v1447 = vunpack.c.l.b16 %v1063
    %v1448 = vunpack.c.h.b16 %v1063
    %v1449 = vunpack.c.l.b16 %v1064
    %v1450 = vunpack.c.h.b16 %v1064
    %v1451 = vunpack.c.l.b16 %v1065
    %v1452 = vunpack.c.h.b16 %v1065
    %v1453 = vunpack.c.l.b16 %v1066
    %v1454 = vunpack.c.h.b16 %v1066
    %v1455 = vunpack.c.l.b16 %v1067
    %v1456 = vunpack.c.h.b16 %v1067
    %v1457 = vunpack.c.l.b16 %v1068
    %v1458 = vunpack.c.h.b16 %v1068
    %v1459 = vunpack.c.l.b16 %v1069
    %v1460 = vunpack.c.h.b16 %v1069
    %v1461 = vunpack.c.l.b16 %v1070
    %v1462 = vunpack.c.h.b16 %v1070
    %v1463 = vunpack.c.l.b16 %v1071
    %v1464 = vunpack.c.h.b16 %v1071
    %v1465 = vunpack.c.l.b16 %v1072
    %v1466 = vunpack.c.h.b16 %v1072
    %v1467 = vunpack.c.l.b16 %v1073
    %v1468 = vunpack.c.h.b16 %v1073
    %v1469 = vunpack.c.l.b16 %v1074
    %v1470 = vunpack.c.h.b16 %v1074
    %v1471 = vunpack.c.l.b16 %v1075
    %v1472 = vunpack.c.h.b16 %v1075
    %v1473 = vunpack.c.l.b16 %v1076
    %v1474 = vunpack.c.h.b16 %v1076
    %v1475 = vunpack.c.l.b16 %v1077
    %v1476 = vunpack.c.h.b16 %v1077
    %v1477 = vunpack.c.l.b16 %v1078
    %v1478 = vunpack.c.h.b16 %v1078
    %v1479 = vunpack.c.l.b16 %v1079
    %v1480 = vunpack.c.h.b16 %v1079
    %v1481 = vunpack.c.l.b16 %v1080
    %v1482 = vunpack.c.h.b16 %v1080
    %v1483 = vunpack.c.l.b16 %v1081
    %v1484 = vunpack.c.h.b16 %v1081
    %v1485 = vunpack.c.l.b16 %v1082
    %v1486 = vunpack.c.h.b16 %v1082
    %v1487 = vunpack.c.l.b16 %v1083
    %v1488 = vunpack.c.h.b16 %v1083
    %v1489 = vunpack.c.l.b16 %v1084
    %v1490 = vunpack.c.h.b16 %v1084
    %v1491 = vpack.c.b16 %v1239, %v1235
    %v1492 = vpack.c.b16 %v1240, %v1236
    %v1493 = vpack.c.b16 %v1241, %v1237
    %v1494 = vpack.c.b16 %v1242, %v1238
    %v1495 = vpack.c.b16 %v1247, %v1243
    %v1496 = vpack.c.b16 %v1248, %v1244
    %v1497 = vpack.c.b16 %v1249, %v1245
    %v1498 = vpack.c.b16 %v1250, %v1246
    %v1499 = vpack.c.b16 %v1255, %v1251
    %v1500 = vpack.c.b16 %v1256, %v1252
    %v1501 = vpack.c.b16 %v1257, %v1253
    %v1502 = vpack.c.b16 %v1258, %v1254
    %v1503 = vpack.c.b16 %v1263, %v1259
    %v1504 = vpack.c.b16 %v1264, %v1260
    %v1505 = vpack.c.b16 %v1265, %v1261
    %v1506 = vpack.c.b16 %v1266, %v1262
    %v1507 = vpack.c.b16 %v1271, %v1267
    %v1508 = vpack.c.b16 %v1272, %v1268
    %v1509 = vpack.c.b16 %v1273, %v1269
    %v1510 = vpack.c.b16 %v1274, %v1270
    %v1511 = vpack.c.b16 %v1279, %v1275
    %v1512 = vpack.c.b16 %v1280, %v1276
    %v1513 = vpack.c.b16 %v1281, %v1277
    %v1514 = vpack.c.b16 %v1282, %v1278
    %v1515 = vpack.c.b16 %v1287, %v1283
    %v1516 = vpack.c.b16 %v1288, %v1284
    %v1517 = vpack.c.b16 %v1289, %v1285
    %v1518 = vpack.c.b16 %v1290, %v1286
    %v1519 = vpack.c.b16 %v1295, %v1291
    %v1520 = vpack.c.b16 %v1296, %v1292
    %v1521 = vpack.c.b16 %v1297, %v1293
    %v1522 = vpack.c.b16 %v1298, %v1294
    %v1523 = vpack.c.b16 %v1303, %v1299
    %v1524 = vpack.c.b16 %v1304, %v1300
    %v1525 = vpack.c.b16 %v1305, %v1301
    %v1526 = vpack.c.b16 %v1306, %v1302
    %v1527 = vpack.c.b16 %v1311, %v1307
    %v1528 = vpack.c.b16 %v1312, %v1308
    %v1529 = vpack.c.b16 %v1313, %v1309
    %v1530 = vpack.c.b16 %v1314, %v1310
    %v1531 = vpack.c.b16 %v1319, %v1315
    %v1532 = vpack.c.b16 %v1320, %v1316
    %v1533 = vpack.c.b16 %v1321, %v1317
    %v1534 = vpack.c.b16 %v1322, %v1318
    %v1535 = vpack.c.b16 %v1327, %v1323
    %v1536 = vpack.c.b16 %v1328, %v1324
    %v1537 = vpack.c.b16 %v1329, %v1325
    %v1538 = vpack.c.b16 %v1330, %v1326
    %v1539 = vpack.c.b16 %v1335, %v1331
    %v1540 = vpack.c.b16 %v1336, %v1332
    %v1541 = vpack.c.b16 %v1337, %v1333
    %v1542 = vpack.c.b16 %v1338, %v1334
    %v1543 = vpack.c.b16 %v1343, %v1339
    %v1544 = vpack.c.b16 %v1344, %v1340
    %v1545 = vpack.c.b16 %v1345, %v1341
    %v1546 = vpack.c.b16 %v1346, %v1342
    %v1547 = vpack.c.b16 %v1351, %v1347
    %v1548 = vpack.c.b16 %v1352, %v1348
    %v1549 = vpack.c.b16 %v1353, %v1349
    %v1550 = vpack.c.b16 %v1354, %v1350
    %v1551 = vpack.c.b16 %v1359, %v1355
    %v1552 = vpack.c.b16 %v1360, %v1356
    %v1553 = vpack.c.b16 %v1361, %v1357
    %v1554 = vpack.c.b16 %v1362, %v1358
    %v1555 = vpack.c.b16 %v1367, %v1363
    %v1556 = vpack.c.b16 %v1368, %v1364
    %v1557 = vpack.c.b16 %v1369, %v1365
    %v1558 = vpack.c.b16 %v1370, %v1366
    %v1559 = vpack.c.b16 %v1375, %v1371
    %v1560 = vpack.c.b16 %v1376, %v1372
    %v1561 = vpack.c.b16 %v1377, %v1373
    %v1562 = vpack.c.b16 %v1378, %v1374
    %v1563 = vpack.c.b16 %v1383, %v1379
    %v1564 = vpack.c.b16 %v1384, %v1380
    %v1565 = vpack.c.b16 %v1385, %v1381
    %v1566 = vpack.c.b16 %v1386, %v1382
    %v1567 = vpack.c.b16 %v1391, %v1387
    %v1568 = vpack.c.b16 %v1392, %v1388
    %v1569 = vpack.c.b16 %v1393, %v1389
    %v1570 = vpack.c.b16 %v1394, %v1390
    %v1571 = vpack.c.b16 %v1399, %v1395
    %v1572 = vpack.c.b16 %v1400, %v1396
    %v1573 = vpack.c.b16 %v1401, %v1397
    %v1574 = vpack.c.b16 %v1402, %v1398
    %v1575 = vpack.c.b16 %v1407, %v1403
    %v1576 = vpack.c.b16 %v1408, %v1404
    %v1577 = vpack.c.b16 %v1409, %v1405
    %v1578 = vpack.c.b16 %v1410, %v1406
    %v1579 = vpack.c.b16 %v1415, %v1411
    %v1580 = vpack.c.b16 %v1416, %v1412
    %v1581 = vpack.c.b16 %v1417, %v1413
    %v1582 = vpack.c.b16 %v1418, %v1414
    %v1583 = vpack.c.b16 %v1423, %v1419
    %v1584 = vpack.c.b16 %v1424, %v1420
    %v1585 = vpack.c.b16 %v1425, %v1421
    %v1586 = vpack.c.b16 %v1426, %v1422
    %v1587 = vpack.c.b16 %v1431, %v1427
    %v1588 = vpack.c.b16 %v1432, %v1428
    %v1589 = vpack.c.b16 %v1433, %v1429
    %v1590 = vpack.c.b16 %v1434, %v1430
    %v1591 = vpack.c.b16 %v1439, %v1435
    %v1592 = vpack.c.b16 %v1440, %v1436
    %v1593 = vpack.c.b16 %v1441, %v1437
    %v1594 = vpack.c.b16 %v1442, %v1438
    %v1595 = vpack.c.b16 %v1447, %v1443
    %v1596 = vpack.c.b16 %v1448, %v1444
    %v1597 = vpack.c.b16 %v1449, %v1445
    %v1598 = vpack.c.b16 %v1450, %v1446
    %v1599 = vpack.c.b16 %v1455, %v1451
    %v1600 = vpack.c.b16 %v1456, %v1452
    %v1601 = vpack.c.b16 %v1457, %v1453
    %v1602 = vpack.c.b16 %v1458, %v1454
    %v1603 = vpack.c.b16 %v1463, %v1459
    %v1604 = vpack.c.b16 %v1464, %v1460
    %v1605 = vpack.c.b16 %v1465, %v1461
    %v1606 = vpack.c.b16 %v1466, %v1462
    %v1607 = vpack.c.b16 %v1471, %v1467
    %v1608 = vpack.c.b16 %v1472, %v1468
    %v1609 = vpack.c.b16 %v1473, %v1469
    %v1610 = vpack.c.b16 %v1474, %v1470
    %v1611 = vpack.c.b16 %v1479, %v1475
    %v1612 = vpack.c.b16 %v1480, %v1476
    %v1613 = vpack.c.b16 %v1481, %v1477
    %v1614 = vpack.c.b16 %v1482, %v1478
    %v1615 = vpack.c.b16 %v1487, %v1483
    %v1616 = vpack.c.b16 %v1488, %v1484
    %v1617 = vpack.c.b16 %v1489, %v1485
    %v1618 = vpack.c.b16 %v1490, %v1486
    %1747 = vmatprep.subr.bf16.mxu0 %v1492
    %1748 = vmatpush1.bf16.msra.mxu0 %v1491
    %1749 = vmatprep.subr.bf16.mxu0 %v1496
    %1750 = vmatpush1.bf16.msra.mxu0 %v1495
    %1751 = vmatprep.subr.bf16.mxu0 %v1500
    %1752 = vmatpush1.bf16.msra.mxu0 %v1499
    %1753 = vmatprep.subr.bf16.mxu0 %v1504
    %1754 = vmatpush1.bf16.msra.mxu0 %v1503
    %1755 = vmatprep.subr.bf16.mxu0 %v1508
    %1756 = vmatpush1.bf16.msra.mxu0 %v1507
    %1757 = vmatprep.subr.bf16.mxu0 %v1512
    %1758 = vmatpush1.bf16.msra.mxu0 %v1511
    %1759 = vmatprep.subr.bf16.mxu0 %v1516
    %1760 = vmatpush1.bf16.msra.mxu0 %v1515
    %1761 = vmatprep.subr.bf16.mxu0 %v1520
    %1762 = vmatpush1.bf16.msra.mxu0 %v1519
    %1763 = vmatprep.subr.bf16.mxu0 %v1524
    %1764 = vmatpush1.bf16.msra.mxu0 %v1523
    %1765 = vmatprep.subr.bf16.mxu0 %v1528
    %1766 = vmatpush1.bf16.msra.mxu0 %v1527
    %1767 = vmatprep.subr.bf16.mxu0 %v1532
    %1768 = vmatpush1.bf16.msra.mxu0 %v1531
    %1769 = vmatprep.subr.bf16.mxu0 %v1536
    %1770 = vmatpush1.bf16.msra.mxu0 %v1535
    %1771 = vmatprep.subr.bf16.mxu0 %v1540
    %1772 = vmatpush1.bf16.msra.mxu0 %v1539
    %1773 = vmatprep.subr.bf16.mxu0 %v1544
    %1774 = vmatpush1.bf16.msra.mxu0 %v1543
    %1775 = vmatprep.subr.bf16.mxu0 %v1548
    %1776 = vmatpush1.bf16.msra.mxu0 %v1547
    %1777 = vmatprep.subr.bf16.mxu0 %v1552
    %1778 = vmatpush1.bf16.msra.mxu0 %v1551
    %1779 = vmatprep.mubr.bf16.mxu0 %v894
    %1780 = vmatmul.mubr.bf16.gmra.mrb[0].mxu0 %v893
    %v1781 = vpop.f32.mrb[0].mxu0
    %v1782 = vadd.f32 %v1090, %v1781
    %v1783 = vpop.f32.mrb[0].mxu0
    %v1784 = vadd.f32 %v1094, %v1783
    %v1785 = vpop.f32.mrb[0].mxu0
    %v1786 = vadd.f32 %v1090, %v1785
    %v1787 = vpop.f32.mrb[0].mxu0
    %v1788 = vadd.f32 %v1094, %v1787
    %1789 = vmatprep.mubr.bf16.mxu0 %v898
    %1790 = vmatmul.mubr.bf16.gmra.mrb[0].mxu0 %v897
    %v1791 = vpop.f32.mrb[0].mxu0
    %v1792 = vadd.f32 %v1090, %v1791
    %v1793 = vpop.f32.mrb[0].mxu0
    %v1794 = vadd.f32 %v1094, %v1793
    %v1795 = vpop.f32.mrb[0].mxu0
    %v1796 = vadd.f32 %v1090, %v1795
    %v1797 = vpop.f32.mrb[0].mxu0
    %v1798 = vadd.f32 %v1094, %v1797
    %1799 = vmatprep.mubr.bf16.mxu0 %v902
    %1800 = vmatmul.mubr.bf16.gmra.mrb[0].mxu0 %v901
    %v1801 = vpop.f32.mrb[0].mxu0
    %v1802 = vadd.f32 %v1090, %v1801
    %v1803 = vpop.f32.mrb[0].mxu0
    %v1804 = vadd.f32 %v1094, %v1803
    %v1805 = vpop.f32.mrb[0].mxu0
    %v1806 = vadd.f32 %v1090, %v1805
    %v1807 = vpop.f32.mrb[0].mxu0
    %v1808 = vadd.f32 %v1094, %v1807
    %1809 = vmatprep.mubr.bf16.mxu0 %v906
    %1810 = vmatmul.mubr.bf16.gmra.mrb[0].mxu0 %v905
    %v1811 = vpop.f32.mrb[0].mxu0
    %v1812 = vadd.f32 %v1090, %v1811
    %v1813 = vpop.f32.mrb[0].mxu0
    %v1814 = vadd.f32 %v1094, %v1813
    %v1815 = vpop.f32.mrb[0].mxu0
    %v1816 = vadd.f32 %v1090, %v1815
    %v1817 = vpop.f32.mrb[0].mxu0
    %v1818 = vadd.f32 %v1094, %v1817
    %1819 = vmatprep.mubr.bf16.mxu0 %v910
    %1820 = vmatmul.mubr.bf16.gmra.mrb[0].mxu0 %v909
    %v1821 = vpop.f32.mrb[0].mxu0
    %v1822 = vadd.f32 %v1090, %v1821
    %v1823 = vpop.f32.mrb[0].mxu0
    %v1824 = vadd.f32 %v1094, %v1823
    %v1825 = vpop.f32.mrb[0].mxu0
    %v1826 = vadd.f32 %v1090, %v1825
    %v1827 = vpop.f32.mrb[0].mxu0
    %v1828 = vadd.f32 %v1094, %v1827
    %1829 = vmatprep.mubr.bf16.mxu0 %v914
    %1830 = vmatmul.mubr.bf16.gmra.mrb[0].mxu0 %v913
    %v1831 = vpop.f32.mrb[0].mxu0
    %v1832 = vadd.f32 %v1090, %v1831
    %v1833 = vpop.f32.mrb[0].mxu0
    %v1834 = vadd.f32 %v1094, %v1833
    %v1835 = vpop.f32.mrb[0].mxu0
    %v1836 = vadd.f32 %v1090, %v1835
    %v1837 = vpop.f32.mrb[0].mxu0
    %v1838 = vadd.f32 %v1094, %v1837
    %1839 = vmatprep.mubr.bf16.mxu0 %v918
    %1840 = vmatmul.mubr.bf16.gmra.mrb[0].mxu0 %v917
    %v1841 = vpop.f32.mrb[0].mxu0
    %v1842 = vadd.f32 %v1090, %v1841
    %v1843 = vpop.f32.mrb[0].mxu0
    %v1844 = vadd.f32 %v1094, %v1843
    %v1845 = vpop.f32.mrb[0].mxu0
    %v1846 = vadd.f32 %v1090, %v1845
    %v1847 = vpop.f32.mrb[0].mxu0
    %v1848 = vadd.f32 %v1094, %v1847
    %1849 = vmatprep.mubr.bf16.mxu0 %v922
    %1850 = vmatmul.mubr.bf16.gmra.mrb[0].mxu0 %v921
    %v1851 = vpop.f32.mrb[0].mxu0
    %v1852 = vadd.f32 %v1090, %v1851
    %v1853 = vpop.f32.mrb[0].mxu0
    %v1854 = vadd.f32 %v1094, %v1853
    %v1855 = vpop.f32.mrb[0].mxu0
    %v1856 = vadd.f32 %v1090, %v1855
    %v1857 = vpop.f32.mrb[0].mxu0
    %v1858 = vadd.f32 %v1094, %v1857
    %1859 = vmatprep.mubr.bf16.mxu0 %v926
    %1860 = vmatmul.mubr.bf16.gmra.mrb[0].mxu0 %v925
    %v1861 = vpop.f32.mrb[0].mxu0
    %v1862 = vadd.f32 %v1090, %v1861
    %v1863 = vpop.f32.mrb[0].mxu0
    %v1864 = vadd.f32 %v1094, %v1863
    %v1865 = vpop.f32.mrb[0].mxu0
    %v1866 = vadd.f32 %v1090, %v1865
    %v1867 = vpop.f32.mrb[0].mxu0
    %v1868 = vadd.f32 %v1094, %v1867
    %1869 = vmatprep.mubr.bf16.mxu0 %v930
    %1870 = vmatmul.mubr.bf16.gmra.mrb[0].mxu0 %v929
    %v1871 = vpop.f32.mrb[0].mxu0
    %v1872 = vadd.f32 %v1090, %v1871
    %v1873 = vpop.f32.mrb[0].mxu0
    %v1874 = vadd.f32 %v1094, %v1873
    %v1875 = vpop.f32.mrb[0].mxu0
    %v1876 = vadd.f32 %v1090, %v1875
    %v1877 = vpop.f32.mrb[0].mxu0
    %v1878 = vadd.f32 %v1094, %v1877
    %1879 = vmatprep.mubr.bf16.mxu0 %v934
    %1880 = vmatmul.mubr.bf16.gmra.mrb[0].mxu0 %v933
    %v1881 = vpop.f32.mrb[0].mxu0
    %v1882 = vadd.f32 %v1090, %v1881
    %v1883 = vpop.f32.mrb[0].mxu0
    %v1884 = vadd.f32 %v1094, %v1883
    %v1885 = vpop.f32.mrb[0].mxu0
    %v1886 = vadd.f32 %v1090, %v1885
    %v1887 = vpop.f32.mrb[0].mxu0
    %v1888 = vadd.f32 %v1094, %v1887
    %1889 = vmatprep.mubr.bf16.mxu0 %v938
    %1890 = vmatmul.mubr.bf16.gmra.mrb[0].mxu0 %v937
    %v1891 = vpop.f32.mrb[0].mxu0
    %v1892 = vadd.f32 %v1090, %v1891
    %v1893 = vpop.f32.mrb[0].mxu0
    %v1894 = vadd.f32 %v1094, %v1893
    %v1895 = vpop.f32.mrb[0].mxu0
    %v1896 = vadd.f32 %v1090, %v1895
    %v1897 = vpop.f32.mrb[0].mxu0
    %v1898 = vadd.f32 %v1094, %v1897
    %1899 = vmatprep.mubr.bf16.mxu0 %v942
    %1900 = vmatmul.mubr.bf16.gmra.mrb[0].mxu0 %v941
    %v1901 = vpop.f32.mrb[0].mxu0
    %v1902 = vadd.f32 %v1090, %v1901
    %v1903 = vpop.f32.mrb[0].mxu0
    %v1904 = vadd.f32 %v1094, %v1903
    %v1905 = vpop.f32.mrb[0].mxu0
    %v1906 = vadd.f32 %v1090, %v1905
    %v1907 = vpop.f32.mrb[0].mxu0
    %v1908 = vadd.f32 %v1094, %v1907
    %1909 = vmatprep.mubr.bf16.mxu0 %v946
    %1910 = vmatmul.mubr.bf16.gmra.mrb[0].mxu0 %v945
    %v1911 = vpop.f32.mrb[0].mxu0
    %v1912 = vadd.f32 %v1090, %v1911
    %v1913 = vpop.f32.mrb[0].mxu0
    %v1914 = vadd.f32 %v1094, %v1913
    %v1915 = vpop.f32.mrb[0].mxu0
    %v1916 = vadd.f32 %v1090, %v1915
    %v1917 = vpop.f32.mrb[0].mxu0
    %v1918 = vadd.f32 %v1094, %v1917
    %1919 = vmatprep.mubr.bf16.mxu0 %v950
    %1920 = vmatmul.mubr.bf16.gmra.mrb[0].mxu0 %v949
    %v1921 = vpop.f32.mrb[0].mxu0
    %v1922 = vadd.f32 %v1090, %v1921
    %v1923 = vpop.f32.mrb[0].mxu0
    %v1924 = vadd.f32 %v1094, %v1923
    %v1925 = vpop.f32.mrb[0].mxu0
    %v1926 = vadd.f32 %v1090, %v1925
    %v1927 = vpop.f32.mrb[0].mxu0
    %v1928 = vadd.f32 %v1094, %v1927
    %1929 = vmatprep.mubr.bf16.mxu0 %v954
    %1930 = vmatmul.mubr.bf16.gmra.mrb[0].mxu0 %v953
    %v1931 = vpop.f32.mrb[0].mxu0
    %v1932 = vadd.f32 %v1090, %v1931
    %v1933 = vpop.f32.mrb[0].mxu0
    %v1934 = vadd.f32 %v1094, %v1933
    %v1935 = vpop.f32.mrb[0].mxu0
    %v1936 = vadd.f32 %v1090, %v1935
    %v1937 = vpop.f32.mrb[0].mxu0
    %v1938 = vadd.f32 %v1094, %v1937
    %1939 = vdwg.mxu0
    %1940 = vmatprep.subr.bf16.mxu0 %v1556
    %1941 = vmatpush1.bf16.msra.mxu0 %v1555
    %1942 = vmatprep.subr.bf16.mxu0 %v1560
    %1943 = vmatpush1.bf16.msra.mxu0 %v1559
    %1944 = vmatprep.subr.bf16.mxu0 %v1564
    %1945 = vmatpush1.bf16.msra.mxu0 %v1563
    %1946 = vmatprep.subr.bf16.mxu0 %v1568
    %1947 = vmatpush1.bf16.msra.mxu0 %v1567
    %1948 = vmatprep.subr.bf16.mxu0 %v1572
    %1949 = vmatpush1.bf16.msra.mxu0 %v1571
    %1950 = vmatprep.subr.bf16.mxu0 %v1576
    %1951 = vmatpush1.bf16.msra.mxu0 %v1575
    %1952 = vmatprep.subr.bf16.mxu0 %v1580
    %1953 = vmatpush1.bf16.msra.mxu0 %v1579
    %1954 = vmatprep.subr.bf16.mxu0 %v1584
    %1955 = vmatpush1.bf16.msra.mxu0 %v1583
    %1956 = vmatprep.subr.bf16.mxu0 %v1588
    %1957 = vmatpush1.bf16.msra.mxu0 %v1587
    %1958 = vmatprep.subr.bf16.mxu0 %v1592
    %1959 = vmatpush1.bf16.msra.mxu0 %v1591
    %1960 = vmatprep.subr.bf16.mxu0 %v1596
    %1961 = vmatpush1.bf16.msra.mxu0 %v1595
    %1962 = vmatprep.subr.bf16.mxu0 %v1600
    %1963 = vmatpush1.bf16.msra.mxu0 %v1599
    %1964 = vmatprep.subr.bf16.mxu0 %v1604
    %1965 = vmatpush1.bf16.msra.mxu0 %v1603
    %1966 = vmatprep.subr.bf16.mxu0 %v1608
    %1967 = vmatpush1.bf16.msra.mxu0 %v1607
    %1968 = vmatprep.subr.bf16.mxu0 %v1612
    %1969 = vmatpush1.bf16.msra.mxu0 %v1611
    %1970 = vmatprep.subr.bf16.mxu0 %v1616
    %1971 = vmatpush1.bf16.msra.mxu0 %v1615
    %1972 = vmatprep.mubr.bf16.mxu0 %v896
    %1973 = vmatmul.mubr.bf16.gmra.mrb[0].mxu0 %v895
    %v1974 = vpop.f32.mrb[0].mxu0
    %v1975 = vadd.f32 %v1782, %v1974
    %v1976 = vpop.f32.mrb[0].mxu0
    %v1977 = vadd.f32 %v1784, %v1976
    %v1978 = vpop.f32.mrb[0].mxu0
    %v1979 = vadd.f32 %v1786, %v1978
    %v1980 = vpop.f32.mrb[0].mxu0
    %v1981 = vadd.f32 %v1788, %v1980
    %1982 = vmatprep.mubr.bf16.mxu0 %v900
    %1983 = vmatmul.mubr.bf16.gmra.mrb[0].mxu0 %v899
    %v1984 = vpop.f32.mrb[0].mxu0
    %v1985 = vadd.f32 %v1792, %v1984
    %v1986 = vpop.f32.mrb[0].mxu0
    %v1987 = vadd.f32 %v1794, %v1986
    %v1988 = vpop.f32.mrb[0].mxu0
    %v1989 = vadd.f32 %v1796, %v1988
    %v1990 = vpop.f32.mrb[0].mxu0
    %v1991 = vadd.f32 %v1798, %v1990
    %1992 = vmatprep.mubr.bf16.mxu0 %v904
    %1993 = vmatmul.mubr.bf16.gmra.mrb[0].mxu0 %v903
    %v1994 = vpop.f32.mrb[0].mxu0
    %v1995 = vadd.f32 %v1802, %v1994
    %v1996 = vpop.f32.mrb[0].mxu0
    %v1997 = vadd.f32 %v1804, %v1996
    %v1998 = vpop.f32.mrb[0].mxu0
    %v1999 = vadd.f32 %v1806, %v1998
    %v2000 = vpop.f32.mrb[0].mxu0
    %v2001 = vadd.f32 %v1808, %v2000
    %2002 = vmatprep.mubr.bf16.mxu0 %v908
    %2003 = vmatmul.mubr.bf16.gmra.mrb[0].mxu0 %v907
    %v2004 = vpop.f32.mrb[0].mxu0
    %v2005 = vadd.f32 %v1812, %v2004
    %v2006 = vpop.f32.mrb[0].mxu0
    %v2007 = vadd.f32 %v1814, %v2006
    %v2008 = vpop.f32.mrb[0].mxu0
    %v2009 = vadd.f32 %v1816, %v2008
    %v2010 = vpop.f32.mrb[0].mxu0
    %v2011 = vadd.f32 %v1818, %v2010
    %2012 = vmatprep.mubr.bf16.mxu0 %v912
    %2013 = vmatmul.mubr.bf16.gmra.mrb[0].mxu0 %v911
    %v2014 = vpop.f32.mrb[0].mxu0
    %v2015 = vadd.f32 %v1822, %v2014
    %v2016 = vpop.f32.mrb[0].mxu0
    %v2017 = vadd.f32 %v1824, %v2016
    %v2018 = vpop.f32.mrb[0].mxu0
    %v2019 = vadd.f32 %v1826, %v2018
    %v2020 = vpop.f32.mrb[0].mxu0
    %v2021 = vadd.f32 %v1828, %v2020
    %2022 = vmatprep.mubr.bf16.mxu0 %v916
    %2023 = vmatmul.mubr.bf16.gmra.mrb[0].mxu0 %v915
    %v2024 = vpop.f32.mrb[0].mxu0
    %v2025 = vadd.f32 %v1832, %v2024
    %v2026 = vpop.f32.mrb[0].mxu0
    %v2027 = vadd.f32 %v1834, %v2026
    %v2028 = vpop.f32.mrb[0].mxu0
    %v2029 = vadd.f32 %v1836, %v2028
    %v2030 = vpop.f32.mrb[0].mxu0
    %v2031 = vadd.f32 %v1838, %v2030
    %2032 = vmatprep.mubr.bf16.mxu0 %v920
    %2033 = vmatmul.mubr.bf16.gmra.mrb[0].mxu0 %v919
    %v2034 = vpop.f32.mrb[0].mxu0
    %v2035 = vadd.f32 %v1842, %v2034
    %v2036 = vpop.f32.mrb[0].mxu0
    %v2037 = vadd.f32 %v1844, %v2036
    %v2038 = vpop.f32.mrb[0].mxu0
    %v2039 = vadd.f32 %v1846, %v2038
    %v2040 = vpop.f32.mrb[0].mxu0
    %v2041 = vadd.f32 %v1848, %v2040
    %2042 = vmatprep.mubr.bf16.mxu0 %v924
    %2043 = vmatmul.mubr.bf16.gmra.mrb[0].mxu0 %v923
    %v2044 = vpop.f32.mrb[0].mxu0
    %v2045 = vadd.f32 %v1852, %v2044
    %v2046 = vpop.f32.mrb[0].mxu0
    %v2047 = vadd.f32 %v1854, %v2046
    %v2048 = vpop.f32.mrb[0].mxu0
    %v2049 = vadd.f32 %v1856, %v2048
    %v2050 = vpop.f32.mrb[0].mxu0
    %v2051 = vadd.f32 %v1858, %v2050
    %2052 = vmatprep.mubr.bf16.mxu0 %v928
    %2053 = vmatmul.mubr.bf16.gmra.mrb[0].mxu0 %v927
    %v2054 = vpop.f32.mrb[0].mxu0
    %v2055 = vadd.f32 %v1862, %v2054
    %v2056 = vpop.f32.mrb[0].mxu0
    %v2057 = vadd.f32 %v1864, %v2056
    %v2058 = vpop.f32.mrb[0].mxu0
    %v2059 = vadd.f32 %v1866, %v2058
    %v2060 = vpop.f32.mrb[0].mxu0
    %v2061 = vadd.f32 %v1868, %v2060
    %2062 = vmatprep.mubr.bf16.mxu0 %v932
    %2063 = vmatmul.mubr.bf16.gmra.mrb[0].mxu0 %v931
    %v2064 = vpop.f32.mrb[0].mxu0
    %v2065 = vadd.f32 %v1872, %v2064
    %v2066 = vpop.f32.mrb[0].mxu0
    %v2067 = vadd.f32 %v1874, %v2066
    %v2068 = vpop.f32.mrb[0].mxu0
    %v2069 = vadd.f32 %v1876, %v2068
    %v2070 = vpop.f32.mrb[0].mxu0
    %v2071 = vadd.f32 %v1878, %v2070
    %2072 = vmatprep.mubr.bf16.mxu0 %v936
    %2073 = vmatmul.mubr.bf16.gmra.mrb[0].mxu0 %v935
    %v2074 = vpop.f32.mrb[0].mxu0
    %v2075 = vadd.f32 %v1882, %v2074
    %v2076 = vpop.f32.mrb[0].mxu0
    %v2077 = vadd.f32 %v1884, %v2076
    %v2078 = vpop.f32.mrb[0].mxu0
    %v2079 = vadd.f32 %v1886, %v2078
    %v2080 = vpop.f32.mrb[0].mxu0
    %v2081 = vadd.f32 %v1888, %v2080
    %2082 = vmatprep.mubr.bf16.mxu0 %v940
    %2083 = vmatmul.mubr.bf16.gmra.mrb[0].mxu0 %v939
    %v2084 = vpop.f32.mrb[0].mxu0
    %v2085 = vadd.f32 %v1892, %v2084
    %v2086 = vpop.f32.mrb[0].mxu0
    %v2087 = vadd.f32 %v1894, %v2086
    %v2088 = vpop.f32.mrb[0].mxu0
    %v2089 = vadd.f32 %v1896, %v2088
    %v2090 = vpop.f32.mrb[0].mxu0
    %v2091 = vadd.f32 %v1898, %v2090
    %2092 = vmatprep.mubr.bf16.mxu0 %v944
    %2093 = vmatmul.mubr.bf16.gmra.mrb[0].mxu0 %v943
    %v2094 = vpop.f32.mrb[0].mxu0
    %v2095 = vadd.f32 %v1902, %v2094
    %v2096 = vpop.f32.mrb[0].mxu0
    %v2097 = vadd.f32 %v1904, %v2096
    %v2098 = vpop.f32.mrb[0].mxu0
    %v2099 = vadd.f32 %v1906, %v2098
    %v2100 = vpop.f32.mrb[0].mxu0
    %v2101 = vadd.f32 %v1908, %v2100
    %2102 = vmatprep.mubr.bf16.mxu0 %v948
    %2103 = vmatmul.mubr.bf16.gmra.mrb[0].mxu0 %v947
    %v2104 = vpop.f32.mrb[0].mxu0
    %v2105 = vadd.f32 %v1912, %v2104
    %v2106 = vpop.f32.mrb[0].mxu0
    %v2107 = vadd.f32 %v1914, %v2106
    %v2108 = vpop.f32.mrb[0].mxu0
    %v2109 = vadd.f32 %v1916, %v2108
    %v2110 = vpop.f32.mrb[0].mxu0
    %v2111 = vadd.f32 %v1918, %v2110
    %2112 = vmatprep.mubr.bf16.mxu0 %v952
    %2113 = vmatmul.mubr.bf16.gmra.mrb[0].mxu0 %v951
    %v2114 = vpop.f32.mrb[0].mxu0
    %v2115 = vadd.f32 %v1922, %v2114
    %v2116 = vpop.f32.mrb[0].mxu0
    %v2117 = vadd.f32 %v1924, %v2116
    %v2118 = vpop.f32.mrb[0].mxu0
    %v2119 = vadd.f32 %v1926, %v2118
    %v2120 = vpop.f32.mrb[0].mxu0
    %v2121 = vadd.f32 %v1928, %v2120
    %2122 = vmatprep.mubr.bf16.mxu0 %v956
    %2123 = vmatmul.mubr.bf16.gmra.mrb[0].mxu0 %v955
    %v2124 = vpop.f32.mrb[0].mxu0
    %v2125 = vadd.f32 %v1932, %v2124
    %v2126 = vpop.f32.mrb[0].mxu0
    %v2127 = vadd.f32 %v1934, %v2126
    %v2128 = vpop.f32.mrb[0].mxu0
    %v2129 = vadd.f32 %v1936, %v2128
    %v2130 = vpop.f32.mrb[0].mxu0
    %v2131 = vadd.f32 %v1938, %v2130
    %2132 = vdwg.mxu0
    %2133 = vmatprep.subr.bf16.mxu0 %v1494
    %2134 = vmatpush1.bf16.msra.mxu0 %v1493
    %2135 = vmatprep.subr.bf16.mxu0 %v1498
    %2136 = vmatpush1.bf16.msra.mxu0 %v1497
    %2137 = vmatprep.subr.bf16.mxu0 %v1502
    %2138 = vmatpush1.bf16.msra.mxu0 %v1501
    %2139 = vmatprep.subr.bf16.mxu0 %v1506
    %2140 = vmatpush1.bf16.msra.mxu0 %v1505
    %2141 = vmatprep.subr.bf16.mxu0 %v1510
    %2142 = vmatpush1.bf16.msra.mxu0 %v1509
    %2143 = vmatprep.subr.bf16.mxu0 %v1514
    %2144 = vmatpush1.bf16.msra.mxu0 %v1513
    %2145 = vmatprep.subr.bf16.mxu0 %v1518
    %2146 = vmatpush1.bf16.msra.mxu0 %v1517
    %2147 = vmatprep.subr.bf16.mxu0 %v1522
    %2148 = vmatpush1.bf16.msra.mxu0 %v1521
    %2149 = vmatprep.subr.bf16.mxu0 %v1526
    %2150 = vmatpush1.bf16.msra.mxu0 %v1525
    %2151 = vmatprep.subr.bf16.mxu0 %v1530
    %2152 = vmatpush1.bf16.msra.mxu0 %v1529
    %2153 = vmatprep.subr.bf16.mxu0 %v1534
    %2154 = vmatpush1.bf16.msra.mxu0 %v1533
    %2155 = vmatprep.subr.bf16.mxu0 %v1538
    %2156 = vmatpush1.bf16.msra.mxu0 %v1537
    %2157 = vmatprep.subr.bf16.mxu0 %v1542
    %2158 = vmatpush1.bf16.msra.mxu0 %v1541
    %2159 = vmatprep.subr.bf16.mxu0 %v1546
    %2160 = vmatpush1.bf16.msra.mxu0 %v1545
    %2161 = vmatprep.subr.bf16.mxu0 %v1550
    %2162 = vmatpush1.bf16.msra.mxu0 %v1549
    %2163 = vmatprep.subr.bf16.mxu0 %v1554
    %2164 = vmatpush1.bf16.msra.mxu0 %v1553
    %2165 = vmatprep.mubr.bf16.mxu0 %v894
    %2166 = vmatmul.mubr.bf16.gmra.mrb[0].mxu0 %v893
    %v2167 = vpop.f32.mrb[0].mxu0
    %v2168 = vadd.f32 %v1098, %v2167
    %v2169 = vpop.f32.mrb[0].mxu0
    %v2170 = vadd.f32 %v1102, %v2169
    %v2171 = vpop.f32.mrb[0].mxu0
    %v2172 = vadd.f32 %v1098, %v2171
    %v2173 = vpop.f32.mrb[0].mxu0
    %v2174 = vadd.f32 %v1102, %v2173
    %2175 = vmatprep.mubr.bf16.mxu0 %v898
    %2176 = vmatmul.mubr.bf16.gmra.mrb[0].mxu0 %v897
    %v2177 = vpop.f32.mrb[0].mxu0
    %v2178 = vadd.f32 %v1098, %v2177
    %v2179 = vpop.f32.mrb[0].mxu0
    %v2180 = vadd.f32 %v1102, %v2179
    %v2181 = vpop.f32.mrb[0].mxu0
    %v2182 = vadd.f32 %v1098, %v2181
    %v2183 = vpop.f32.mrb[0].mxu0
    %v2184 = vadd.f32 %v1102, %v2183
    %2185 = vmatprep.mubr.bf16.mxu0 %v902
    %2186 = vmatmul.mubr.bf16.gmra.mrb[0].mxu0 %v901
    %v2187 = vpop.f32.mrb[0].mxu0
    %v2188 = vadd.f32 %v1098, %v2187
    %v2189 = vpop.f32.mrb[0].mxu0
    %v2190 = vadd.f32 %v1102, %v2189
    %v2191 = vpop.f32.mrb[0].mxu0
    %v2192 = vadd.f32 %v1098, %v2191
    %v2193 = vpop.f32.mrb[0].mxu0
    %v2194 = vadd.f32 %v1102, %v2193
    %2195 = vmatprep.mubr.bf16.mxu0 %v906
    %2196 = vmatmul.mubr.bf16.gmra.mrb[0].mxu0 %v905
    %v2197 = vpop.f32.mrb[0].mxu0
    %v2198 = vadd.f32 %v1098, %v2197
    %v2199 = vpop.f32.mrb[0].mxu0
    %v2200 = vadd.f32 %v1102, %v2199
    %v2201 = vpop.f32.mrb[0].mxu0
    %v2202 = vadd.f32 %v1098, %v2201
    %v2203 = vpop.f32.mrb[0].mxu0
    %v2204 = vadd.f32 %v1102, %v2203
    %2205 = vmatprep.mubr.bf16.mxu0 %v910
    %2206 = vmatmul.mubr.bf16.gmra.mrb[0].mxu0 %v909
    %v2207 = vpop.f32.mrb[0].mxu0
    %v2208 = vadd.f32 %v1098, %v2207
    %v2209 = vpop.f32.mrb[0].mxu0
    %v2210 = vadd.f32 %v1102, %v2209
    %v2211 = vpop.f32.mrb[0].mxu0
    %v2212 = vadd.f32 %v1098, %v2211
    %v2213 = vpop.f32.mrb[0].mxu0
    %v2214 = vadd.f32 %v1102, %v2213
    %2215 = vmatprep.mubr.bf16.mxu0 %v914
    %2216 = vmatmul.mubr.bf16.gmra.mrb[0].mxu0 %v913
    %v2217 = vpop.f32.mrb[0].mxu0
    %v2218 = vadd.f32 %v1098, %v2217
    %v2219 = vpop.f32.mrb[0].mxu0
    %v2220 = vadd.f32 %v1102, %v2219
    %v2221 = vpop.f32.mrb[0].mxu0
    %v2222 = vadd.f32 %v1098, %v2221
    %v2223 = vpop.f32.mrb[0].mxu0
    %v2224 = vadd.f32 %v1102, %v2223
    %2225 = vmatprep.mubr.bf16.mxu0 %v918
    %2226 = vmatmul.mubr.bf16.gmra.mrb[0].mxu0 %v917
    %v2227 = vpop.f32.mrb[0].mxu0
    %v2228 = vadd.f32 %v1098, %v2227
    %v2229 = vpop.f32.mrb[0].mxu0
    %v2230 = vadd.f32 %v1102, %v2229
    %v2231 = vpop.f32.mrb[0].mxu0
    %v2232 = vadd.f32 %v1098, %v2231
    %v2233 = vpop.f32.mrb[0].mxu0
    %v2234 = vadd.f32 %v1102, %v2233
    %2235 = vmatprep.mubr.bf16.mxu0 %v922
    %2236 = vmatmul.mubr.bf16.gmra.mrb[0].mxu0 %v921
    %v2237 = vpop.f32.mrb[0].mxu0
    %v2238 = vadd.f32 %v1098, %v2237
    %v2239 = vpop.f32.mrb[0].mxu0
    %v2240 = vadd.f32 %v1102, %v2239
    %v2241 = vpop.f32.mrb[0].mxu0
    %v2242 = vadd.f32 %v1098, %v2241
    %v2243 = vpop.f32.mrb[0].mxu0
    %v2244 = vadd.f32 %v1102, %v2243
    %2245 = vmatprep.mubr.bf16.mxu0 %v926
    %2246 = vmatmul.mubr.bf16.gmra.mrb[0].mxu0 %v925
    %v2247 = vpop.f32.mrb[0].mxu0
    %v2248 = vadd.f32 %v1098, %v2247
    %v2249 = vpop.f32.mrb[0].mxu0
    %v2250 = vadd.f32 %v1102, %v2249
    %v2251 = vpop.f32.mrb[0].mxu0
    %v2252 = vadd.f32 %v1098, %v2251
    %v2253 = vpop.f32.mrb[0].mxu0
    %v2254 = vadd.f32 %v1102, %v2253
    %2255 = vmatprep.mubr.bf16.mxu0 %v930
    %2256 = vmatmul.mubr.bf16.gmra.mrb[0].mxu0 %v929
    %v2257 = vpop.f32.mrb[0].mxu0
    %v2258 = vadd.f32 %v1098, %v2257
    %v2259 = vpop.f32.mrb[0].mxu0
    %v2260 = vadd.f32 %v1102, %v2259
    %v2261 = vpop.f32.mrb[0].mxu0
    %v2262 = vadd.f32 %v1098, %v2261
    %v2263 = vpop.f32.mrb[0].mxu0
    %v2264 = vadd.f32 %v1102, %v2263
    %2265 = vmatprep.mubr.bf16.mxu0 %v934
    %2266 = vmatmul.mubr.bf16.gmra.mrb[0].mxu0 %v933
    %v2267 = vpop.f32.mrb[0].mxu0
    %v2268 = vadd.f32 %v1098, %v2267
    %v2269 = vpop.f32.mrb[0].mxu0
    %v2270 = vadd.f32 %v1102, %v2269
    %v2271 = vpop.f32.mrb[0].mxu0
    %v2272 = vadd.f32 %v1098, %v2271
    %v2273 = vpop.f32.mrb[0].mxu0
    %v2274 = vadd.f32 %v1102, %v2273
    %2275 = vmatprep.mubr.bf16.mxu0 %v938
    %2276 = vmatmul.mubr.bf16.gmra.mrb[0].mxu0 %v937
    %v2277 = vpop.f32.mrb[0].mxu0
    %v2278 = vadd.f32 %v1098, %v2277
    %v2279 = vpop.f32.mrb[0].mxu0
    %v2280 = vadd.f32 %v1102, %v2279
    %v2281 = vpop.f32.mrb[0].mxu0
    %v2282 = vadd.f32 %v1098, %v2281
    %v2283 = vpop.f32.mrb[0].mxu0
    %v2284 = vadd.f32 %v1102, %v2283
    %2285 = vmatprep.mubr.bf16.mxu0 %v942
    %2286 = vmatmul.mubr.bf16.gmra.mrb[0].mxu0 %v941
    %v2287 = vpop.f32.mrb[0].mxu0
    %v2288 = vadd.f32 %v1098, %v2287
    %v2289 = vpop.f32.mrb[0].mxu0
    %v2290 = vadd.f32 %v1102, %v2289
    %v2291 = vpop.f32.mrb[0].mxu0
    %v2292 = vadd.f32 %v1098, %v2291
    %v2293 = vpop.f32.mrb[0].mxu0
    %v2294 = vadd.f32 %v1102, %v2293
    %2295 = vmatprep.mubr.bf16.mxu0 %v946
    %2296 = vmatmul.mubr.bf16.gmra.mrb[0].mxu0 %v945
    %v2297 = vpop.f32.mrb[0].mxu0
    %v2298 = vadd.f32 %v1098, %v2297
    %v2299 = vpop.f32.mrb[0].mxu0
    %v2300 = vadd.f32 %v1102, %v2299
    %v2301 = vpop.f32.mrb[0].mxu0
    %v2302 = vadd.f32 %v1098, %v2301
    %v2303 = vpop.f32.mrb[0].mxu0
    %v2304 = vadd.f32 %v1102, %v2303
    %2305 = vmatprep.mubr.bf16.mxu0 %v950
    %2306 = vmatmul.mubr.bf16.gmra.mrb[0].mxu0 %v949
    %v2307 = vpop.f32.mrb[0].mxu0
    %v2308 = vadd.f32 %v1098, %v2307
    %v2309 = vpop.f32.mrb[0].mxu0
    %v2310 = vadd.f32 %v1102, %v2309
    %v2311 = vpop.f32.mrb[0].mxu0
    %v2312 = vadd.f32 %v1098, %v2311
    %v2313 = vpop.f32.mrb[0].mxu0
    %v2314 = vadd.f32 %v1102, %v2313
    %2315 = vmatprep.mubr.bf16.mxu0 %v954
    %2316 = vmatmul.mubr.bf16.gmra.mrb[0].mxu0 %v953
    %v2317 = vpop.f32.mrb[0].mxu0
    %v2318 = vadd.f32 %v1098, %v2317
    %v2319 = vpop.f32.mrb[0].mxu0
    %v2320 = vadd.f32 %v1102, %v2319
    %v2321 = vpop.f32.mrb[0].mxu0
    %v2322 = vadd.f32 %v1098, %v2321
    %v2323 = vpop.f32.mrb[0].mxu0
    %v2324 = vadd.f32 %v1102, %v2323
    %2325 = vdwg.mxu0
    %2326 = vmatprep.subr.bf16.mxu0 %v1558
    %2327 = vmatpush1.bf16.msra.mxu0 %v1557
    %2328 = vmatprep.subr.bf16.mxu0 %v1562
    %2329 = vmatpush1.bf16.msra.mxu0 %v1561
    %2330 = vmatprep.subr.bf16.mxu0 %v1566
    %2331 = vmatpush1.bf16.msra.mxu0 %v1565
    %2332 = vmatprep.subr.bf16.mxu0 %v1570
    %2333 = vmatpush1.bf16.msra.mxu0 %v1569
    %2334 = vmatprep.subr.bf16.mxu0 %v1574
    %2335 = vmatpush1.bf16.msra.mxu0 %v1573
    %2336 = vmatprep.subr.bf16.mxu0 %v1578
    %2337 = vmatpush1.bf16.msra.mxu0 %v1577
    %2338 = vmatprep.subr.bf16.mxu0 %v1582
    %2339 = vmatpush1.bf16.msra.mxu0 %v1581
    %2340 = vmatprep.subr.bf16.mxu0 %v1586
    %2341 = vmatpush1.bf16.msra.mxu0 %v1585
    %2342 = vmatprep.subr.bf16.mxu0 %v1590
    %2343 = vmatpush1.bf16.msra.mxu0 %v1589
    %2344 = vmatprep.subr.bf16.mxu0 %v1594
    %2345 = vmatpush1.bf16.msra.mxu0 %v1593
    %2346 = vmatprep.subr.bf16.mxu0 %v1598
    %2347 = vmatpush1.bf16.msra.mxu0 %v1597
    %2348 = vmatprep.subr.bf16.mxu0 %v1602
    %2349 = vmatpush1.bf16.msra.mxu0 %v1601
    %2350 = vmatprep.subr.bf16.mxu0 %v1606
    %2351 = vmatpush1.bf16.msra.mxu0 %v1605
    %2352 = vmatprep.subr.bf16.mxu0 %v1610
    %2353 = vmatpush1.bf16.msra.mxu0 %v1609
    %2354 = vmatprep.subr.bf16.mxu0 %v1614
    %2355 = vmatpush1.bf16.msra.mxu0 %v1613
    %2356 = vmatprep.subr.bf16.mxu0 %v1618
    %2357 = vmatpush1.bf16.msra.mxu0 %v1617
    %2358 = vmatprep.mubr.bf16.mxu0 %v896
    %2359 = vmatmul.mubr.bf16.gmra.mrb[0].mxu0 %v895
    %v2360 = vpop.f32.mrb[0].mxu0
    %v2361 = vadd.f32 %v2168, %v2360
    %v2362 = vpop.f32.mrb[0].mxu0
    %v2363 = vadd.f32 %v2170, %v2362
    %v2364 = vpop.f32.mrb[0].mxu0
    %v2365 = vadd.f32 %v2172, %v2364
    %v2366 = vpop.f32.mrb[0].mxu0
    %v2367 = vadd.f32 %v2174, %v2366
    %2368 = vmatprep.mubr.bf16.mxu0 %v900
    %2369 = vmatmul.mubr.bf16.gmra.mrb[0].mxu0 %v899
    %v2370 = vpop.f32.mrb[0].mxu0
    %v2371 = vadd.f32 %v2178, %v2370
    %v2372 = vpop.f32.mrb[0].mxu0
    %v2373 = vadd.f32 %v2180, %v2372
    %v2374 = vpop.f32.mrb[0].mxu0
    %v2375 = vadd.f32 %v2182, %v2374
    %v2376 = vpop.f32.mrb[0].mxu0
    %v2377 = vadd.f32 %v2184, %v2376
    %2378 = vmatprep.mubr.bf16.mxu0 %v904
    %2379 = vmatmul.mubr.bf16.gmra.mrb[0].mxu0 %v903
    %v2380 = vpop.f32.mrb[0].mxu0
    %v2381 = vadd.f32 %v2188, %v2380
    %v2382 = vpop.f32.mrb[0].mxu0
    %v2383 = vadd.f32 %v2190, %v2382
    %v2384 = vpop.f32.mrb[0].mxu0
    %v2385 = vadd.f32 %v2192, %v2384
    %v2386 = vpop.f32.mrb[0].mxu0
    %v2387 = vadd.f32 %v2194, %v2386
    %2388 = vmatprep.mubr.bf16.mxu0 %v908
    %2389 = vmatmul.mubr.bf16.gmra.mrb[0].mxu0 %v907
    %v2390 = vpop.f32.mrb[0].mxu0
    %v2391 = vadd.f32 %v2198, %v2390
    %v2392 = vpop.f32.mrb[0].mxu0
    %v2393 = vadd.f32 %v2200, %v2392
    %v2394 = vpop.f32.mrb[0].mxu0
    %v2395 = vadd.f32 %v2202, %v2394
    %v2396 = vpop.f32.mrb[0].mxu0
    %v2397 = vadd.f32 %v2204, %v2396
    %2398 = vmatprep.mubr.bf16.mxu0 %v912
    %2399 = vmatmul.mubr.bf16.gmra.mrb[0].mxu0 %v911
    %v2400 = vpop.f32.mrb[0].mxu0
    %v2401 = vadd.f32 %v2208, %v2400
    %v2402 = vpop.f32.mrb[0].mxu0
    %v2403 = vadd.f32 %v2210, %v2402
    %v2404 = vpop.f32.mrb[0].mxu0
    %v2405 = vadd.f32 %v2212, %v2404
    %v2406 = vpop.f32.mrb[0].mxu0
    %v2407 = vadd.f32 %v2214, %v2406
    %2408 = vmatprep.mubr.bf16.mxu0 %v916
    %2409 = vmatmul.mubr.bf16.gmra.mrb[0].mxu0 %v915
    %v2410 = vpop.f32.mrb[0].mxu0
    %v2411 = vadd.f32 %v2218, %v2410
    %v2412 = vpop.f32.mrb[0].mxu0
    %v2413 = vadd.f32 %v2220, %v2412
    %v2414 = vpop.f32.mrb[0].mxu0
    %v2415 = vadd.f32 %v2222, %v2414
    %v2416 = vpop.f32.mrb[0].mxu0
    %v2417 = vadd.f32 %v2224, %v2416
    %2418 = vmatprep.mubr.bf16.mxu0 %v920
    %2419 = vmatmul.mubr.bf16.gmra.mrb[0].mxu0 %v919
    %v2420 = vpop.f32.mrb[0].mxu0
    %v2421 = vadd.f32 %v2228, %v2420
    %v2422 = vpop.f32.mrb[0].mxu0
    %v2423 = vadd.f32 %v2230, %v2422
    %v2424 = vpop.f32.mrb[0].mxu0
    %v2425 = vadd.f32 %v2232, %v2424
    %v2426 = vpop.f32.mrb[0].mxu0
    %v2427 = vadd.f32 %v2234, %v2426
    %2428 = vmatprep.mubr.bf16.mxu0 %v924
    %2429 = vmatmul.mubr.bf16.gmra.mrb[0].mxu0 %v923
    %v2430 = vpop.f32.mrb[0].mxu0
    %v2431 = vadd.f32 %v2238, %v2430
    %v2432 = vpop.f32.mrb[0].mxu0
    %v2433 = vadd.f32 %v2240, %v2432
    %v2434 = vpop.f32.mrb[0].mxu0
    %v2435 = vadd.f32 %v2242, %v2434
    %v2436 = vpop.f32.mrb[0].mxu0
    %v2437 = vadd.f32 %v2244, %v2436
    %2438 = vmatprep.mubr.bf16.mxu0 %v928
    %2439 = vmatmul.mubr.bf16.gmra.mrb[0].mxu0 %v927
    %v2440 = vpop.f32.mrb[0].mxu0
    %v2441 = vadd.f32 %v2248, %v2440
    %v2442 = vpop.f32.mrb[0].mxu0
    %v2443 = vadd.f32 %v2250, %v2442
    %v2444 = vpop.f32.mrb[0].mxu0
    %v2445 = vadd.f32 %v2252, %v2444
    %v2446 = vpop.f32.mrb[0].mxu0
    %v2447 = vadd.f32 %v2254, %v2446
    %2448 = vmatprep.mubr.bf16.mxu0 %v932
    %2449 = vmatmul.mubr.bf16.gmra.mrb[0].mxu0 %v931
    %v2450 = vpop.f32.mrb[0].mxu0
    %v2451 = vadd.f32 %v2258, %v2450
    %v2452 = vpop.f32.mrb[0].mxu0
    %v2453 = vadd.f32 %v2260, %v2452
    %v2454 = vpop.f32.mrb[0].mxu0
    %v2455 = vadd.f32 %v2262, %v2454
    %v2456 = vpop.f32.mrb[0].mxu0
    %v2457 = vadd.f32 %v2264, %v2456
    %2458 = vmatprep.mubr.bf16.mxu0 %v936
    %2459 = vmatmul.mubr.bf16.gmra.mrb[0].mxu0 %v935
    %v2460 = vpop.f32.mrb[0].mxu0
    %v2461 = vadd.f32 %v2268, %v2460
    %v2462 = vpop.f32.mrb[0].mxu0
    %v2463 = vadd.f32 %v2270, %v2462
    %v2464 = vpop.f32.mrb[0].mxu0
    %v2465 = vadd.f32 %v2272, %v2464
    %v2466 = vpop.f32.mrb[0].mxu0
    %v2467 = vadd.f32 %v2274, %v2466
    %2468 = vmatprep.mubr.bf16.mxu0 %v940
    %2469 = vmatmul.mubr.bf16.gmra.mrb[0].mxu0 %v939
    %v2470 = vpop.f32.mrb[0].mxu0
    %v2471 = vadd.f32 %v2278, %v2470
    %v2472 = vpop.f32.mrb[0].mxu0
    %v2473 = vadd.f32 %v2280, %v2472
    %v2474 = vpop.f32.mrb[0].mxu0
    %v2475 = vadd.f32 %v2282, %v2474
    %v2476 = vpop.f32.mrb[0].mxu0
    %v2477 = vadd.f32 %v2284, %v2476
    %2478 = vmatprep.mubr.bf16.mxu0 %v944
    %2479 = vmatmul.mubr.bf16.gmra.mrb[0].mxu0 %v943
    %v2480 = vpop.f32.mrb[0].mxu0
    %v2481 = vadd.f32 %v2288, %v2480
    %v2482 = vpop.f32.mrb[0].mxu0
    %v2483 = vadd.f32 %v2290, %v2482
    %v2484 = vpop.f32.mrb[0].mxu0
    %v2485 = vadd.f32 %v2292, %v2484
    %v2486 = vpop.f32.mrb[0].mxu0
    %v2487 = vadd.f32 %v2294, %v2486
    %2488 = vmatprep.mubr.bf16.mxu0 %v948
    %2489 = vmatmul.mubr.bf16.gmra.mrb[0].mxu0 %v947
    %v2490 = vpop.f32.mrb[0].mxu0
    %v2491 = vadd.f32 %v2298, %v2490
    %v2492 = vpop.f32.mrb[0].mxu0
    %v2493 = vadd.f32 %v2300, %v2492
    %v2494 = vpop.f32.mrb[0].mxu0
    %v2495 = vadd.f32 %v2302, %v2494
    %v2496 = vpop.f32.mrb[0].mxu0
    %v2497 = vadd.f32 %v2304, %v2496
    %2498 = vmatprep.mubr.bf16.mxu0 %v952
    %2499 = vmatmul.mubr.bf16.gmra.mrb[0].mxu0 %v951
    %v2500 = vpop.f32.mrb[0].mxu0
    %v2501 = vadd.f32 %v2308, %v2500
    %v2502 = vpop.f32.mrb[0].mxu0
    %v2503 = vadd.f32 %v2310, %v2502
    %v2504 = vpop.f32.mrb[0].mxu0
    %v2505 = vadd.f32 %v2312, %v2504
    %v2506 = vpop.f32.mrb[0].mxu0
    %v2507 = vadd.f32 %v2314, %v2506
    %2508 = vmatprep.mubr.bf16.mxu0 %v956
    %2509 = vmatmul.mubr.bf16.gmra.mrb[0].mxu0 %v955
    %v2510 = vpop.f32.mrb[0].mxu0
    %v2511 = vadd.f32 %v2318, %v2510
    %v2512 = vpop.f32.mrb[0].mxu0
    %v2513 = vadd.f32 %v2320, %v2512
    %v2514 = vpop.f32.mrb[0].mxu0
    %v2515 = vadd.f32 %v2322, %v2514
    %v2516 = vpop.f32.mrb[0].mxu0
    %v2517 = vadd.f32 %v2324, %v2516
    %2518 = vdwg.mxu0
    %v2519 = vmax.f32 %v1975, 0.0
    %v2520 = vmax.f32 %v1977, 0.0
    %v2521 = vmax.f32 %v2361, 0.0
    %v2522 = vmax.f32 %v2363, 0.0
    %v2523 = vmax.f32 %v1979, 0.0
    %v2524 = vmax.f32 %v1981, 0.0
    %v2525 = vmax.f32 %v2365, 0.0
    %v2526 = vmax.f32 %v2367, 0.0
    %v2527 = vmax.f32 %v1985, 0.0
    %v2528 = vmax.f32 %v1987, 0.0
    %v2529 = vmax.f32 %v2371, 0.0
    %v2530 = vmax.f32 %v2373, 0.0
    %v2531 = vmax.f32 %v1989, 0.0
    %v2532 = vmax.f32 %v1991, 0.0
    %v2533 = vmax.f32 %v2375, 0.0
    %v2534 = vmax.f32 %v2377, 0.0
    %v2535 = vmax.f32 %v1995, 0.0
    %v2536 = vmax.f32 %v1997, 0.0
    %v2537 = vmax.f32 %v2381, 0.0
    %v2538 = vmax.f32 %v2383, 0.0
    %v2539 = vmax.f32 %v1999, 0.0
    %v2540 = vmax.f32 %v2001, 0.0
    %v2541 = vmax.f32 %v2385, 0.0
    %v2542 = vmax.f32 %v2387, 0.0
    %v2543 = vmax.f32 %v2005, 0.0
    %v2544 = vmax.f32 %v2007, 0.0
    %v2545 = vmax.f32 %v2391, 0.0
    %v2546 = vmax.f32 %v2393, 0.0
    %v2547 = vmax.f32 %v2009, 0.0
    %v2548 = vmax.f32 %v2011, 0.0
    %v2549 = vmax.f32 %v2395, 0.0
    %v2550 = vmax.f32 %v2397, 0.0
    %v2551 = vmax.f32 %v2015, 0.0
    %v2552 = vmax.f32 %v2017, 0.0
    %v2553 = vmax.f32 %v2401, 0.0
    %v2554 = vmax.f32 %v2403, 0.0
    %v2555 = vmax.f32 %v2019, 0.0
    %v2556 = vmax.f32 %v2021, 0.0
    %v2557 = vmax.f32 %v2405, 0.0
    %v2558 = vmax.f32 %v2407, 0.0
    %v2559 = vmax.f32 %v2025, 0.0
    %v2560 = vmax.f32 %v2027, 0.0
    %v2561 = vmax.f32 %v2411, 0.0
    %v2562 = vmax.f32 %v2413, 0.0
    %v2563 = vmax.f32 %v2029, 0.0
    %v2564 = vmax.f32 %v2031, 0.0
    %v2565 = vmax.f32 %v2415, 0.0
    %v2566 = vmax.f32 %v2417, 0.0
    %v2567 = vmax.f32 %v2035, 0.0
    %v2568 = vmax.f32 %v2037, 0.0
    %v2569 = vmax.f32 %v2421, 0.0
    %v2570 = vmax.f32 %v2423, 0.0
    %v2571 = vmax.f32 %v2039, 0.0
    %v2572 = vmax.f32 %v2041, 0.0
    %v2573 = vmax.f32 %v2425, 0.0
    %v2574 = vmax.f32 %v2427, 0.0
    %v2575 = vmax.f32 %v2045, 0.0
    %v2576 = vmax.f32 %v2047, 0.0
    %v2577 = vmax.f32 %v2431, 0.0
    %v2578 = vmax.f32 %v2433, 0.0
    %v2579 = vmax.f32 %v2049, 0.0
    %v2580 = vmax.f32 %v2051, 0.0
    %v2581 = vmax.f32 %v2435, 0.0
    %v2582 = vmax.f32 %v2437, 0.0
    %v2583 = vmax.f32 %v2055, 0.0
    %v2584 = vmax.f32 %v2057, 0.0
    %v2585 = vmax.f32 %v2441, 0.0
    %v2586 = vmax.f32 %v2443, 0.0
    %v2587 = vmax.f32 %v2059, 0.0
    %v2588 = vmax.f32 %v2061, 0.0
    %v2589 = vmax.f32 %v2445, 0.0
    %v2590 = vmax.f32 %v2447, 0.0
    %v2591 = vmax.f32 %v2065, 0.0
    %v2592 = vmax.f32 %v2067, 0.0
    %v2593 = vmax.f32 %v2451, 0.0
    %v2594 = vmax.f32 %v2453, 0.0
    %v2595 = vmax.f32 %v2069, 0.0
    %v2596 = vmax.f32 %v2071, 0.0
    %v2597 = vmax.f32 %v2455, 0.0
    %v2598 = vmax.f32 %v2457, 0.0
    %v2599 = vmax.f32 %v2075, 0.0
    %v2600 = vmax.f32 %v2077, 0.0
    %v2601 = vmax.f32 %v2461, 0.0
    %v2602 = vmax.f32 %v2463, 0.0
    %v2603 = vmax.f32 %v2079, 0.0
    %v2604 = vmax.f32 %v2081, 0.0
    %v2605 = vmax.f32 %v2465, 0.0
    %v2606 = vmax.f32 %v2467, 0.0
    %v2607 = vmax.f32 %v2085, 0.0
    %v2608 = vmax.f32 %v2087, 0.0
    %v2609 = vmax.f32 %v2471, 0.0
    %v2610 = vmax.f32 %v2473, 0.0
    %v2611 = vmax.f32 %v2089, 0.0
    %v2612 = vmax.f32 %v2091, 0.0
    %v2613 = vmax.f32 %v2475, 0.0
    %v2614 = vmax.f32 %v2477, 0.0
    %v2615 = vmax.f32 %v2095, 0.0
    %v2616 = vmax.f32 %v2097, 0.0
    %v2617 = vmax.f32 %v2481, 0.0
    %v2618 = vmax.f32 %v2483, 0.0
    %v2619 = vmax.f32 %v2099, 0.0
    %v2620 = vmax.f32 %v2101, 0.0
    %v2621 = vmax.f32 %v2485, 0.0
    %v2622 = vmax.f32 %v2487, 0.0
    %v2623 = vmax.f32 %v2105, 0.0
    %v2624 = vmax.f32 %v2107, 0.0
    %v2625 = vmax.f32 %v2491, 0.0
    %v2626 = vmax.f32 %v2493, 0.0
    %v2627 = vmax.f32 %v2109, 0.0
    %v2628 = vmax.f32 %v2111, 0.0
    %v2629 = vmax.f32 %v2495, 0.0
    %v2630 = vmax.f32 %v2497, 0.0
    %v2631 = vmax.f32 %v2115, 0.0
    %v2632 = vmax.f32 %v2117, 0.0
    %v2633 = vmax.f32 %v2501, 0.0
    %v2634 = vmax.f32 %v2503, 0.0
    %v2635 = vmax.f32 %v2119, 0.0
    %v2636 = vmax.f32 %v2121, 0.0
    %v2637 = vmax.f32 %v2505, 0.0
    %v2638 = vmax.f32 %v2507, 0.0
    %v2639 = vmax.f32 %v2125, 0.0
    %v2640 = vmax.f32 %v2127, 0.0
    %v2641 = vmax.f32 %v2511, 0.0
    %v2642 = vmax.f32 %v2513, 0.0
    %v2643 = vmax.f32 %v2129, 0.0
    %v2644 = vmax.f32 %v2131, 0.0
    %v2645 = vmax.f32 %v2515, 0.0
    %v2646 = vmax.f32 %v2517, 0.0
    %v2647 = vpack.c.bf16 %v2523, %v2519
    %v2648 = vpack.c.bf16 %v2524, %v2520
    %v2649 = vpack.c.bf16 %v2525, %v2521
    %v2650 = vpack.c.bf16 %v2526, %v2522
    %v2651 = vpack.c.bf16 %v2531, %v2527
    %v2652 = vpack.c.bf16 %v2532, %v2528
    %v2653 = vpack.c.bf16 %v2533, %v2529
    %v2654 = vpack.c.bf16 %v2534, %v2530
    %v2655 = vpack.c.bf16 %v2539, %v2535
    %v2656 = vpack.c.bf16 %v2540, %v2536
    %v2657 = vpack.c.bf16 %v2541, %v2537
    %v2658 = vpack.c.bf16 %v2542, %v2538
    %v2659 = vpack.c.bf16 %v2547, %v2543
    %v2660 = vpack.c.bf16 %v2548, %v2544
    %v2661 = vpack.c.bf16 %v2549, %v2545
    %v2662 = vpack.c.bf16 %v2550, %v2546
    %v2663 = vpack.c.bf16 %v2555, %v2551
    %v2664 = vpack.c.bf16 %v2556, %v2552
    %v2665 = vpack.c.bf16 %v2557, %v2553
    %v2666 = vpack.c.bf16 %v2558, %v2554
    %v2667 = vpack.c.bf16 %v2563, %v2559
    %v2668 = vpack.c.bf16 %v2564, %v2560
    %v2669 = vpack.c.bf16 %v2565, %v2561
    %v2670 = vpack.c.bf16 %v2566, %v2562
    %v2671 = vpack.c.bf16 %v2571, %v2567
    %v2672 = vpack.c.bf16 %v2572, %v2568
    %v2673 = vpack.c.bf16 %v2573, %v2569
    %v2674 = vpack.c.bf16 %v2574, %v2570
    %v2675 = vpack.c.bf16 %v2579, %v2575
    %v2676 = vpack.c.bf16 %v2580, %v2576
    %v2677 = vpack.c.bf16 %v2581, %v2577
    %v2678 = vpack.c.bf16 %v2582, %v2578
    %v2679 = vpack.c.bf16 %v2587, %v2583
    %v2680 = vpack.c.bf16 %v2588, %v2584
    %v2681 = vpack.c.bf16 %v2589, %v2585
    %v2682 = vpack.c.bf16 %v2590, %v2586
    %v2683 = vpack.c.bf16 %v2595, %v2591
    %v2684 = vpack.c.bf16 %v2596, %v2592
    %v2685 = vpack.c.bf16 %v2597, %v2593
    %v2686 = vpack.c.bf16 %v2598, %v2594
    %v2687 = vpack.c.bf16 %v2603, %v2599
    %v2688 = vpack.c.bf16 %v2604, %v2600
    %v2689 = vpack.c.bf16 %v2605, %v2601
    %v2690 = vpack.c.bf16 %v2606, %v2602
    %v2691 = vpack.c.bf16 %v2611, %v2607
    %v2692 = vpack.c.bf16 %v2612, %v2608
    %v2693 = vpack.c.bf16 %v2613, %v2609
    %v2694 = vpack.c.bf16 %v2614, %v2610
    %v2695 = vpack.c.bf16 %v2619, %v2615
    %v2696 = vpack.c.bf16 %v2620, %v2616
    %v2697 = vpack.c.bf16 %v2621, %v2617
    %v2698 = vpack.c.bf16 %v2622, %v2618
    %v2699 = vpack.c.bf16 %v2627, %v2623
    %v2700 = vpack.c.bf16 %v2628, %v2624
    %v2701 = vpack.c.bf16 %v2629, %v2625
    %v2702 = vpack.c.bf16 %v2630, %v2626
    %v2703 = vpack.c.bf16 %v2635, %v2631
    %v2704 = vpack.c.bf16 %v2636, %v2632
    %v2705 = vpack.c.bf16 %v2637, %v2633
    %v2706 = vpack.c.bf16 %v2638, %v2634
    %v2707 = vpack.c.bf16 %v2643, %v2639
    %v2708 = vpack.c.bf16 %v2644, %v2640
    %v2709 = vpack.c.bf16 %v2645, %v2641
    %v2710 = vpack.c.bf16 %v2646, %v2642
    %v2711 = vld [vmem:[#allocation11] sm:$0xf]
    %v2712 = vld [vmem:[#allocation11 + $0x4] sm:$0xf]
    %v2713 = vld [vmem:[#allocation11 + $0x8] sm:$0xf]
    %v2714 = vld [vmem:[#allocation11 + $0xc] sm:$0xf]
    %v2715 = vld [vmem:[#allocation11 + $0x10] sm:$0xf]
    %v2716 = vld [vmem:[#allocation11 + $0x14] sm:$0xf]
    %v2717 = vld [vmem:[#allocation11 + $0x18] sm:$0xf]
    %v2718 = vld [vmem:[#allocation11 + $0x1c] sm:$0xf]
    %v2719 = vld [vmem:[#allocation11 + $0x20] sm:$0xf]
    %v2720 = vld [vmem:[#allocation11 + $0x24] sm:$0xf]
    %v2721 = vld [vmem:[#allocation11 + $0x28] sm:$0xf]
    %v2722 = vld [vmem:[#allocation11 + $0x2c] sm:$0xf]
    %v2723 = vld [vmem:[#allocation11 + $0x30] sm:$0xf]
    %v2724 = vld [vmem:[#allocation11 + $0x34] sm:$0xf]
    %v2725 = vld [vmem:[#allocation11 + $0x38] sm:$0xf]
    %v2726 = vld [vmem:[#allocation11 + $0x3c] sm:$0xf]
    %v2727 = vld [vmem:[#allocation11 + $0x40] sm:$0xf]
    %v2728 = vld [vmem:[#allocation11 + $0x44] sm:$0xf]
    %v2729 = vld [vmem:[#allocation11 + $0x48] sm:$0xf]
    %v2730 = vld [vmem:[#allocation11 + $0x4c] sm:$0xf]
    %v2731 = vld [vmem:[#allocation11 + $0x50] sm:$0xf]
    %v2732 = vld [vmem:[#allocation11 + $0x54] sm:$0xf]
    %v2733 = vld [vmem:[#allocation11 + $0x58] sm:$0xf]
    %v2734 = vld [vmem:[#allocation11 + $0x5c] sm:$0xf]
    %v2735 = vld [vmem:[#allocation11 + $0x60] sm:$0xf]
    %v2736 = vld [vmem:[#allocation11 + $0x64] sm:$0xf]
    %v2737 = vld [vmem:[#allocation11 + $0x68] sm:$0xf]
    %v2738 = vld [vmem:[#allocation11 + $0x6c] sm:$0xf]
    %v2739 = vld [vmem:[#allocation11 + $0x70] sm:$0xf]
    %v2740 = vld [vmem:[#allocation11 + $0x74] sm:$0xf]
    %v2741 = vld [vmem:[#allocation11 + $0x78] sm:$0xf]
    %v2742 = vld [vmem:[#allocation11 + $0x7c] sm:$0xf]
    %v2743 = vld [vmem:[#allocation11 + $0x80] sm:$0xf]
    %v2744 = vld [vmem:[#allocation11 + $0x84] sm:$0xf]
    %v2745 = vld [vmem:[#allocation11 + $0x88] sm:$0xf]
    %v2746 = vld [vmem:[#allocation11 + $0x8c] sm:$0xf]
    %v2747 = vld [vmem:[#allocation11 + $0x90] sm:$0xf]
    %v2748 = vld [vmem:[#allocation11 + $0x94] sm:$0xf]
    %v2749 = vld [vmem:[#allocation11 + $0x98] sm:$0xf]
    %v2750 = vld [vmem:[#allocation11 + $0x9c] sm:$0xf]
    %v2751 = vld [vmem:[#allocation11 + $0xa0] sm:$0xf]
    %v2752 = vld [vmem:[#allocation11 + $0xa4] sm:$0xf]
    %v2753 = vld [vmem:[#allocation11 + $0xa8] sm:$0xf]
    %v2754 = vld [vmem:[#allocation11 + $0xac] sm:$0xf]
    %v2755 = vld [vmem:[#allocation11 + $0xb0] sm:$0xf]
    %v2756 = vld [vmem:[#allocation11 + $0xb4] sm:$0xf]
    %v2757 = vld [vmem:[#allocation11 + $0xb8] sm:$0xf]
    %v2758 = vld [vmem:[#allocation11 + $0xbc] sm:$0xf]
    %v2759 = vld [vmem:[#allocation11 + $0xc0] sm:$0xf]
    %v2760 = vld [vmem:[#allocation11 + $0xc4] sm:$0xf]
    %v2761 = vld [vmem:[#allocation11 + $0xc8] sm:$0xf]
    %v2762 = vld [vmem:[#allocation11 + $0xcc] sm:$0xf]
    %v2763 = vld [vmem:[#allocation11 + $0xd0] sm:$0xf]
    %v2764 = vld [vmem:[#allocation11 + $0xd4] sm:$0xf]
    %v2765 = vld [vmem:[#allocation11 + $0xd8] sm:$0xf]
    %v2766 = vld [vmem:[#allocation11 + $0xdc] sm:$0xf]
    %v2767 = vld [vmem:[#allocation11 + $0xe0] sm:$0xf]
    %v2768 = vld [vmem:[#allocation11 + $0xe4] sm:$0xf]
    %v2769 = vld [vmem:[#allocation11 + $0xe8] sm:$0xf]
    %v2770 = vld [vmem:[#allocation11 + $0xec] sm:$0xf]
    %v2771 = vld [vmem:[#allocation11 + $0xf0] sm:$0xf]
    %v2772 = vld [vmem:[#allocation11 + $0xf4] sm:$0xf]
    %v2773 = vld [vmem:[#allocation11 + $0xf8] sm:$0xf]
    %v2774 = vld [vmem:[#allocation11 + $0xfc] sm:$0xf]
    %v2775 = vld [vmem:[#allocation13] sm:$0x1]
    %v2777 = vlaneseq
    %v2778 = vshrl.u32 %v2777, 7
    %v2779 = vsub.s32 0, %v2778
    %v2780 = vrot.slane %v2775, %v2779
    %v2846 = vunpack.c.l.b16 %v2711
    %v2847 = vunpack.c.l.b16 %v2712
    %v2848 = vunpack.c.l.b16 %v2713
    %v2849 = vunpack.c.l.b16 %v2714
    %v2850 = vunpack.c.l.b16 %v2715
    %v2851 = vunpack.c.l.b16 %v2716
    %v2852 = vunpack.c.l.b16 %v2717
    %v2853 = vunpack.c.l.b16 %v2718
    %v2854 = vunpack.c.l.b16 %v2719
    %v2855 = vunpack.c.l.b16 %v2720
    %v2856 = vunpack.c.l.b16 %v2721
    %v2857 = vunpack.c.l.b16 %v2722
    %v2858 = vunpack.c.l.b16 %v2723
    %v2859 = vunpack.c.l.b16 %v2724
    %v2860 = vunpack.c.l.b16 %v2725
    %v2861 = vunpack.c.l.b16 %v2726
    %v2862 = vunpack.c.l.b16 %v2727
    %v2863 = vunpack.c.l.b16 %v2728
    %v2864 = vunpack.c.l.b16 %v2729
    %v2865 = vunpack.c.l.b16 %v2730
    %v2866 = vunpack.c.l.b16 %v2731
    %v2867 = vunpack.c.l.b16 %v2732
    %v2868 = vunpack.c.l.b16 %v2733
    %v2869 = vunpack.c.l.b16 %v2734
    %v2870 = vunpack.c.l.b16 %v2735
    %v2871 = vunpack.c.l.b16 %v2736
    %v2872 = vunpack.c.l.b16 %v2737
    %v2873 = vunpack.c.l.b16 %v2738
    %v2874 = vunpack.c.l.b16 %v2739
    %v2875 = vunpack.c.l.b16 %v2740
    %v2876 = vunpack.c.l.b16 %v2741
    %v2877 = vunpack.c.l.b16 %v2742
    %v2878 = vunpack.c.l.b16 %v2743
    %v2879 = vunpack.c.l.b16 %v2744
    %v2880 = vunpack.c.l.b16 %v2745
    %v2881 = vunpack.c.l.b16 %v2746
    %v2882 = vunpack.c.l.b16 %v2747
    %v2883 = vunpack.c.l.b16 %v2748
    %v2884 = vunpack.c.l.b16 %v2749
    %v2885 = vunpack.c.l.b16 %v2750
    %v2886 = vunpack.c.l.b16 %v2751
    %v2887 = vunpack.c.l.b16 %v2752
    %v2888 = vunpack.c.l.b16 %v2753
    %v2889 = vunpack.c.l.b16 %v2754
    %v2890 = vunpack.c.l.b16 %v2755
    %v2891 = vunpack.c.l.b16 %v2756
    %v2892 = vunpack.c.l.b16 %v2757
    %v2893 = vunpack.c.l.b16 %v2758
    %v2894 = vunpack.c.l.b16 %v2759
    %v2895 = vunpack.c.l.b16 %v2760
    %v2896 = vunpack.c.l.b16 %v2761
    %v2897 = vunpack.c.l.b16 %v2762
    %v2898 = vunpack.c.l.b16 %v2763
    %v2899 = vunpack.c.l.b16 %v2764
    %v2900 = vunpack.c.l.b16 %v2765
    %v2901 = vunpack.c.l.b16 %v2766
    %v2902 = vunpack.c.l.b16 %v2767
    %v2903 = vunpack.c.l.b16 %v2768
    %v2904 = vunpack.c.l.b16 %v2769
    %v2905 = vunpack.c.l.b16 %v2770
    %v2906 = vunpack.c.l.b16 %v2771
    %v2907 = vunpack.c.l.b16 %v2772
    %v2908 = vunpack.c.l.b16 %v2773
    %v2909 = vunpack.c.l.b16 %v2774
    %v2910 = vpack.c.b16 %v2847, %v2846
    %v2911 = vpack.c.b16 %v2849, %v2848
    %v2912 = vpack.c.b16 %v2851, %v2850
    %v2913 = vpack.c.b16 %v2853, %v2852
    %v2914 = vpack.c.b16 %v2855, %v2854
    %v2915 = vpack.c.b16 %v2857, %v2856
    %v2916 = vpack.c.b16 %v2859, %v2858
    %v2917 = vpack.c.b16 %v2861, %v2860
    %v2918 = vpack.c.b16 %v2863, %v2862
    %v2919 = vpack.c.b16 %v2865, %v2864
    %v2920 = vpack.c.b16 %v2867, %v2866
    %v2921 = vpack.c.b16 %v2869, %v2868
    %v2922 = vpack.c.b16 %v2871, %v2870
    %v2923 = vpack.c.b16 %v2873, %v2872
    %v2924 = vpack.c.b16 %v2875, %v2874
    %v2925 = vpack.c.b16 %v2877, %v2876
    %v2926 = vpack.c.b16 %v2879, %v2878
    %v2927 = vpack.c.b16 %v2881, %v2880
    %v2928 = vpack.c.b16 %v2883, %v2882
    %v2929 = vpack.c.b16 %v2885, %v2884
    %v2930 = vpack.c.b16 %v2887, %v2886
    %v2931 = vpack.c.b16 %v2889, %v2888
    %v2932 = vpack.c.b16 %v2891, %v2890
    %v2933 = vpack.c.b16 %v2893, %v2892
    %v2934 = vpack.c.b16 %v2895, %v2894
    %v2935 = vpack.c.b16 %v2897, %v2896
    %v2936 = vpack.c.b16 %v2899, %v2898
    %v2937 = vpack.c.b16 %v2901, %v2900
    %v2938 = vpack.c.b16 %v2903, %v2902
    %v2939 = vpack.c.b16 %v2905, %v2904
    %v2940 = vpack.c.b16 %v2907, %v2906
    %v2941 = vpack.c.b16 %v2909, %v2908
    %2974 = vmatprep.subr.bf16.mxu0 0
    %2975 = vmatpush1.bf16.msra.mxu0 %v2910
    %2976 = vmatprep.subr.bf16.mxu0 0
    %2977 = vmatpush1.bf16.msra.mxu0 %v2911
    %2978 = vmatprep.subr.bf16.mxu0 0
    %2979 = vmatpush1.bf16.msra.mxu0 %v2912
    %2980 = vmatprep.subr.bf16.mxu0 0
    %2981 = vmatpush1.bf16.msra.mxu0 %v2913
    %2982 = vmatprep.subr.bf16.mxu0 0
    %2983 = vmatpush1.bf16.msra.mxu0 %v2914
    %2984 = vmatprep.subr.bf16.mxu0 0
    %2985 = vmatpush1.bf16.msra.mxu0 %v2915
    %2986 = vmatprep.subr.bf16.mxu0 0
    %2987 = vmatpush1.bf16.msra.mxu0 %v2916
    %2988 = vmatprep.subr.bf16.mxu0 0
    %2989 = vmatpush1.bf16.msra.mxu0 %v2917
    %2990 = vmatprep.subr.bf16.mxu0 0
    %2991 = vmatpush1.bf16.msra.mxu0 %v2918
    %2992 = vmatprep.subr.bf16.mxu0 0
    %2993 = vmatpush1.bf16.msra.mxu0 %v2919
    %2994 = vmatprep.subr.bf16.mxu0 0
    %2995 = vmatpush1.bf16.msra.mxu0 %v2920
    %2996 = vmatprep.subr.bf16.mxu0 0
    %2997 = vmatpush1.bf16.msra.mxu0 %v2921
    %2998 = vmatprep.subr.bf16.mxu0 0
    %2999 = vmatpush1.bf16.msra.mxu0 %v2922
    %3000 = vmatprep.subr.bf16.mxu0 0
    %3001 = vmatpush1.bf16.msra.mxu0 %v2923
    %3002 = vmatprep.subr.bf16.mxu0 0
    %3003 = vmatpush1.bf16.msra.mxu0 %v2924
    %3004 = vmatprep.subr.bf16.mxu0 0
    %3005 = vmatpush1.bf16.msra.mxu0 %v2925
    %3006 = vmatprep.mubr.bf16.mxu0 %v2648
    %3007 = vmatmul.mubr.bf16.gmra.mrb[0].mxu0 %v2647
    %v3008 = vpop.f32.mrb[0].mxu0
    %v3009 = vadd.f32 %v2780, %v3008
    %v3010 = vpop.f32.mrb[0].mxu0
    %v3011 = vpop.f32.mrb[0].mxu0
    %v3012 = vadd.f32 %v2780, %v3011
    %v3013 = vpop.f32.mrb[0].mxu0
    %3014 = vmatprep.mubr.bf16.mxu0 %v2652
    %3015 = vmatmul.mubr.bf16.gmra.mrb[0].mxu0 %v2651
    %v3016 = vpop.f32.mrb[0].mxu0
    %v3017 = vadd.f32 %v2780, %v3016
    %v3018 = vpop.f32.mrb[0].mxu0
    %v3019 = vpop.f32.mrb[0].mxu0
    %v3020 = vadd.f32 %v2780, %v3019
    %v3021 = vpop.f32.mrb[0].mxu0
    %3022 = vmatprep.mubr.bf16.mxu0 %v2656
    %3023 = vmatmul.mubr.bf16.gmra.mrb[0].mxu0 %v2655
    %v3024 = vpop.f32.mrb[0].mxu0
    %v3025 = vadd.f32 %v2780, %v3024
    %v3026 = vpop.f32.mrb[0].mxu0
    %v3027 = vpop.f32.mrb[0].mxu0
    %v3028 = vadd.f32 %v2780, %v3027
    %v3029 = vpop.f32.mrb[0].mxu0
    %3030 = vmatprep.mubr.bf16.mxu0 %v2660
    %3031 = vmatmul.mubr.bf16.gmra.mrb[0].mxu0 %v2659
    %v3032 = vpop.f32.mrb[0].mxu0
    %v3033 = vadd.f32 %v2780, %v3032
    %v3034 = vpop.f32.mrb[0].mxu0
    %v3035 = vpop.f32.mrb[0].mxu0
    %v3036 = vadd.f32 %v2780, %v3035
    %v3037 = vpop.f32.mrb[0].mxu0
    %3038 = vmatprep.mubr.bf16.mxu0 %v2664
    %3039 = vmatmul.mubr.bf16.gmra.mrb[0].mxu0 %v2663
    %v3040 = vpop.f32.mrb[0].mxu0
    %v3041 = vadd.f32 %v2780, %v3040
    %v3042 = vpop.f32.mrb[0].mxu0
    %v3043 = vpop.f32.mrb[0].mxu0
    %v3044 = vadd.f32 %v2780, %v3043
    %v3045 = vpop.f32.mrb[0].mxu0
    %3046 = vmatprep.mubr.bf16.mxu0 %v2668
    %3047 = vmatmul.mubr.bf16.gmra.mrb[0].mxu0 %v2667
    %v3048 = vpop.f32.mrb[0].mxu0
    %v3049 = vadd.f32 %v2780, %v3048
    %v3050 = vpop.f32.mrb[0].mxu0
    %v3051 = vpop.f32.mrb[0].mxu0
    %v3052 = vadd.f32 %v2780, %v3051
    %v3053 = vpop.f32.mrb[0].mxu0
    %3054 = vmatprep.mubr.bf16.mxu0 %v2672
    %3055 = vmatmul.mubr.bf16.gmra.mrb[0].mxu0 %v2671
    %v3056 = vpop.f32.mrb[0].mxu0
    %v3057 = vadd.f32 %v2780, %v3056
    %v3058 = vpop.f32.mrb[0].mxu0
    %v3059 = vpop.f32.mrb[0].mxu0
    %v3060 = vadd.f32 %v2780, %v3059
    %v3061 = vpop.f32.mrb[0].mxu0
    %3062 = vmatprep.mubr.bf16.mxu0 %v2676
    %3063 = vmatmul.mubr.bf16.gmra.mrb[0].mxu0 %v2675
    %v3064 = vpop.f32.mrb[0].mxu0
    %v3065 = vadd.f32 %v2780, %v3064
    %v3066 = vpop.f32.mrb[0].mxu0
    %v3067 = vpop.f32.mrb[0].mxu0
    %v3068 = vadd.f32 %v2780, %v3067
    %v3069 = vpop.f32.mrb[0].mxu0
    %3070 = vmatprep.mubr.bf16.mxu0 %v2680
    %3071 = vmatmul.mubr.bf16.gmra.mrb[0].mxu0 %v2679
    %v3072 = vpop.f32.mrb[0].mxu0
    %v3073 = vadd.f32 %v2780, %v3072
    %v3074 = vpop.f32.mrb[0].mxu0
    %v3075 = vpop.f32.mrb[0].mxu0
    %v3076 = vadd.f32 %v2780, %v3075
    %v3077 = vpop.f32.mrb[0].mxu0
    %3078 = vmatprep.mubr.bf16.mxu0 %v2684
    %3079 = vmatmul.mubr.bf16.gmra.mrb[0].mxu0 %v2683
    %v3080 = vpop.f32.mrb[0].mxu0
    %v3081 = vadd.f32 %v2780, %v3080
    %v3082 = vpop.f32.mrb[0].mxu0
    %v3083 = vpop.f32.mrb[0].mxu0
    %v3084 = vadd.f32 %v2780, %v3083
    %v3085 = vpop.f32.mrb[0].mxu0
    %3086 = vmatprep.mubr.bf16.mxu0 %v2688
    %3087 = vmatmul.mubr.bf16.gmra.mrb[0].mxu0 %v2687
    %v3088 = vpop.f32.mrb[0].mxu0
    %v3089 = vadd.f32 %v2780, %v3088
    %v3090 = vpop.f32.mrb[0].mxu0
    %v3091 = vpop.f32.mrb[0].mxu0
    %v3092 = vadd.f32 %v2780, %v3091
    %v3093 = vpop.f32.mrb[0].mxu0
    %3094 = vmatprep.mubr.bf16.mxu0 %v2692
    %3095 = vmatmul.mubr.bf16.gmra.mrb[0].mxu0 %v2691
    %v3096 = vpop.f32.mrb[0].mxu0
    %v3097 = vadd.f32 %v2780, %v3096
    %v3098 = vpop.f32.mrb[0].mxu0
    %v3099 = vpop.f32.mrb[0].mxu0
    %v3100 = vadd.f32 %v2780, %v3099
    %v3101 = vpop.f32.mrb[0].mxu0
    %3102 = vmatprep.mubr.bf16.mxu0 %v2696
    %3103 = vmatmul.mubr.bf16.gmra.mrb[0].mxu0 %v2695
    %v3104 = vpop.f32.mrb[0].mxu0
    %v3105 = vadd.f32 %v2780, %v3104
    %v3106 = vpop.f32.mrb[0].mxu0
    %v3107 = vpop.f32.mrb[0].mxu0
    %v3108 = vadd.f32 %v2780, %v3107
    %v3109 = vpop.f32.mrb[0].mxu0
    %3110 = vmatprep.mubr.bf16.mxu0 %v2700
    %3111 = vmatmul.mubr.bf16.gmra.mrb[0].mxu0 %v2699
    %v3112 = vpop.f32.mrb[0].mxu0
    %v3113 = vadd.f32 %v2780, %v3112
    %v3114 = vpop.f32.mrb[0].mxu0
    %v3115 = vpop.f32.mrb[0].mxu0
    %v3116 = vadd.f32 %v2780, %v3115
    %v3117 = vpop.f32.mrb[0].mxu0
    %3118 = vmatprep.mubr.bf16.mxu0 %v2704
    %3119 = vmatmul.mubr.bf16.gmra.mrb[0].mxu0 %v2703
    %v3120 = vpop.f32.mrb[0].mxu0
    %v3121 = vadd.f32 %v2780, %v3120
    %v3122 = vpop.f32.mrb[0].mxu0
    %v3123 = vpop.f32.mrb[0].mxu0
    %v3124 = vadd.f32 %v2780, %v3123
    %v3125 = vpop.f32.mrb[0].mxu0
    %3126 = vmatprep.mubr.bf16.mxu0 %v2708
    %3127 = vmatmul.mubr.bf16.gmra.mrb[0].mxu0 %v2707
    %v3128 = vpop.f32.mrb[0].mxu0
    %v3129 = vadd.f32 %v2780, %v3128
    %v3130 = vpop.f32.mrb[0].mxu0
    %v3131 = vpop.f32.mrb[0].mxu0
    %v3132 = vadd.f32 %v2780, %v3131
    %v3133 = vpop.f32.mrb[0].mxu0
    %3134 = vdwg.mxu0
    %3135 = vmatprep.subr.bf16.mxu0 0
    %3136 = vmatpush1.bf16.msra.mxu0 %v2926
    %3137 = vmatprep.subr.bf16.mxu0 0
    %3138 = vmatpush1.bf16.msra.mxu0 %v2927
    %3139 = vmatprep.subr.bf16.mxu0 0
    %3140 = vmatpush1.bf16.msra.mxu0 %v2928
    %3141 = vmatprep.subr.bf16.mxu0 0
    %3142 = vmatpush1.bf16.msra.mxu0 %v2929
    %3143 = vmatprep.subr.bf16.mxu0 0
    %3144 = vmatpush1.bf16.msra.mxu0 %v2930
    %3145 = vmatprep.subr.bf16.mxu0 0
    %3146 = vmatpush1.bf16.msra.mxu0 %v2931
    %3147 = vmatprep.subr.bf16.mxu0 0
    %3148 = vmatpush1.bf16.msra.mxu0 %v2932
    %3149 = vmatprep.subr.bf16.mxu0 0
    %3150 = vmatpush1.bf16.msra.mxu0 %v2933
    %3151 = vmatprep.subr.bf16.mxu0 0
    %3152 = vmatpush1.bf16.msra.mxu0 %v2934
    %3153 = vmatprep.subr.bf16.mxu0 0
    %3154 = vmatpush1.bf16.msra.mxu0 %v2935
    %3155 = vmatprep.subr.bf16.mxu0 0
    %3156 = vmatpush1.bf16.msra.mxu0 %v2936
    %3157 = vmatprep.subr.bf16.mxu0 0
    %3158 = vmatpush1.bf16.msra.mxu0 %v2937
    %3159 = vmatprep.subr.bf16.mxu0 0
    %3160 = vmatpush1.bf16.msra.mxu0 %v2938
    %3161 = vmatprep.subr.bf16.mxu0 0
    %3162 = vmatpush1.bf16.msra.mxu0 %v2939
    %3163 = vmatprep.subr.bf16.mxu0 0
    %3164 = vmatpush1.bf16.msra.mxu0 %v2940
    %3165 = vmatprep.subr.bf16.mxu0 0
    %3166 = vmatpush1.bf16.msra.mxu0 %v2941
    %3167 = vmatprep.mubr.bf16.mxu0 %v2650
    %3168 = vmatmul.mubr.bf16.gmra.mrb[0].mxu0 %v2649
    %v3169 = vpop.f32.mrb[0].mxu0
    %v3170 = vadd.f32 %v3009, %v3169
    %v3171 = vpop.f32.mrb[0].mxu0
    %v3172 = vpop.f32.mrb[0].mxu0
    %v3173 = vadd.f32 %v3012, %v3172
    %v3174 = vpop.f32.mrb[0].mxu0
    %3175 = vmatprep.mubr.bf16.mxu0 %v2654
    %3176 = vmatmul.mubr.bf16.gmra.mrb[0].mxu0 %v2653
    %v3177 = vpop.f32.mrb[0].mxu0
    %v3178 = vadd.f32 %v3017, %v3177
    %v3179 = vpop.f32.mrb[0].mxu0
    %v3180 = vpop.f32.mrb[0].mxu0
    %v3181 = vadd.f32 %v3020, %v3180
    %v3182 = vpop.f32.mrb[0].mxu0
    %3183 = vmatprep.mubr.bf16.mxu0 %v2658
    %3184 = vmatmul.mubr.bf16.gmra.mrb[0].mxu0 %v2657
    %v3185 = vpop.f32.mrb[0].mxu0
    %v3186 = vadd.f32 %v3025, %v3185
    %v3187 = vpop.f32.mrb[0].mxu0
    %v3188 = vpop.f32.mrb[0].mxu0
    %v3189 = vadd.f32 %v3028, %v3188
    %v3190 = vpop.f32.mrb[0].mxu0
    %3191 = vmatprep.mubr.bf16.mxu0 %v2662
    %3192 = vmatmul.mubr.bf16.gmra.mrb[0].mxu0 %v2661
    %v3193 = vpop.f32.mrb[0].mxu0
    %v3194 = vadd.f32 %v3033, %v3193
    %v3195 = vpop.f32.mrb[0].mxu0
    %v3196 = vpop.f32.mrb[0].mxu0
    %v3197 = vadd.f32 %v3036, %v3196
    %v3198 = vpop.f32.mrb[0].mxu0
    %3199 = vmatprep.mubr.bf16.mxu0 %v2666
    %3200 = vmatmul.mubr.bf16.gmra.mrb[0].mxu0 %v2665
    %v3201 = vpop.f32.mrb[0].mxu0
    %v3202 = vadd.f32 %v3041, %v3201
    %v3203 = vpop.f32.mrb[0].mxu0
    %v3204 = vpop.f32.mrb[0].mxu0
    %v3205 = vadd.f32 %v3044, %v3204
    %v3206 = vpop.f32.mrb[0].mxu0
    %3207 = vmatprep.mubr.bf16.mxu0 %v2670
    %3208 = vmatmul.mubr.bf16.gmra.mrb[0].mxu0 %v2669
    %v3209 = vpop.f32.mrb[0].mxu0
    %v3210 = vadd.f32 %v3049, %v3209
    %v3211 = vpop.f32.mrb[0].mxu0
    %v3212 = vpop.f32.mrb[0].mxu0
    %v3213 = vadd.f32 %v3052, %v3212
    %v3214 = vpop.f32.mrb[0].mxu0
    %3215 = vmatprep.mubr.bf16.mxu0 %v2674
    %3216 = vmatmul.mubr.bf16.gmra.mrb[0].mxu0 %v2673
    %v3217 = vpop.f32.mrb[0].mxu0
    %v3218 = vadd.f32 %v3057, %v3217
    %v3219 = vpop.f32.mrb[0].mxu0
    %v3220 = vpop.f32.mrb[0].mxu0
    %v3221 = vadd.f32 %v3060, %v3220
    %v3222 = vpop.f32.mrb[0].mxu0
    %3223 = vmatprep.mubr.bf16.mxu0 %v2678
    %3224 = vmatmul.mubr.bf16.gmra.mrb[0].mxu0 %v2677
    %v3225 = vpop.f32.mrb[0].mxu0
    %v3226 = vadd.f32 %v3065, %v3225
    %v3227 = vpop.f32.mrb[0].mxu0
    %v3228 = vpop.f32.mrb[0].mxu0
    %v3229 = vadd.f32 %v3068, %v3228
    %v3230 = vpop.f32.mrb[0].mxu0
    %3231 = vmatprep.mubr.bf16.mxu0 %v2682
    %3232 = vmatmul.mubr.bf16.gmra.mrb[0].mxu0 %v2681
    %v3233 = vpop.f32.mrb[0].mxu0
    %v3234 = vadd.f32 %v3073, %v3233
    %v3235 = vpop.f32.mrb[0].mxu0
    %v3236 = vpop.f32.mrb[0].mxu0
    %v3237 = vadd.f32 %v3076, %v3236
    %v3238 = vpop.f32.mrb[0].mxu0
    %3239 = vmatprep.mubr.bf16.mxu0 %v2686
    %3240 = vmatmul.mubr.bf16.gmra.mrb[0].mxu0 %v2685
    %v3241 = vpop.f32.mrb[0].mxu0
    %v3242 = vadd.f32 %v3081, %v3241
    %v3243 = vpop.f32.mrb[0].mxu0
    %v3244 = vpop.f32.mrb[0].mxu0
    %v3245 = vadd.f32 %v3084, %v3244
    %v3246 = vpop.f32.mrb[0].mxu0
    %3247 = vmatprep.mubr.bf16.mxu0 %v2690
    %3248 = vmatmul.mubr.bf16.gmra.mrb[0].mxu0 %v2689
    %v3249 = vpop.f32.mrb[0].mxu0
    %v3250 = vadd.f32 %v3089, %v3249
    %v3251 = vpop.f32.mrb[0].mxu0
    %v3252 = vpop.f32.mrb[0].mxu0
    %v3253 = vadd.f32 %v3092, %v3252
    %v3254 = vpop.f32.mrb[0].mxu0
    %3255 = vmatprep.mubr.bf16.mxu0 %v2694
    %3256 = vmatmul.mubr.bf16.gmra.mrb[0].mxu0 %v2693
    %v3257 = vpop.f32.mrb[0].mxu0
    %v3258 = vadd.f32 %v3097, %v3257
    %v3259 = vpop.f32.mrb[0].mxu0
    %v3260 = vpop.f32.mrb[0].mxu0
    %v3261 = vadd.f32 %v3100, %v3260
    %v3262 = vpop.f32.mrb[0].mxu0
    %3263 = vmatprep.mubr.bf16.mxu0 %v2698
    %3264 = vmatmul.mubr.bf16.gmra.mrb[0].mxu0 %v2697
    %v3265 = vpop.f32.mrb[0].mxu0
    %v3266 = vadd.f32 %v3105, %v3265
    %v3267 = vpop.f32.mrb[0].mxu0
    %v3268 = vpop.f32.mrb[0].mxu0
    %v3269 = vadd.f32 %v3108, %v3268
    %v3270 = vpop.f32.mrb[0].mxu0
    %3271 = vmatprep.mubr.bf16.mxu0 %v2702
    %3272 = vmatmul.mubr.bf16.gmra.mrb[0].mxu0 %v2701
    %v3273 = vpop.f32.mrb[0].mxu0
    %v3274 = vadd.f32 %v3113, %v3273
    %v3275 = vpop.f32.mrb[0].mxu0
    %v3276 = vpop.f32.mrb[0].mxu0
    %v3277 = vadd.f32 %v3116, %v3276
    %v3278 = vpop.f32.mrb[0].mxu0
    %3279 = vmatprep.mubr.bf16.mxu0 %v2706
    %3280 = vmatmul.mubr.bf16.gmra.mrb[0].mxu0 %v2705
    %v3281 = vpop.f32.mrb[0].mxu0
    %v3282 = vadd.f32 %v3121, %v3281
    %v3283 = vpop.f32.mrb[0].mxu0
    %v3284 = vpop.f32.mrb[0].mxu0
    %v3285 = vadd.f32 %v3124, %v3284
    %v3286 = vpop.f32.mrb[0].mxu0
    %3287 = vmatprep.mubr.bf16.mxu0 %v2710
    %3288 = vmatmul.mubr.bf16.gmra.mrb[0].mxu0 %v2709
    %v3289 = vpop.f32.mrb[0].mxu0
    %v3290 = vadd.f32 %v3129, %v3289
    %v3291 = vpop.f32.mrb[0].mxu0
    %v3292 = vpop.f32.mrb[0].mxu0
    %v3293 = vadd.f32 %v3132, %v3292
    %v3294 = vpop.f32.mrb[0].mxu0
    %3295 = vdwg.mxu0
    %v3296 = vmul.f32 %v117, 0.1
    %v3297 = vmul.f32 %v118, 0.1
    %v3298 = vmul.f32 %v119, 0.1
    %v3299 = vmul.f32 %v120, 0.1
    %v3300 = vmul.f32 %v121, 0.1
    %v3301 = vmul.f32 %v122, 0.1
    %v3302 = vmul.f32 %v123, 0.1
    %v3303 = vmul.f32 %v124, 0.1
    %v3304 = vmul.f32 %v125, 0.1
    %v3305 = vmul.f32 %v126, 0.1
    %v3306 = vmul.f32 %v127, 0.1
    %v3307 = vmul.f32 %v128, 0.1
    %v3308 = vmul.f32 %v129, 0.1
    %v3309 = vmul.f32 %v130, 0.1
    %v3310 = vmul.f32 %v131, 0.1
    %v3311 = vmul.f32 %v132, 0.1
    %v3312 = vmul.f32 %v133, 0.1
    %v3313 = vmul.f32 %v134, 0.1
    %v3314 = vmul.f32 %v135, 0.1
    %v3315 = vmul.f32 %v136, 0.1
    %v3316 = vmul.f32 %v137, 0.1
    %v3317 = vmul.f32 %v138, 0.1
    %v3318 = vmul.f32 %v139, 0.1
    %v3319 = vmul.f32 %v140, 0.1
    %v3320 = vmul.f32 %v141, 0.1
    %v3321 = vmul.f32 %v142, 0.1
    %v3322 = vmul.f32 %v143, 0.1
    %v3323 = vmul.f32 %v144, 0.1
    %v3324 = vmul.f32 %v145, 0.1
    %v3325 = vmul.f32 %v146, 0.1
    %v3326 = vmul.f32 %v147, 0.1
    %v3327 = vmul.f32 %v148, 0.1
    %v3328 = vadd.f32 %v3170, %v3296
    %v3329 = vadd.f32 %v3173, %v3297
    %v3330 = vadd.f32 %v3178, %v3298
    %v3331 = vadd.f32 %v3181, %v3299
    %v3332 = vadd.f32 %v3186, %v3300
    %v3333 = vadd.f32 %v3189, %v3301
    %v3334 = vadd.f32 %v3194, %v3302
    %v3335 = vadd.f32 %v3197, %v3303
    %v3336 = vadd.f32 %v3202, %v3304
    %v3337 = vadd.f32 %v3205, %v3305
    %v3338 = vadd.f32 %v3210, %v3306
    %v3339 = vadd.f32 %v3213, %v3307
    %v3340 = vadd.f32 %v3218, %v3308
    %v3341 = vadd.f32 %v3221, %v3309
    %v3342 = vadd.f32 %v3226, %v3310
    %v3343 = vadd.f32 %v3229, %v3311
    %v3344 = vadd.f32 %v3234, %v3312
    %v3345 = vadd.f32 %v3237, %v3313
    %v3346 = vadd.f32 %v3242, %v3314
    %v3347 = vadd.f32 %v3245, %v3315
    %v3348 = vadd.f32 %v3250, %v3316
    %v3349 = vadd.f32 %v3253, %v3317
    %v3350 = vadd.f32 %v3258, %v3318
    %v3351 = vadd.f32 %v3261, %v3319
    %v3352 = vadd.f32 %v3266, %v3320
    %v3353 = vadd.f32 %v3269, %v3321
    %v3354 = vadd.f32 %v3274, %v3322
    %v3355 = vadd.f32 %v3277, %v3323
    %v3356 = vadd.f32 %v3282, %v3324
    %v3357 = vadd.f32 %v3285, %v3325
    %v3358 = vadd.f32 %v3290, %v3326
    %v3359 = vadd.f32 %v3293, %v3327
    %3360 = vst [vmem:[#allocation14] sm:$0xff] %v3328
    %3361 = vst [vmem:[#allocation14 + $0x8] sm:$0xff] %v3329
    %3362 = vst [vmem:[#allocation14 + $0x10] sm:$0xff] %v3330
    %3363 = vst [vmem:[#allocation14 + $0x18] sm:$0xff] %v3331
    %3364 = vst [vmem:[#allocation14 + $0x20] sm:$0xff] %v3332
    %3365 = vst [vmem:[#allocation14 + $0x28] sm:$0xff] %v3333
    %3366 = vst [vmem:[#allocation14 + $0x30] sm:$0xff] %v3334
    %3367 = vst [vmem:[#allocation14 + $0x38] sm:$0xff] %v3335
    %3368 = vst [vmem:[#allocation14 + $0x40] sm:$0xff] %v3336
    %3369 = vst [vmem:[#allocation14 + $0x48] sm:$0xff] %v3337
    %3370 = vst [vmem:[#allocation14 + $0x50] sm:$0xff] %v3338
    %3371 = vst [vmem:[#allocation14 + $0x58] sm:$0xff] %v3339
    %3372 = vst [vmem:[#allocation14 + $0x60] sm:$0xff] %v3340
    %3373 = vst [vmem:[#allocation14 + $0x68] sm:$0xff] %v3341
    %3374 = vst [vmem:[#allocation14 + $0x70] sm:$0xff] %v3342
    %3375 = vst [vmem:[#allocation14 + $0x78] sm:$0xff] %v3343
    %3376 = vst [vmem:[#allocation14 + $0x80] sm:$0xff] %v3344
    %3377 = vst [vmem:[#allocation14 + $0x88] sm:$0xff] %v3345
    %3378 = vst [vmem:[#allocation14 + $0x90] sm:$0xff] %v3346
    %3379 = vst [vmem:[#allocation14 + $0x98] sm:$0xff] %v3347
    %3380 = vst [vmem:[#allocation14 + $0xa0] sm:$0xff] %v3348
    %3381 = vst [vmem:[#allocation14 + $0xa8] sm:$0xff] %v3349
    %3382 = vst [vmem:[#allocation14 + $0xb0] sm:$0xff] %v3350
    %3383 = vst [vmem:[#allocation14 + $0xb8] sm:$0xff] %v3351
    %3384 = vst [vmem:[#allocation14 + $0xc0] sm:$0xff] %v3352
    %3385 = vst [vmem:[#allocation14 + $0xc8] sm:$0xff] %v3353
    %3386 = vst [vmem:[#allocation14 + $0xd0] sm:$0xff] %v3354
    %3387 = vst [vmem:[#allocation14 + $0xd8] sm:$0xff] %v3355
    %3388 = vst [vmem:[#allocation14 + $0xe0] sm:$0xff] %v3356
    %3389 = vst [vmem:[#allocation14 + $0xe8] sm:$0xff] %v3357
    %3390 = vst [vmem:[#allocation14 + $0xf0] sm:$0xff] %v3358
    %3391 = vst [vmem:[#allocation14 + $0xf8] sm:$0xff] %v3359
    // Predicated region
    $region58: #{standard_mlp_refinement.1} parent=1 // pred_check
      _
    $region59: #{standard_mlp_refinement.1} parent=1 // pred_check_branch
      %3393 = sbr.rel (0) target = $region61
    $region60: #{standard_mlp_refinement.1} parent=1 // pred_region
      %s3395 = ssub.s32 4096, 4096
      %3396 = vsyncadd [#allocation4], %s3395
      %s3397 = sshll.u32 [#allocation14], 4
      %s3398 = int_to_ptr.vmem [resolvable:$true] %s3397
      %3403 = dma.vmem_to_hbm [thread:$0]  %s3398, 4096, %s7, [#allocation4], 128, 128, 8
    $region61: #{standard_mlp_refinement.1} parent=1 // pred_fallthru
      _
    // Predicated region
    $region62: #{standard_mlp_refinement.1} parent=1 // pred_check
      _
    $region63: #{standard_mlp_refinement.1} parent=1 // pred_check_branch
      %3405 = sbr.rel (0) target = $region65
    $region64: #{standard_mlp_refinement.1} parent=1 // pred_region
      %3406 = dma.done [#allocation4], 4096
    $region65: #{standard_mlp_refinement.1} parent=1 // pred_fallthru
      _
    %3407 = vsyncpa [#allocation3], 1
    %3408 = vsyncpa [#allocation6], 1
    %3409 = vsyncpa [#allocation9], 1
    %3410 = vsyncpa [#allocation12], 1
    %3411 = vsyncpa [#allocation4], 1

</llo_original>
